<compile_context>
chip_gen: v7x
topology: tpu7x:2x2x1
jax: 0.10.0
libtpu: 0.0.40
codegen_flags: <defaults>
</compile_context>

<pallas_src>
import jax
import jax.numpy as jnp
from jax import lax
from jax.experimental import pallas as pl
from jax.experimental.pallas import tpu as pltpu


_TEMP = 0.5   # hard-coded temperature in the module (`/ 0.5`)
_EPS = 1e-8   # torch CosineSimilarity default eps


# ------------------------------ fused kernel ----------------------------------

def _make_fused_kernel(n_pad, n_valid, temp, eps):
    inv_temp = 1.0 / temp

    def kernel(p_ref, w_ref, add_ref, loss_ref, tok_ref):
        side = pl.program_id(0)            # 0 = x tokens, 1 = y tokens

        # Patch embedding: bf16 inputs on the MXU, f32 accumulation.  `add_ref`
        # already holds pos_emb + conv_bias (patch rows) / pos_emb + cls_token
        # (cls rows) / zeros (pad rows), so token assembly is a single add.
        emb = jnp.dot(p_ref[...], w_ref[...],
                      preferred_element_type=jnp.float32) + add_ref[...]

        # L2 normalize with rsqrt (EUP slot) instead of sqrt+divide on the VPU.
        # rsqrt(max(ssq, eps^2)) == 1 / max(||v||, eps).
        ssq = jnp.sum(emb * emb, axis=-1, keepdims=True)
        inv_norm = lax.rsqrt(jnp.maximum(ssq, eps * eps))
        tok_ref[side] = emb * inv_norm     # normalized tokens stay in VMEM

        @pl.when(side == pl.num_programs(0) - 1)
        def _():
            xt = tok_ref[0]                # [n_pad, hidden]
            yt = tok_ref[1]
            # Cosine-similarity matrix on a clean (n_pad x n_pad) block (f32 —
            # this matmul is tiny; the heavy K=4096 matmul above is bf16).
            sim = lax.dot_general(xt, yt, (((1,), (1,)), ((), ())),
                                  preferred_element_type=jnp.float32)
            e = jnp.exp(sim * inv_temp)

            row = lax.broadcasted_iota(jnp.int32, (n_pad, n_pad), 0)
            col = lax.broadcasted_iota(jnp.int32, (n_pad, n_pad), 1)
            valid = (row < n_valid) & (col < n_valid)
            total = jnp.sum(jnp.where(valid, e, 0.0))

            # "close" (diagonal) terms via a row-wise dot — no second NxN pass.
            diag_e = jnp.exp(jnp.sum(xt * yt, axis=-1, keepdims=True) * inv_temp)
            rmask = lax.broadcasted_iota(jnp.int32, (n_pad, 1), 0) < n_valid
            close = jnp.sum(jnp.where(rmask, diag_e, 0.0))

            far = total - close
            loss_ref[0, 0] = -jnp.log(close / far)

    return kernel


# ------------------------------ JAX glue ---------------------------------------

def extract_patches(x, size):
    """NCHW -> [B, P, C*size*size]; patch index row-major over (h', w'),
    inner order (c, kh, kw) to match the Conv2d weight layout."""
    B, C, H, W = x.shape
    Hp, Wp = H // size, W // size
    p = x.reshape(B, C, Hp, size, Wp, size)
    p = p.transpose(0, 2, 4, 1, 3, 5)            # [B, Hp, Wp, C, s, s]
    return p.reshape(B, Hp * Wp, C * size * size)


def pair_contrastive_loss(x, y, params, size):
    w = params["w"]            # [hidden, C, s, s]  (PyTorch conv weight layout)
    b = params["b"]            # [hidden]
    cls = params["cls_token"]  # [1, 1, hidden]
    pos = params["pos_emb"]    # [1, P+1, hidden]
    hidden = w.shape[0]
    B = x.shape[0]

    px = extract_patches(x, size)                # [B, P, K]
    py = extract_patches(y, size)
    _, P, K = px.shape
    n_tok = B * (P + 1)                          # valid tokens per side
    n_pad = max(128, ((n_tok + 127) // 128) * 128)

    def side_patches(p):
        # Insert an all-zero row at each batch's cls slot and pad to n_pad rows,
        # so the matmul output is already token-aligned. bf16 halves the DMA.
        z = jnp.zeros((B, 1, K), p.dtype)
        t = jnp.concatenate([z, p], axis=1).reshape(n_tok, K)
        t = jnp.pad(t, ((0, n_pad - n_tok), (0, 0)))
        return t.astype(jnp.bfloat16)

    patches = jnp.concatenate([side_patches(px), side_patches(py)], axis=0)  # [2*n_pad, K]
    w_mat = w.reshape(hidden, K).T.astype(jnp.bfloat16)                      # [K, hidden]

    # addend[t] = pos_emb[pos] + (cls_token if pos == 0 else conv_bias); 0 on pad rows.
    cls_row = cls.reshape(1, hidden) + pos[0, 0:1, :]        # [1, hidden]
    patch_rows = b.reshape(1, hidden) + pos[0, 1:, :]        # [P, hidden]
    add_side = jnp.tile(jnp.concatenate([cls_row, patch_rows], axis=0), (B, 1))
    add_side = jnp.pad(add_side, ((0, n_pad - n_tok), (0, 0)))
    addend = jnp.concatenate([add_side, add_side], axis=0).astype(jnp.float32)

    kernel = _make_fused_kernel(n_pad, n_tok, _TEMP, _EPS)
    loss = pl.pallas_call(
        kernel,
        out_shape=jax.ShapeDtypeStruct((1, 1), jnp.float32),
        grid_spec=pltpu.PrefetchScalarGridSpec(
            num_scalar_prefetch=0,
            grid=(2,),   # step 0: x side; step 1: y side + loss epilogue
            in_specs=[
                pl.BlockSpec((n_pad, K), lambda i: (i, 0)),       # per-side patches
                pl.BlockSpec((K, hidden), lambda i: (0, 0)),      # weight, resident
                pl.BlockSpec((n_pad, hidden), lambda i: (i, 0)),  # per-side addend
            ],
            out_specs=pl.BlockSpec(memory_space=pltpu.MemorySpace.SMEM),
            scratch_shapes=[pltpu.VMEM((2, n_pad, hidden), jnp.float32)],
        ),
        compiler_params=pltpu.CompilerParams(
            dimension_semantics=("arbitrary",)),  # step 1 reads step 0's scratch
    )(patches, w_mat, addend)
    return loss[0, 0]


# --------------------------- pure-JAX reference --------------------------------

def reference_loss(x, y, params, size):
    w, bias = params["w"], params["b"]
    cls, pos = params["cls_token"], params["pos_emb"]
    hidden = w.shape[0]
    B = x.shape[0]
    px = extract_patches(x, size)
    py = extract_patches(y, size)
    _, P, K = px.shape
    w_mat = w.reshape(hidden, K).T
    ex = (px.reshape(B * P, K) @ w_mat + bias).reshape(B, P, hidden)
    ey = (py.reshape(B * P, K) @ w_mat + bias).reshape(B, P, hidden)
    cls_b = jnp.broadcast_to(cls, (B, 1, hidden))
    xt = (jnp.concatenate([cls_b, ex], axis=1) + pos).reshape(-1, hidden)
    yt = (jnp.concatenate([cls_b, ey], axis=1) + pos).reshape(-1, hidden)
    eps = 1e-8
    nx = jnp.maximum(jnp.linalg.norm(xt, axis=-1, keepdims=True), eps)
    ny = jnp.maximum(jnp.linalg.norm(yt, axis=-1, keepdims=True), eps)
    sim = (xt / nx) @ (yt / ny).T
    e = jnp.exp(sim / 0.5)
    n = sim.shape[0]
    eye = jnp.eye(n, dtype=bool)
    return -jnp.log(jnp.sum(jnp.where(eye, e, 0.0)) / jnp.sum(jnp.where(eye, 0.0, e)))


# --------------------------------- main ----------------------------------------

if __name__ == "__main__":
    # Module hyper-params (224 spatial size is hard-coded by the pos-embedding):
    channel, hidden, size = 4, 32, 32          # 224 // 32 = 7  ->  P = 49 patches
    B, H, W = 2, 224, 224
    n_patches = (224 // size) * (224 // size)

    key = jax.random.PRNGKey(0)
    kx, ky, kw, kb = jax.random.split(key, 4)
    x = jax.random.normal(kx, (B, channel, H, W), jnp.float32)
    y = jax.random.normal(ky, (B, channel, H, W), jnp.float32)

    fan_in = channel * size * size
    bound = 1.0 / (fan_in ** 0.5)
    params = {
        "w": jax.random.uniform(kw, (hidden, channel, size, size), jnp.float32,
                                -bound, bound),
        "b": jax.random.uniform(kb, (hidden,), jnp.float32, -bound, bound),
        # Module __init__ initializes these to zeros:
        "cls_token": jnp.zeros((1, 1, hidden), jnp.float32),
        "pos_emb": jnp.zeros((1, n_patches + 1, hidden), jnp.float32),
    }

    fused = jax.jit(lambda xx, yy, pp: pair_contrastive_loss(xx, yy, pp, size))
    loss = jax.block_until_ready(fused(x, y, params))
    ref = jax.block_until_ready(reference_loss(x, y, params, size))
    assert jnp.isfinite(loss), "loss is not finite"
    assert abs(float(loss) - float(ref)) < 5e-2, (float(loss), float(ref))
    print("KERNEL_OK")
</pallas_src>

<mosaic_0001>
module attributes {stable_mosaic.version = 11 : i64} {
  func.func @kernel(%arg0: i32, %arg1: memref<128x4096xbf16, #tpu.memory_space<vmem>>, %arg2: memref<4096x32xbf16, #tpu.memory_space<vmem>>, %arg3: memref<128x32xf32, #tpu.memory_space<vmem>>, %arg4: memref<1x1xf32, #tpu.memory_space<smem>>, %arg5: memref<2x128x32xf32, #tpu.memory_space<vmem>>) attributes {dimension_semantics = [#tpu.dimension_semantics<arbitrary>], iteration_bounds = array<i64: 2>, scalar_prefetch = 0 : i64, scratch_operands = 1 : i64, tpu.core_type = #tpu.core_type<tc>, window_params = [{transform_indices = @transform_0, window_bounds = array<i64: 128, 4096>}, {pipeline_mode = #tpu.pipeline_mode<synchronous>, transform_indices = @transform_1, window_bounds = array<i64: 4096, 32>}, {transform_indices = @transform_2, window_bounds = array<i64: 128, 32>}, {transform_indices = @transform_3, window_bounds = array<i64: 1, 1>}]} {
    %c0 = arith.constant 0 : index
    %c0_0 = arith.constant 0 : index
    %0 = vector.load %arg1[%c0, %c0_0] : memref<128x4096xbf16, #tpu.memory_space<vmem>>, vector<128x4096xbf16>
    %c0_1 = arith.constant 0 : index
    %c0_2 = arith.constant 0 : index
    %1 = vector.load %arg2[%c0_1, %c0_2] : memref<4096x32xbf16, #tpu.memory_space<vmem>>, vector<4096x32xbf16>
    %cst = arith.constant dense<0.000000e+00> : vector<128x32xf32>
    %2 = tpu.matmul %0, %1, %cst {dimension_numbers = #tpu.dot_dimension_numbers<[1], [0], [0], [1], [0, 0, 1, 1], [], []>} : vector<128x4096xbf16>, vector<4096x32xbf16>, vector<128x32xf32> -> vector<128x32xf32>
    %c0_3 = arith.constant 0 : index
    %c0_4 = arith.constant 0 : index
    %3 = vector.load %arg3[%c0_3, %c0_4] : memref<128x32xf32, #tpu.memory_space<vmem>>, vector<128x32xf32>
    %4 = arith.addf %2, %3 : vector<128x32xf32>
    %5 = arith.mulf %4, %4 : vector<128x32xf32>
    %cst_5 = arith.constant dense<0.000000e+00> : vector<128xf32>
    %6 = vector.multi_reduction <add>, %5, %cst_5 [1] : vector<128x32xf32> to vector<128xf32>
    %7 = vector.shape_cast %6 : vector<128xf32> to vector<128x1xf32>
    %cst_6 = arith.constant 1.000000e-16 : f32
    %8 = vector.broadcast %cst_6 : f32 to vector<128x1xf32>
    %9 = arith.maximumf %7, %8 : vector<128x1xf32>
    %10 = math.rsqrt %9 : vector<128x1xf32>
    %11 = vector.broadcast %10 : vector<128x1xf32> to vector<128x32xf32>
    %12 = arith.mulf %4, %11 : vector<128x32xf32>
    %13 = arith.index_cast %arg0 : i32 to index
    %c0_7 = arith.constant 0 : index
    %c0_8 = arith.constant 0 : index
    %14 = vector.load %arg5[%13, %c0_7, %c0_8] : memref<2x128x32xf32, #tpu.memory_space<vmem>>, vector<1x128x32xf32>
    %15 = vector.shape_cast %14 : vector<1x128x32xf32> to vector<128x32xf32>
    %16 = vector.shape_cast %12 : vector<128x32xf32> to vector<1x128x32xf32>
    tpu.vector_store %arg5[%13, %c0_7, %c0_8], %16 {strides = array<i32>} : memref<2x128x32xf32, #tpu.memory_space<vmem>>, vector<1x128x32xf32>,
    %c1_i32 = arith.constant 1 : i32
    %17 = arith.cmpi eq, %arg0, %c1_i32 : i32
    %18 = arith.extui %17 : i1 to i32
    %c0_i32 = arith.constant 0 : i32
    %19 = arith.cmpi ne, %18, %c0_i32 : i32
    scf.if %19 {
      %c0_9 = arith.constant 0 : index
      %c0_10 = arith.constant 0 : index
      %c0_11 = arith.constant 0 : index
      %20 = vector.load %arg5[%c0_9, %c0_10, %c0_11] : memref<2x128x32xf32, #tpu.memory_space<vmem>>, vector<1x128x32xf32>
      %21 = vector.shape_cast %20 : vector<1x128x32xf32> to vector<128x32xf32>
      %c1 = arith.constant 1 : index
      %c0_12 = arith.constant 0 : index
      %c0_13 = arith.constant 0 : index
      %22 = vector.load %arg5[%c1, %c0_12, %c0_13] : memref<2x128x32xf32, #tpu.memory_space<vmem>>, vector<1x128x32xf32>
      %23 = vector.shape_cast %22 : vector<1x128x32xf32> to vector<128x32xf32>
      %cst_14 = arith.constant dense<0.000000e+00> : vector<128x128xf32>
      %24 = tpu.matmul %21, %23, %cst_14 {dimension_numbers = #tpu.dot_dimension_numbers<[1], [1], [0], [0], [0, 0, 1, 0], [], []>} : vector<128x32xf32>, vector<128x32xf32>, vector<128x128xf32> -> vector<128x128xf32>
      %cst_15 = arith.constant 2.000000e+00 : f32
      %25 = vector.broadcast %cst_15 : f32 to vector<128x128xf32>
      %26 = arith.mulf %24, %25 : vector<128x128xf32>
      %27 = math.exp %26 : vector<128x128xf32>
      %28 = tpu.iota {dimensions = array<i32: 0>} : vector<128x128xi32>
      %29 = tpu.iota {dimensions = array<i32: 1>} : vector<128x128xi32>
      %c100_i32 = arith.constant 100 : i32
      %30 = vector.broadcast %c100_i32 : i32 to vector<128x128xi32>
      %31 = arith.cmpi slt, %28, %30 : vector<128x128xi32>
      %c100_i32_16 = arith.constant 100 : i32
      %32 = vector.broadcast %c100_i32_16 : i32 to vector<128x128xi32>
      %33 = arith.cmpi slt, %29, %32 : vector<128x128xi32>
      %34 = arith.andi %31, %33 : vector<128x128xi1>
      %cst_17 = arith.constant 0.000000e+00 : f32
      %35 = vector.broadcast %cst_17 : f32 to vector<128x128xf32>
      %36 = arith.select %34, %27, %35 : vector<128x128xi1>, vector<128x128xf32>
      %37 = vector.shape_cast %36 : vector<128x128xf32> to vector<1x128x128xf32>
      %cst_18 = arith.constant dense<0.000000e+00> : vector<1xf32>
      %38 = vector.multi_reduction <add>, %37, %cst_18 [1, 2] : vector<1x128x128xf32> to vector<1xf32>
      %39 = vector.shape_cast %38 : vector<1xf32> to vector<1x1x1xf32>
      %40 = vector.extract %39[0, 0, 0] : f32 from vector<1x1x1xf32>
      %41 = arith.mulf %21, %23 : vector<128x32xf32>
      %cst_19 = arith.constant dense<0.000000e+00> : vector<128xf32>
      %42 = vector.multi_reduction <add>, %41, %cst_19 [1] : vector<128x32xf32> to vector<128xf32>
      %43 = vector.shape_cast %42 : vector<128xf32> to vector<128x1xf32>
      %cst_20 = arith.constant 2.000000e+00 : f32
      %44 = vector.broadcast %cst_20 : f32 to vector<128x1xf32>
      %45 = arith.mulf %43, %44 : vector<128x1xf32>
      %46 = math.exp %45 : vector<128x1xf32>
      %47 = tpu.iota {dimensions = array<i32: 0>} : vector<128x1xi32>
      %c100_i32_21 = arith.constant 100 : i32
      %48 = vector.broadcast %c100_i32_21 : i32 to vector<128x1xi32>
      %49 = arith.cmpi slt, %47, %48 : vector<128x1xi32>
      %cst_22 = arith.constant 0.000000e+00 : f32
      %50 = vector.broadcast %cst_22 : f32 to vector<128x1xf32>
      %51 = arith.select %49, %46, %50 : vector<128x1xi1>, vector<128x1xf32>
      %52 = vector.shape_cast %51 : vector<128x1xf32> to vector<1x128x1xf32>
      %cst_23 = arith.constant dense<0.000000e+00> : vector<1xf32>
      %53 = vector.multi_reduction <add>, %52, %cst_23 [1, 2] : vector<1x128x1xf32> to vector<1xf32>
      %54 = vector.shape_cast %53 : vector<1xf32> to vector<1x1x1xf32>
      %55 = vector.extract %54[0, 0, 0] : f32 from vector<1x1x1xf32>
      %56 = arith.subf %40, %55 : f32
      %57 = arith.divf %55, %56 : f32
      %58 = math.log %57 : f32
      %cst_24 = arith.constant 0.000000e+00 : f32
      %59 = arith.subf %cst_24, %58 : f32
      %c0_25 = arith.constant 0 : index
      %c0_26 = arith.constant 0 : index
      %60 = memref.load %arg4[%c0_25, %c0_26] : memref<1x1xf32, #tpu.memory_space<smem>>
      memref.store %59, %arg4[%c0_25, %c0_26] : memref<1x1xf32, #tpu.memory_space<smem>>
    } else {
    }
    return
  }
  func.func @transform_0(%arg0: i32) -> (i32, i32) {
    %c0_i32 = arith.constant 0 : i32
    %c0_i32_0 = arith.constant 0 : i32
    return %arg0, %c0_i32 : i32, i32
  }
  func.func @transform_1(%arg0: i32) -> (i32, i32) {
    %c0_i32 = arith.constant 0 : i32
    %c0_i32_0 = arith.constant 0 : i32
    %c0_i32_1 = arith.constant 0 : i32
    return %c0_i32, %c0_i32_0 : i32, i32
  }
  func.func @transform_2(%arg0: i32) -> (i32, i32) {
    %c0_i32 = arith.constant 0 : i32
    %c0_i32_0 = arith.constant 0 : i32
    return %arg0, %c0_i32 : i32, i32
  }
  func.func @transform_3(%arg0: i32) -> (i32, i32) {
    %c0_i32 = arith.constant 0 : i32
    %c0_i32_0 = arith.constant 0 : i32
    %c0_i32_1 = arith.constant 0 : i32
    return %c0_i32, %c0_i32_0 : i32, i32
  }
}

</mosaic_0001>

<llo_original>
// kernel: tile.9
$region0: #{tile.9}
  %s0 = inlined_call_operand.vmem [shape: f32[2,50,32], index: 0, kind: input, shape index: {}]
  %s1 = inlined_call_operand.vmem [shape: f32[100,32], index: 1, kind: output, shape index: {}]
  $region1: #{tile.9} parent=0
    #allocation0 [shape = 'u8[131072]{0}', space=vmem, size = 0x20000, scoped, tag = 'scoped mem for input reshape']
    %s3 = sshllo.u32 0, 2
    %s4 = smul.addr 2, 31
    %s5 = scalar_lea.vmem %s0, %s4
    %v6 = vld [vmem:[%s5] sm:%s3]
    %s7 = scalar_lea.vmem [#allocation0], 248
    %8 = vst [vmem:[%s7] sm:%s3] %v6
    %s9 = smul.addr 2, 30
    %s10 = scalar_lea.vmem %s0, %s9
    %v11 = vld [vmem:[%s10] sm:%s3]
    %s12 = scalar_lea.vmem [#allocation0], 240
    %13 = vst [vmem:[%s12] sm:%s3] %v11
    %s14 = smul.addr 2, 29
    %s15 = scalar_lea.vmem %s0, %s14
    %v16 = vld [vmem:[%s15] sm:%s3]
    %s17 = scalar_lea.vmem [#allocation0], 232
    %18 = vst [vmem:[%s17] sm:%s3] %v16
    %s19 = smul.addr 2, 28
    %s20 = scalar_lea.vmem %s0, %s19
    %v21 = vld [vmem:[%s20] sm:%s3]
    %s22 = scalar_lea.vmem [#allocation0], 224
    %23 = vst [vmem:[%s22] sm:%s3] %v21
    %s24 = smul.addr 2, 27
    %s25 = scalar_lea.vmem %s0, %s24
    %v26 = vld [vmem:[%s25] sm:%s3]
    %s27 = scalar_lea.vmem [#allocation0], 216
    %28 = vst [vmem:[%s27] sm:%s3] %v26
    %s29 = smul.addr 2, 26
    %s30 = scalar_lea.vmem %s0, %s29
    %v31 = vld [vmem:[%s30] sm:%s3]
    %s32 = scalar_lea.vmem [#allocation0], 208
    %33 = vst [vmem:[%s32] sm:%s3] %v31
    %s34 = smul.addr 2, 25
    %s35 = scalar_lea.vmem %s0, %s34
    %v36 = vld [vmem:[%s35] sm:%s3]
    %s37 = scalar_lea.vmem [#allocation0], 200
    %38 = vst [vmem:[%s37] sm:%s3] %v36
    %s39 = smul.addr 2, 24
    %s40 = scalar_lea.vmem %s0, %s39
    %v41 = vld [vmem:[%s40] sm:%s3]
    %s42 = scalar_lea.vmem [#allocation0], 192
    %43 = vst [vmem:[%s42] sm:%s3] %v41
    %s44 = smul.addr 2, 23
    %s45 = scalar_lea.vmem %s0, %s44
    %v46 = vld [vmem:[%s45] sm:%s3]
    %s47 = scalar_lea.vmem [#allocation0], 184
    %48 = vst [vmem:[%s47] sm:%s3] %v46
    %s49 = smul.addr 2, 22
    %s50 = scalar_lea.vmem %s0, %s49
    %v51 = vld [vmem:[%s50] sm:%s3]
    %s52 = scalar_lea.vmem [#allocation0], 176
    %53 = vst [vmem:[%s52] sm:%s3] %v51
    %s54 = smul.addr 2, 21
    %s55 = scalar_lea.vmem %s0, %s54
    %v56 = vld [vmem:[%s55] sm:%s3]
    %s57 = scalar_lea.vmem [#allocation0], 168
    %58 = vst [vmem:[%s57] sm:%s3] %v56
    %s59 = smul.addr 2, 20
    %s60 = scalar_lea.vmem %s0, %s59
    %v61 = vld [vmem:[%s60] sm:%s3]
    %s62 = scalar_lea.vmem [#allocation0], 160
    %63 = vst [vmem:[%s62] sm:%s3] %v61
    %s64 = smul.addr 2, 19
    %s65 = scalar_lea.vmem %s0, %s64
    %v66 = vld [vmem:[%s65] sm:%s3]
    %s67 = scalar_lea.vmem [#allocation0], 152
    %68 = vst [vmem:[%s67] sm:%s3] %v66
    %s69 = smul.addr 2, 18
    %s70 = scalar_lea.vmem %s0, %s69
    %v71 = vld [vmem:[%s70] sm:%s3]
    %s72 = scalar_lea.vmem [#allocation0], 144
    %73 = vst [vmem:[%s72] sm:%s3] %v71
    %s74 = smul.addr 2, 17
    %s75 = scalar_lea.vmem %s0, %s74
    %v76 = vld [vmem:[%s75] sm:%s3]
    %s77 = scalar_lea.vmem [#allocation0], 136
    %78 = vst [vmem:[%s77] sm:%s3] %v76
    %s79 = smul.addr 2, 16
    %s80 = scalar_lea.vmem %s0, %s79
    %v81 = vld [vmem:[%s80] sm:%s3]
    %s82 = scalar_lea.vmem [#allocation0], 128
    %83 = vst [vmem:[%s82] sm:%s3] %v81
    %s84 = smul.addr 2, 15
    %s85 = scalar_lea.vmem %s0, %s84
    %v86 = vld [vmem:[%s85] sm:%s3]
    %s87 = scalar_lea.vmem [#allocation0], 120
    %88 = vst [vmem:[%s87] sm:%s3] %v86
    %s89 = smul.addr 2, 14
    %s90 = scalar_lea.vmem %s0, %s89
    %v91 = vld [vmem:[%s90] sm:%s3]
    %s92 = scalar_lea.vmem [#allocation0], 112
    %93 = vst [vmem:[%s92] sm:%s3] %v91
    %s94 = smul.addr 2, 13
    %s95 = scalar_lea.vmem %s0, %s94
    %v96 = vld [vmem:[%s95] sm:%s3]
    %s97 = scalar_lea.vmem [#allocation0], 104
    %98 = vst [vmem:[%s97] sm:%s3] %v96
    %s99 = smul.addr 2, 12
    %s100 = scalar_lea.vmem %s0, %s99
    %v101 = vld [vmem:[%s100] sm:%s3]
    %s102 = scalar_lea.vmem [#allocation0], 96
    %103 = vst [vmem:[%s102] sm:%s3] %v101
    %s104 = smul.addr 2, 11
    %s105 = scalar_lea.vmem %s0, %s104
    %v106 = vld [vmem:[%s105] sm:%s3]
    %s107 = scalar_lea.vmem [#allocation0], 88
    %108 = vst [vmem:[%s107] sm:%s3] %v106
    %s109 = smul.addr 2, 10
    %s110 = scalar_lea.vmem %s0, %s109
    %v111 = vld [vmem:[%s110] sm:%s3]
    %s112 = scalar_lea.vmem [#allocation0], 80
    %113 = vst [vmem:[%s112] sm:%s3] %v111
    %s114 = smul.addr 2, 9
    %s115 = scalar_lea.vmem %s0, %s114
    %v116 = vld [vmem:[%s115] sm:%s3]
    %s117 = scalar_lea.vmem [#allocation0], 72
    %118 = vst [vmem:[%s117] sm:%s3] %v116
    %s119 = smul.addr 2, 8
    %s120 = scalar_lea.vmem %s0, %s119
    %v121 = vld [vmem:[%s120] sm:%s3]
    %s122 = scalar_lea.vmem [#allocation0], 64
    %123 = vst [vmem:[%s122] sm:%s3] %v121
    %s124 = smul.addr 2, 7
    %s125 = scalar_lea.vmem %s0, %s124
    %v126 = vld [vmem:[%s125] sm:%s3]
    %s127 = scalar_lea.vmem [#allocation0], 56
    %128 = vst [vmem:[%s127] sm:%s3] %v126
    %s129 = smul.addr 2, 6
    %s130 = scalar_lea.vmem %s0, %s129
    %v131 = vld [vmem:[%s130] sm:%s3]
    %s132 = scalar_lea.vmem [#allocation0], 48
    %133 = vst [vmem:[%s132] sm:%s3] %v131
    %s134 = smul.addr 2, 5
    %s135 = scalar_lea.vmem %s0, %s134
    %v136 = vld [vmem:[%s135] sm:%s3]
    %s137 = scalar_lea.vmem [#allocation0], 40
    %138 = vst [vmem:[%s137] sm:%s3] %v136
    %s139 = smul.addr 2, 4
    %s140 = scalar_lea.vmem %s0, %s139
    %v141 = vld [vmem:[%s140] sm:%s3]
    %s142 = scalar_lea.vmem [#allocation0], 32
    %143 = vst [vmem:[%s142] sm:%s3] %v141
    %s144 = smul.addr 2, 3
    %s145 = scalar_lea.vmem %s0, %s144
    %v146 = vld [vmem:[%s145] sm:%s3]
    %s147 = scalar_lea.vmem [#allocation0], 24
    %148 = vst [vmem:[%s147] sm:%s3] %v146
    %s149 = smul.addr 2, 2
    %s150 = scalar_lea.vmem %s0, %s149
    %v151 = vld [vmem:[%s150] sm:%s3]
    %s152 = scalar_lea.vmem [#allocation0], 16
    %153 = vst [vmem:[%s152] sm:%s3] %v151
    %s154 = scalar_lea.vmem %s0, 2
    %v155 = vld [vmem:[%s154] sm:%s3]
    %s156 = scalar_lea.vmem [#allocation0], 8
    %157 = vst [vmem:[%s156] sm:%s3] %v155
    %v158 = vld [vmem:[%s0] sm:%s3]
    %159 = vst [vmem:[#allocation0] sm:%s3] %v158
    %v160 = vld [vmem:[#allocation0] ss:$8 sm:$0xf]
    %v161 = vld [vmem:[#allocation0] ss:$8 sm:$0xf0]
    %vm162 = vcmask 1047556
    %v163 = vsel %vm162, %v161, %v160
    %vm164 = vcmask 408576
    %165 = vst.msk [vmem:[%s1] sm:$0xff] %vm164, %v163
    %s166 = scalar_lea.vmem [#allocation0], 64
    %v167 = vld [vmem:[%s166] ss:$8 sm:$0xf]
    %s168 = scalar_lea.vmem [#allocation0], 64
    %v169 = vld [vmem:[%s168] ss:$8 sm:$0xf0]
    %vm170 = vcmask 1047556
    %v171 = vsel %vm170, %v169, %v167
    %vm172 = vcmask 408576
    %s173 = scalar_lea.vmem %s1, 8
    %174 = vst.msk [vmem:[%s173] sm:$0xff] %vm172, %v171
    %s175 = scalar_lea.vmem [#allocation0], 128
    %v176 = vld [vmem:[%s175] ss:$8 sm:$0xf]
    %s177 = scalar_lea.vmem [#allocation0], 128
    %v178 = vld [vmem:[%s177] ss:$8 sm:$0xf0]
    %vm179 = vcmask 1047556
    %v180 = vsel %vm179, %v178, %v176
    %vm181 = vcmask 408576
    %s182 = scalar_lea.vmem %s1, 16
    %183 = vst.msk [vmem:[%s182] sm:$0xff] %vm181, %v180
    %s184 = scalar_lea.vmem [#allocation0], 192
    %v185 = vld [vmem:[%s184] ss:$8 sm:$0xf]
    %s186 = scalar_lea.vmem [#allocation0], 192
    %v187 = vld [vmem:[%s186] ss:$8 sm:$0xf0]
    %vm188 = vcmask 1047556
    %v189 = vsel %vm188, %v187, %v185
    %vm190 = vcmask 408576
    %s191 = scalar_lea.vmem %s1, 24
    %192 = vst.msk [vmem:[%s191] sm:$0xff] %vm190, %v189
    %s193 = scalar_lea.vmem [#allocation0], 1
    %v194 = vld [vmem:[%s193] ss:$8 sm:$0xf]
    %s195 = scalar_lea.vmem [#allocation0], 1
    %v196 = vld [vmem:[%s195] ss:$8 sm:$0xf0]
    %vm197 = vcmask 1047556
    %v198 = vsel %vm197, %v196, %v194
    %199 = vrot.lane.b32.xlu0 %v198, 50
    %v200 = vpop.permute.xlu0 %199
    %vm201 = vcmask 818576
    %202 = vst.msk [vmem:[%s1] sm:$0xff] %vm201, %v200
    %s203 = scalar_lea.vmem [#allocation0], 65
    %v204 = vld [vmem:[%s203] ss:$8 sm:$0xf]
    %s205 = scalar_lea.vmem [#allocation0], 65
    %v206 = vld [vmem:[%s205] ss:$8 sm:$0xf0]
    %vm207 = vcmask 1047556
    %v208 = vsel %vm207, %v206, %v204
    %209 = vrot.lane.b32.xlu0 %v208, 50
    %v210 = vpop.permute.xlu0 %209
    %vm211 = vcmask 818576
    %s212 = scalar_lea.vmem %s1, 8
    %213 = vst.msk [vmem:[%s212] sm:$0xff] %vm211, %v210
    %s214 = scalar_lea.vmem [#allocation0], 129
    %v215 = vld [vmem:[%s214] ss:$8 sm:$0xf]
    %s216 = scalar_lea.vmem [#allocation0], 129
    %v217 = vld [vmem:[%s216] ss:$8 sm:$0xf0]
    %vm218 = vcmask 1047556
    %v219 = vsel %vm218, %v217, %v215
    %220 = vrot.lane.b32.xlu0 %v219, 50
    %v221 = vpop.permute.xlu0 %220
    %vm222 = vcmask 818576
    %s223 = scalar_lea.vmem %s1, 16
    %224 = vst.msk [vmem:[%s223] sm:$0xff] %vm222, %v221
    %s225 = scalar_lea.vmem [#allocation0], 193
    %v226 = vld [vmem:[%s225] ss:$8 sm:$0xf]
    %s227 = scalar_lea.vmem [#allocation0], 193
    %v228 = vld [vmem:[%s227] ss:$8 sm:$0xf0]
    %vm229 = vcmask 1047556
    %v230 = vsel %vm229, %v228, %v226
    %231 = vrot.lane.b32.xlu0 %v230, 50
    %v232 = vpop.permute.xlu0 %231
    %vm233 = vcmask 818576
    %s234 = scalar_lea.vmem %s1, 24
    %235 = vst.msk [vmem:[%s234] sm:$0xff] %vm233, %v232

// kernel: _lambda_.1
$region0: #{_lambda_.1}
  #allocation0 [shape = 'u32[]', space=smem, size = 0x4, offset = 0x4, fixed_abs, tag = 'smem constant byte address 0x4 - core index']
  #allocation1 [shape = 'u32[144,128]{1,0:T(1,128)}', space=vmem, size = 0x12000, scoped, tag = 'internal scratch']
  #allocation2 [shape = 'f32[2,128,32]{2,1,0:T(8,128)}', space=vmem, size = 0x20000, scoped, tag = 'scratch operand']
  %s0 = inlined_call_operand.vmem [shape: bf16[256,4096], index: 0, kind: input, shape index: {}]
  %s1 = inlined_call_operand.vmem [shape: bf16[4096,32], index: 1, kind: input, shape index: {}]
  %s2 = inlined_call_operand.vmem [shape: f32[256,32], index: 2, kind: input, shape index: {}]
  %s3 = inlined_call_operand.hbm [shape: f32[1,1], index: 3, kind: output, shape index: {}]
  %s4 = sld [smem:[#allocation0]]
  $region49: #{_lambda_.1} parent=0
    _
  %s6 = ssub.s32 1, %s4
  %s7 = scalar_select 0, %s6, %s4
  $region1: #{_lambda_.1} parent=0
    #allocation3 [shape = 'u8[512]{0}', space=smem, size = 0x200, scoped, tag = 'output window, operand 0, single buffered']
    #allocation4 [shape = 's32[2]{0}', space=sflag, size = 0x8, scoped, tag = 'scoped memory for _lambda_.1']
    %8 = vsyncpa [#allocation4], 0
    loop: start=0, step=1, limit=4
    $region2: #{_lambda_.1} parent=1 // loop_pre_header
      _
    $region3: #{_lambda_.1} parent=1 // loop_header
      %s10 = sphi 0, %s14
      %p11 = scmp.ge.s32.totalorder %s10, 4
      %s20 = sphi 0, %s22
      %s23 = sphi 0, %s20
      %s24 = sphi 0, %s23
      %s40 = sphi 0, %s24
      %s44 = sphi 0, %s44
      %s46 = sphi 0, %s44
      %s47 = sphi 0, %s46
      %s61 = sphi 0, %s47
      %s67 = sphi 0, %s69
      %s70 = sphi 0, %s67
      %s71 = sphi 0, %s70
      %s87 = sphi 0, %s71
      %s91 = sphi 0, %s91
      %s93 = sphi 0, %s91
      %s94 = sphi 0, %s93
      %s108 = sphi 0, %s94
    $region4: #{_lambda_.1} parent=1 // loop_header_branch
      %13 = sbr.rel (%p11) target = $region8
    $region5: #{_lambda_.1} parent=1 // loop_body
      %s15 = ssub.s32 %s10, 1
      %s16 = ssub.s32 %s10, 2
      %s17 = sadd.s32 %s10, 1
      %s18 = ssub.s32 %s10, %s17
      %p19 = scmp.eq.s32.totalorder %s18, 0
      %s21 = sadd.s32 %s20, 1
      %s22 = scalar_select %p19, %s20, %s21
      %p25 = pneg %p19
      %p26 = scmp.eq.s32.totalorder %s10, 1
      %p27 = por %p25, %p26
      %p28 = scmp.ne.s32.totalorder %s20, %s23
      %p29 = scmp.eq.s32.totalorder %s10, 0
      %p30 = por %p28, %p29
      %p31 = scmp.ne.s32.totalorder %s20, %s23
      %p32 = scmp.eq.s32.totalorder %s15, 1
      %p33 = por %p31, %p32
      %p34 = scmp.ne.s32.totalorder %s23, %s24
      %p35 = scmp.eq.s32.totalorder %s15, 0
      %p36 = por %p34, %p35
      %p37 = scmp.ne.s32.totalorder %s23, %s24
      %p38 = scmp.eq.s32.totalorder %s16, 1
      %p39 = por %p37, %p38
      %p41 = scmp.ne.s32.totalorder %s24, %s40
      %p42 = scmp.eq.s32.totalorder %s16, 0
      %p43 = por %p41, %p42
      %s45 = sadd.s32 %s44, 1
      %p48 = scmp.eq.s32.totalorder %s10, 1
      %p49 = scmp.ne.s32.totalorder %s44, %s46
      %p50 = scmp.eq.s32.totalorder %s10, 0
      %p51 = por %p49, %p50
      %p52 = scmp.ne.s32.totalorder %s44, %s46
      %p53 = scmp.eq.s32.totalorder %s15, 1
      %p54 = por %p52, %p53
      %p55 = scmp.ne.s32.totalorder %s46, %s47
      %p56 = scmp.eq.s32.totalorder %s15, 0
      %p57 = por %p55, %p56
      %p58 = scmp.ne.s32.totalorder %s46, %s47
      %p59 = scmp.eq.s32.totalorder %s16, 1
      %p60 = por %p58, %p59
      %p62 = scmp.ne.s32.totalorder %s47, %s61
      %p63 = scmp.eq.s32.totalorder %s16, 0
      %p64 = por %p62, %p63
      %s65 = ssub.s32 %s10, %s17
      %p66 = scmp.eq.s32.totalorder %s65, 0
      %s68 = sadd.s32 %s67, 1
      %s69 = scalar_select %p66, %s67, %s68
      %p72 = pneg %p66
      %p73 = scmp.eq.s32.totalorder %s10, 1
      %p74 = por %p72, %p73
      %p75 = scmp.ne.s32.totalorder %s67, %s70
      %p76 = scmp.eq.s32.totalorder %s10, 0
      %p77 = por %p75, %p76
      %p78 = scmp.ne.s32.totalorder %s67, %s70
      %p79 = scmp.eq.s32.totalorder %s15, 1
      %p80 = por %p78, %p79
      %p81 = scmp.ne.s32.totalorder %s70, %s71
      %p82 = scmp.eq.s32.totalorder %s15, 0
      %p83 = por %p81, %p82
      %p84 = scmp.ne.s32.totalorder %s70, %s71
      %p85 = scmp.eq.s32.totalorder %s16, 1
      %p86 = por %p84, %p85
      %p88 = scmp.ne.s32.totalorder %s71, %s87
      %p89 = scmp.eq.s32.totalorder %s16, 0
      %p90 = por %p88, %p89
      %s92 = sadd.s32 %s91, 1
      %p95 = scmp.eq.s32.totalorder %s10, 1
      %p96 = scmp.ne.s32.totalorder %s91, %s93
      %p97 = scmp.eq.s32.totalorder %s10, 0
      %p98 = por %p96, %p97
      %p99 = scmp.ne.s32.totalorder %s91, %s93
      %p100 = scmp.eq.s32.totalorder %s15, 1
      %p101 = por %p99, %p100
      %p102 = scmp.ne.s32.totalorder %s93, %s94
      %p103 = scmp.eq.s32.totalorder %s15, 0
      %p104 = por %p102, %p103
      %p105 = scmp.ne.s32.totalorder %s93, %s94
      %p106 = scmp.eq.s32.totalorder %s16, 1
      %p107 = por %p105, %p106
      %p109 = scmp.ne.s32.totalorder %s94, %s108
      %p110 = scmp.eq.s32.totalorder %s16, 0
      %p111 = por %p109, %p110
      %p112 = scmp.le.s32.totalorder 1, %s10
      %p113 = scmp.lt.s32.totalorder %s10, 3
      %p114 = pnand %p112, %p113
      %p115 = pneg %p114
      // Predicated region
      $region9: #{_lambda_.1} parent=5 // pred_check
        _
      $region10: #{_lambda_.1} parent=5 // pred_check_branch
        %117 = sbr.rel (%p114) target = $region12
      $region11: #{_lambda_.1} parent=5 // pred_region
        %s118 = ssub.s32 %s10, 1
        // Predicated region
        $region13: #{_lambda_.1} parent=11 // pred_check
          %p119 = pneg %p57
        $region14: #{_lambda_.1} parent=11 // pred_check_branch
          %121 = sbr.rel (%p119) target = $region16
        $region15: #{_lambda_.1} parent=11 // pred_region
          _
        $region16: #{_lambda_.1} parent=11 // pred_fallthru
          _
      $region12: #{_lambda_.1} parent=5 // pred_fallthru
        _
      %p122 = scmp.lt.s32.totalorder %s10, 2
      // Predicated region
      $region17: #{_lambda_.1} parent=5 // pred_check
        %p123 = pneg %p122
      $region18: #{_lambda_.1} parent=5 // pred_check_branch
        %125 = sbr.rel (%p123) target = $region20
      $region19: #{_lambda_.1} parent=5 // pred_region
        // Predicated region
        $region21: #{_lambda_.1} parent=19 // pred_check
          %p126 = pneg %p30
        $region22: #{_lambda_.1} parent=19 // pred_check_branch
          %128 = sbr.rel (%p126) target = $region24
        $region23: #{_lambda_.1} parent=19 // pred_region
          %s129 = smul.u32 16, %s10
          %p130 = scmp.lt.s32.totalorder %s129, 31
          %s131 = scalar_select %p130, %s129, 31
          %s132 = smul.addr %s131, 32
          %s133 = smul.addr %s132, 4
          %s134 = scalar_lea.vmem %s0, %s133
          %s135 = smul.u32 16, %s10
        $region24: #{_lambda_.1} parent=19 // pred_fallthru
          _
        // Predicated region
        $region25: #{_lambda_.1} parent=19 // pred_check
          %p136 = pneg %p77
        $region26: #{_lambda_.1} parent=19 // pred_check_branch
          %138 = sbr.rel (%p136) target = $region28
        $region27: #{_lambda_.1} parent=19 // pred_region
          %s139 = smul.u32 16, %s10
          %p140 = scmp.lt.s32.totalorder %s139, 31
          %s141 = scalar_select %p140, %s139, 31
          %s142 = smul.addr %s141, 8
          %s143 = scalar_lea.vmem %s2, %s142
          %s144 = smul.u32 16, %s10
        $region28: #{_lambda_.1} parent=19 // pred_fallthru
          _
      $region20: #{_lambda_.1} parent=5 // pred_fallthru
        _
      %p145 = scmp.le.s32.totalorder 1, %s10
      %p146 = scmp.lt.s32.totalorder %s10, 3
      %p147 = pnand %p145, %p146
      %p148 = pneg %p147
      // Predicated region
      $region29: #{_lambda_.1} parent=5 // pred_check
        _
      $region30: #{_lambda_.1} parent=5 // pred_check_branch
        %150 = sbr.rel (%p147) target = $region32
      $region31: #{_lambda_.1} parent=5 // pred_region
        %s151 = ssub.s32 %s10, 1
        %s152 = smul.u32 16, %s15
        %p153 = scmp.lt.s32.totalorder %s152, 31
        %s154 = scalar_select %p153, %s152, 31
        %s155 = smul.addr %s154, 32
        %s156 = smul.addr %s155, 4
        %s157 = scalar_lea.vmem %s0, %s156
        %p158 = pneg %p36
        %p159 = pneg %p33
        %p160 = pneg %p57
        %p161 = pneg %p54
        %s162 = smul.u32 16, %s15
        %p163 = scmp.lt.s32.totalorder %s162, 31
        %s164 = scalar_select %p163, %s162, 31
        %s165 = smul.addr %s164, 8
        %s166 = scalar_lea.vmem %s2, %s165
        %p167 = pneg %p83
        %p168 = pneg %p80
        %p169 = pneg %p104
        %p170 = pneg %p101
        %s171 = smul.u32 16, %s15
        %p172 = scmp.lt.s32.totalorder %s171, 31
        %s173 = scalar_select %p172, %s171, 31
        %s174 = smul.addr %s173, 32
        %s175 = smul.addr %s174, 4
        %s176 = scalar_lea.vmem %s0, %s175
        %s177 = smul.u32 16, %s15
        %s178 = smul.u32 16, %s15
        %p179 = scmp.lt.s32.totalorder %s178, 31
        %s180 = scalar_select %p179, %s178, 31
        %s181 = smul.addr %s180, 8
        %s182 = scalar_lea.vmem %s2, %s181
        %s183 = smul.u32 16, %s15
        %v185 = vld [vmem:[%s176] sm:$0xff]
        %v186 = vld [vmem:[%s176 + $0x8] sm:$0xff]
        %v187 = vld [vmem:[%s176 + $0x10] sm:$0xff]
        %v188 = vld [vmem:[%s176 + $0x18] sm:$0xff]
        %v189 = vld [vmem:[%s176 + $0x20] sm:$0xff]
        %v190 = vld [vmem:[%s176 + $0x28] sm:$0xff]
        %v191 = vld [vmem:[%s176 + $0x30] sm:$0xff]
        %v192 = vld [vmem:[%s176 + $0x38] sm:$0xff]
        %v193 = vld [vmem:[%s176 + $0x40] sm:$0xff]
        %v194 = vld [vmem:[%s176 + $0x48] sm:$0xff]
        %v195 = vld [vmem:[%s176 + $0x50] sm:$0xff]
        %v196 = vld [vmem:[%s176 + $0x58] sm:$0xff]
        %v197 = vld [vmem:[%s176 + $0x60] sm:$0xff]
        %v198 = vld [vmem:[%s176 + $0x68] sm:$0xff]
        %v199 = vld [vmem:[%s176 + $0x70] sm:$0xff]
        %v200 = vld [vmem:[%s176 + $0x78] sm:$0xff]
        %v201 = vld [vmem:[%s176 + $0x80] sm:$0xff]
        %v202 = vld [vmem:[%s176 + $0x88] sm:$0xff]
        %v203 = vld [vmem:[%s176 + $0x90] sm:$0xff]
        %v204 = vld [vmem:[%s176 + $0x98] sm:$0xff]
        %v205 = vld [vmem:[%s176 + $0xa0] sm:$0xff]
        %v206 = vld [vmem:[%s176 + $0xa8] sm:$0xff]
        %v207 = vld [vmem:[%s176 + $0xb0] sm:$0xff]
        %v208 = vld [vmem:[%s176 + $0xb8] sm:$0xff]
        %v209 = vld [vmem:[%s176 + $0xc0] sm:$0xff]
        %v210 = vld [vmem:[%s176 + $0xc8] sm:$0xff]
        %v211 = vld [vmem:[%s176 + $0xd0] sm:$0xff]
        %v212 = vld [vmem:[%s176 + $0xd8] sm:$0xff]
        %v213 = vld [vmem:[%s176 + $0xe0] sm:$0xff]
        %v214 = vld [vmem:[%s176 + $0xe8] sm:$0xff]
        %v215 = vld [vmem:[%s176 + $0xf0] sm:$0xff]
        %v216 = vld [vmem:[%s176 + $0xf8] sm:$0xff]
        %v217 = vld [vmem:[%s176 + $0x100] sm:$0xff]
        %v218 = vld [vmem:[%s176 + $0x108] sm:$0xff]
        %v219 = vld [vmem:[%s176 + $0x110] sm:$0xff]
        %v220 = vld [vmem:[%s176 + $0x118] sm:$0xff]
        %v221 = vld [vmem:[%s176 + $0x120] sm:$0xff]
        %v222 = vld [vmem:[%s176 + $0x128] sm:$0xff]
        %v223 = vld [vmem:[%s176 + $0x130] sm:$0xff]
        %v224 = vld [vmem:[%s176 + $0x138] sm:$0xff]
        %v225 = vld [vmem:[%s176 + $0x140] sm:$0xff]
        %v226 = vld [vmem:[%s176 + $0x148] sm:$0xff]
        %v227 = vld [vmem:[%s176 + $0x150] sm:$0xff]
        %v228 = vld [vmem:[%s176 + $0x158] sm:$0xff]
        %v229 = vld [vmem:[%s176 + $0x160] sm:$0xff]
        %v230 = vld [vmem:[%s176 + $0x168] sm:$0xff]
        %v231 = vld [vmem:[%s176 + $0x170] sm:$0xff]
        %v232 = vld [vmem:[%s176 + $0x178] sm:$0xff]
        %v233 = vld [vmem:[%s176 + $0x180] sm:$0xff]
        %v234 = vld [vmem:[%s176 + $0x188] sm:$0xff]
        %v235 = vld [vmem:[%s176 + $0x190] sm:$0xff]
        %v236 = vld [vmem:[%s176 + $0x198] sm:$0xff]
        %v237 = vld [vmem:[%s176 + $0x1a0] sm:$0xff]
        %v238 = vld [vmem:[%s176 + $0x1a8] sm:$0xff]
        %v239 = vld [vmem:[%s176 + $0x1b0] sm:$0xff]
        %v240 = vld [vmem:[%s176 + $0x1b8] sm:$0xff]
        %v241 = vld [vmem:[%s176 + $0x1c0] sm:$0xff]
        %v242 = vld [vmem:[%s176 + $0x1c8] sm:$0xff]
        %v243 = vld [vmem:[%s176 + $0x1d0] sm:$0xff]
        %v244 = vld [vmem:[%s176 + $0x1d8] sm:$0xff]
        %v245 = vld [vmem:[%s176 + $0x1e0] sm:$0xff]
        %v246 = vld [vmem:[%s176 + $0x1e8] sm:$0xff]
        %v247 = vld [vmem:[%s176 + $0x1f0] sm:$0xff]
        %v248 = vld [vmem:[%s176 + $0x1f8] sm:$0xff]
        %v249 = vld [vmem:[%s176 + $0x200] sm:$0xff]
        %v250 = vld [vmem:[%s176 + $0x208] sm:$0xff]
        %v251 = vld [vmem:[%s176 + $0x210] sm:$0xff]
        %v252 = vld [vmem:[%s176 + $0x218] sm:$0xff]
        %v253 = vld [vmem:[%s176 + $0x220] sm:$0xff]
        %v254 = vld [vmem:[%s176 + $0x228] sm:$0xff]
        %v255 = vld [vmem:[%s176 + $0x230] sm:$0xff]
        %v256 = vld [vmem:[%s176 + $0x238] sm:$0xff]
        %v257 = vld [vmem:[%s176 + $0x240] sm:$0xff]
        %v258 = vld [vmem:[%s176 + $0x248] sm:$0xff]
        %v259 = vld [vmem:[%s176 + $0x250] sm:$0xff]
        %v260 = vld [vmem:[%s176 + $0x258] sm:$0xff]
        %v261 = vld [vmem:[%s176 + $0x260] sm:$0xff]
        %v262 = vld [vmem:[%s176 + $0x268] sm:$0xff]
        %v263 = vld [vmem:[%s176 + $0x270] sm:$0xff]
        %v264 = vld [vmem:[%s176 + $0x278] sm:$0xff]
        %v265 = vld [vmem:[%s176 + $0x280] sm:$0xff]
        %v266 = vld [vmem:[%s176 + $0x288] sm:$0xff]
        %v267 = vld [vmem:[%s176 + $0x290] sm:$0xff]
        %v268 = vld [vmem:[%s176 + $0x298] sm:$0xff]
        %v269 = vld [vmem:[%s176 + $0x2a0] sm:$0xff]
        %v270 = vld [vmem:[%s176 + $0x2a8] sm:$0xff]
        %v271 = vld [vmem:[%s176 + $0x2b0] sm:$0xff]
        %v272 = vld [vmem:[%s176 + $0x2b8] sm:$0xff]
        %v273 = vld [vmem:[%s176 + $0x2c0] sm:$0xff]
        %v274 = vld [vmem:[%s176 + $0x2c8] sm:$0xff]
        %v275 = vld [vmem:[%s176 + $0x2d0] sm:$0xff]
        %v276 = vld [vmem:[%s176 + $0x2d8] sm:$0xff]
        %v277 = vld [vmem:[%s176 + $0x2e0] sm:$0xff]
        %v278 = vld [vmem:[%s176 + $0x2e8] sm:$0xff]
        %v279 = vld [vmem:[%s176 + $0x2f0] sm:$0xff]
        %v280 = vld [vmem:[%s176 + $0x2f8] sm:$0xff]
        %v281 = vld [vmem:[%s176 + $0x300] sm:$0xff]
        %v282 = vld [vmem:[%s176 + $0x308] sm:$0xff]
        %v283 = vld [vmem:[%s176 + $0x310] sm:$0xff]
        %v284 = vld [vmem:[%s176 + $0x318] sm:$0xff]
        %v285 = vld [vmem:[%s176 + $0x320] sm:$0xff]
        %v286 = vld [vmem:[%s176 + $0x328] sm:$0xff]
        %v287 = vld [vmem:[%s176 + $0x330] sm:$0xff]
        %v288 = vld [vmem:[%s176 + $0x338] sm:$0xff]
        %v289 = vld [vmem:[%s176 + $0x340] sm:$0xff]
        %v290 = vld [vmem:[%s176 + $0x348] sm:$0xff]
        %v291 = vld [vmem:[%s176 + $0x350] sm:$0xff]
        %v292 = vld [vmem:[%s176 + $0x358] sm:$0xff]
        %v293 = vld [vmem:[%s176 + $0x360] sm:$0xff]
        %v294 = vld [vmem:[%s176 + $0x368] sm:$0xff]
        %v295 = vld [vmem:[%s176 + $0x370] sm:$0xff]
        %v296 = vld [vmem:[%s176 + $0x378] sm:$0xff]
        %v297 = vld [vmem:[%s176 + $0x380] sm:$0xff]
        %v298 = vld [vmem:[%s176 + $0x388] sm:$0xff]
        %v299 = vld [vmem:[%s176 + $0x390] sm:$0xff]
        %v300 = vld [vmem:[%s176 + $0x398] sm:$0xff]
        %v301 = vld [vmem:[%s176 + $0x3a0] sm:$0xff]
        %v302 = vld [vmem:[%s176 + $0x3a8] sm:$0xff]
        %v303 = vld [vmem:[%s176 + $0x3b0] sm:$0xff]
        %v304 = vld [vmem:[%s176 + $0x3b8] sm:$0xff]
        %v305 = vld [vmem:[%s176 + $0x3c0] sm:$0xff]
        %v306 = vld [vmem:[%s176 + $0x3c8] sm:$0xff]
        %v307 = vld [vmem:[%s176 + $0x3d0] sm:$0xff]
        %v308 = vld [vmem:[%s176 + $0x3d8] sm:$0xff]
        %v309 = vld [vmem:[%s176 + $0x3e0] sm:$0xff]
        %v310 = vld [vmem:[%s176 + $0x3e8] sm:$0xff]
        %v311 = vld [vmem:[%s176 + $0x3f0] sm:$0xff]
        %v312 = vld [vmem:[%s176 + $0x3f8] sm:$0xff]
        %v313 = vld [vmem:[%s176 + $0x400] sm:$0xff]
        %v314 = vld [vmem:[%s176 + $0x408] sm:$0xff]
        %v315 = vld [vmem:[%s176 + $0x410] sm:$0xff]
        %v316 = vld [vmem:[%s176 + $0x418] sm:$0xff]
        %v317 = vld [vmem:[%s176 + $0x420] sm:$0xff]
        %v318 = vld [vmem:[%s176 + $0x428] sm:$0xff]
        %v319 = vld [vmem:[%s176 + $0x430] sm:$0xff]
        %v320 = vld [vmem:[%s176 + $0x438] sm:$0xff]
        %v321 = vld [vmem:[%s176 + $0x440] sm:$0xff]
        %v322 = vld [vmem:[%s176 + $0x448] sm:$0xff]
        %v323 = vld [vmem:[%s176 + $0x450] sm:$0xff]
        %v324 = vld [vmem:[%s176 + $0x458] sm:$0xff]
        %v325 = vld [vmem:[%s176 + $0x460] sm:$0xff]
        %v326 = vld [vmem:[%s176 + $0x468] sm:$0xff]
        %v327 = vld [vmem:[%s176 + $0x470] sm:$0xff]
        %v328 = vld [vmem:[%s176 + $0x478] sm:$0xff]
        %v329 = vld [vmem:[%s176 + $0x480] sm:$0xff]
        %v330 = vld [vmem:[%s176 + $0x488] sm:$0xff]
        %v331 = vld [vmem:[%s176 + $0x490] sm:$0xff]
        %v332 = vld [vmem:[%s176 + $0x498] sm:$0xff]
        %v333 = vld [vmem:[%s176 + $0x4a0] sm:$0xff]
        %v334 = vld [vmem:[%s176 + $0x4a8] sm:$0xff]
        %v335 = vld [vmem:[%s176 + $0x4b0] sm:$0xff]
        %v336 = vld [vmem:[%s176 + $0x4b8] sm:$0xff]
        %v337 = vld [vmem:[%s176 + $0x4c0] sm:$0xff]
        %v338 = vld [vmem:[%s176 + $0x4c8] sm:$0xff]
        %v339 = vld [vmem:[%s176 + $0x4d0] sm:$0xff]
        %v340 = vld [vmem:[%s176 + $0x4d8] sm:$0xff]
        %v341 = vld [vmem:[%s176 + $0x4e0] sm:$0xff]
        %v342 = vld [vmem:[%s176 + $0x4e8] sm:$0xff]
        %v343 = vld [vmem:[%s176 + $0x4f0] sm:$0xff]
        %v344 = vld [vmem:[%s176 + $0x4f8] sm:$0xff]
        %v345 = vld [vmem:[%s176 + $0x500] sm:$0xff]
        %v346 = vld [vmem:[%s176 + $0x508] sm:$0xff]
        %v347 = vld [vmem:[%s176 + $0x510] sm:$0xff]
        %v348 = vld [vmem:[%s176 + $0x518] sm:$0xff]
        %v349 = vld [vmem:[%s176 + $0x520] sm:$0xff]
        %v350 = vld [vmem:[%s176 + $0x528] sm:$0xff]
        %v351 = vld [vmem:[%s176 + $0x530] sm:$0xff]
        %v352 = vld [vmem:[%s176 + $0x538] sm:$0xff]
        %v353 = vld [vmem:[%s176 + $0x540] sm:$0xff]
        %v354 = vld [vmem:[%s176 + $0x548] sm:$0xff]
        %v355 = vld [vmem:[%s176 + $0x550] sm:$0xff]
        %v356 = vld [vmem:[%s176 + $0x558] sm:$0xff]
        %v357 = vld [vmem:[%s176 + $0x560] sm:$0xff]
        %v358 = vld [vmem:[%s176 + $0x568] sm:$0xff]
        %v359 = vld [vmem:[%s176 + $0x570] sm:$0xff]
        %v360 = vld [vmem:[%s176 + $0x578] sm:$0xff]
        %v361 = vld [vmem:[%s176 + $0x580] sm:$0xff]
        %v362 = vld [vmem:[%s176 + $0x588] sm:$0xff]
        %v363 = vld [vmem:[%s176 + $0x590] sm:$0xff]
        %v364 = vld [vmem:[%s176 + $0x598] sm:$0xff]
        %v365 = vld [vmem:[%s176 + $0x5a0] sm:$0xff]
        %v366 = vld [vmem:[%s176 + $0x5a8] sm:$0xff]
        %v367 = vld [vmem:[%s176 + $0x5b0] sm:$0xff]
        %v368 = vld [vmem:[%s176 + $0x5b8] sm:$0xff]
        %v369 = vld [vmem:[%s176 + $0x5c0] sm:$0xff]
        %v370 = vld [vmem:[%s176 + $0x5c8] sm:$0xff]
        %v371 = vld [vmem:[%s176 + $0x5d0] sm:$0xff]
        %v372 = vld [vmem:[%s176 + $0x5d8] sm:$0xff]
        %v373 = vld [vmem:[%s176 + $0x5e0] sm:$0xff]
        %v374 = vld [vmem:[%s176 + $0x5e8] sm:$0xff]
        %v375 = vld [vmem:[%s176 + $0x5f0] sm:$0xff]
        %v376 = vld [vmem:[%s176 + $0x5f8] sm:$0xff]
        %v377 = vld [vmem:[%s176 + $0x600] sm:$0xff]
        %v378 = vld [vmem:[%s176 + $0x608] sm:$0xff]
        %v379 = vld [vmem:[%s176 + $0x610] sm:$0xff]
        %v380 = vld [vmem:[%s176 + $0x618] sm:$0xff]
        %v381 = vld [vmem:[%s176 + $0x620] sm:$0xff]
        %v382 = vld [vmem:[%s176 + $0x628] sm:$0xff]
        %v383 = vld [vmem:[%s176 + $0x630] sm:$0xff]
        %v384 = vld [vmem:[%s176 + $0x638] sm:$0xff]
        %v385 = vld [vmem:[%s176 + $0x640] sm:$0xff]
        %v386 = vld [vmem:[%s176 + $0x648] sm:$0xff]
        %v387 = vld [vmem:[%s176 + $0x650] sm:$0xff]
        %v388 = vld [vmem:[%s176 + $0x658] sm:$0xff]
        %v389 = vld [vmem:[%s176 + $0x660] sm:$0xff]
        %v390 = vld [vmem:[%s176 + $0x668] sm:$0xff]
        %v391 = vld [vmem:[%s176 + $0x670] sm:$0xff]
        %v392 = vld [vmem:[%s176 + $0x678] sm:$0xff]
        %v393 = vld [vmem:[%s176 + $0x680] sm:$0xff]
        %v394 = vld [vmem:[%s176 + $0x688] sm:$0xff]
        %v395 = vld [vmem:[%s176 + $0x690] sm:$0xff]
        %v396 = vld [vmem:[%s176 + $0x698] sm:$0xff]
        %v397 = vld [vmem:[%s176 + $0x6a0] sm:$0xff]
        %v398 = vld [vmem:[%s176 + $0x6a8] sm:$0xff]
        %v399 = vld [vmem:[%s176 + $0x6b0] sm:$0xff]
        %v400 = vld [vmem:[%s176 + $0x6b8] sm:$0xff]
        %v401 = vld [vmem:[%s176 + $0x6c0] sm:$0xff]
        %v402 = vld [vmem:[%s176 + $0x6c8] sm:$0xff]
        %v403 = vld [vmem:[%s176 + $0x6d0] sm:$0xff]
        %v404 = vld [vmem:[%s176 + $0x6d8] sm:$0xff]
        %v405 = vld [vmem:[%s176 + $0x6e0] sm:$0xff]
        %v406 = vld [vmem:[%s176 + $0x6e8] sm:$0xff]
        %v407 = vld [vmem:[%s176 + $0x6f0] sm:$0xff]
        %v408 = vld [vmem:[%s176 + $0x6f8] sm:$0xff]
        %v409 = vld [vmem:[%s176 + $0x700] sm:$0xff]
        %v410 = vld [vmem:[%s176 + $0x708] sm:$0xff]
        %v411 = vld [vmem:[%s176 + $0x710] sm:$0xff]
        %v412 = vld [vmem:[%s176 + $0x718] sm:$0xff]
        %v413 = vld [vmem:[%s176 + $0x720] sm:$0xff]
        %v414 = vld [vmem:[%s176 + $0x728] sm:$0xff]
        %v415 = vld [vmem:[%s176 + $0x730] sm:$0xff]
        %v416 = vld [vmem:[%s176 + $0x738] sm:$0xff]
        %v417 = vld [vmem:[%s176 + $0x740] sm:$0xff]
        %v418 = vld [vmem:[%s176 + $0x748] sm:$0xff]
        %v419 = vld [vmem:[%s176 + $0x750] sm:$0xff]
        %v420 = vld [vmem:[%s176 + $0x758] sm:$0xff]
        %v421 = vld [vmem:[%s176 + $0x760] sm:$0xff]
        %v422 = vld [vmem:[%s176 + $0x768] sm:$0xff]
        %v423 = vld [vmem:[%s176 + $0x770] sm:$0xff]
        %v424 = vld [vmem:[%s176 + $0x778] sm:$0xff]
        %v425 = vld [vmem:[%s176 + $0x780] sm:$0xff]
        %v426 = vld [vmem:[%s176 + $0x788] sm:$0xff]
        %v427 = vld [vmem:[%s176 + $0x790] sm:$0xff]
        %v428 = vld [vmem:[%s176 + $0x798] sm:$0xff]
        %v429 = vld [vmem:[%s176 + $0x7a0] sm:$0xff]
        %v430 = vld [vmem:[%s176 + $0x7a8] sm:$0xff]
        %v431 = vld [vmem:[%s176 + $0x7b0] sm:$0xff]
        %v432 = vld [vmem:[%s176 + $0x7b8] sm:$0xff]
        %v433 = vld [vmem:[%s176 + $0x7c0] sm:$0xff]
        %v434 = vld [vmem:[%s176 + $0x7c8] sm:$0xff]
        %v435 = vld [vmem:[%s176 + $0x7d0] sm:$0xff]
        %v436 = vld [vmem:[%s176 + $0x7d8] sm:$0xff]
        %v437 = vld [vmem:[%s176 + $0x7e0] sm:$0xff]
        %v438 = vld [vmem:[%s176 + $0x7e8] sm:$0xff]
        %v439 = vld [vmem:[%s176 + $0x7f0] sm:$0xff]
        %v440 = vld [vmem:[%s176 + $0x7f8] sm:$0xff]
        %v441 = vld [vmem:[%s1] sm:$0xf]
        %v442 = vld [vmem:[%s1 + $0x4] sm:$0xf]
        %v443 = vld [vmem:[%s1 + $0x8] sm:$0xf]
        %v444 = vld [vmem:[%s1 + $0xc] sm:$0xf]
        %v445 = vld [vmem:[%s1 + $0x10] sm:$0xf]
        %v446 = vld [vmem:[%s1 + $0x14] sm:$0xf]
        %v447 = vld [vmem:[%s1 + $0x18] sm:$0xf]
        %v448 = vld [vmem:[%s1 + $0x1c] sm:$0xf]
        %v449 = vld [vmem:[%s1 + $0x20] sm:$0xf]
        %v450 = vld [vmem:[%s1 + $0x24] sm:$0xf]
        %v451 = vld [vmem:[%s1 + $0x28] sm:$0xf]
        %v452 = vld [vmem:[%s1 + $0x2c] sm:$0xf]
        %v453 = vld [vmem:[%s1 + $0x30] sm:$0xf]
        %v454 = vld [vmem:[%s1 + $0x34] sm:$0xf]
        %v455 = vld [vmem:[%s1 + $0x38] sm:$0xf]
        %v456 = vld [vmem:[%s1 + $0x3c] sm:$0xf]
        %v457 = vld [vmem:[%s1 + $0x40] sm:$0xf]
        %v458 = vld [vmem:[%s1 + $0x44] sm:$0xf]
        %v459 = vld [vmem:[%s1 + $0x48] sm:$0xf]
        %v460 = vld [vmem:[%s1 + $0x4c] sm:$0xf]
        %v461 = vld [vmem:[%s1 + $0x50] sm:$0xf]
        %v462 = vld [vmem:[%s1 + $0x54] sm:$0xf]
        %v463 = vld [vmem:[%s1 + $0x58] sm:$0xf]
        %v464 = vld [vmem:[%s1 + $0x5c] sm:$0xf]
        %v465 = vld [vmem:[%s1 + $0x60] sm:$0xf]
        %v466 = vld [vmem:[%s1 + $0x64] sm:$0xf]
        %v467 = vld [vmem:[%s1 + $0x68] sm:$0xf]
        %v468 = vld [vmem:[%s1 + $0x6c] sm:$0xf]
        %v469 = vld [vmem:[%s1 + $0x70] sm:$0xf]
        %v470 = vld [vmem:[%s1 + $0x74] sm:$0xf]
        %v471 = vld [vmem:[%s1 + $0x78] sm:$0xf]
        %v472 = vld [vmem:[%s1 + $0x7c] sm:$0xf]
        %v473 = vld [vmem:[%s1 + $0x80] sm:$0xf]
        %v474 = vld [vmem:[%s1 + $0x84] sm:$0xf]
        %v475 = vld [vmem:[%s1 + $0x88] sm:$0xf]
        %v476 = vld [vmem:[%s1 + $0x8c] sm:$0xf]
        %v477 = vld [vmem:[%s1 + $0x90] sm:$0xf]
        %v478 = vld [vmem:[%s1 + $0x94] sm:$0xf]
        %v479 = vld [vmem:[%s1 + $0x98] sm:$0xf]
        %v480 = vld [vmem:[%s1 + $0x9c] sm:$0xf]
        %v481 = vld [vmem:[%s1 + $0xa0] sm:$0xf]
        %v482 = vld [vmem:[%s1 + $0xa4] sm:$0xf]
        %v483 = vld [vmem:[%s1 + $0xa8] sm:$0xf]
        %v484 = vld [vmem:[%s1 + $0xac] sm:$0xf]
        %v485 = vld [vmem:[%s1 + $0xb0] sm:$0xf]
        %v486 = vld [vmem:[%s1 + $0xb4] sm:$0xf]
        %v487 = vld [vmem:[%s1 + $0xb8] sm:$0xf]
        %v488 = vld [vmem:[%s1 + $0xbc] sm:$0xf]
        %v489 = vld [vmem:[%s1 + $0xc0] sm:$0xf]
        %v490 = vld [vmem:[%s1 + $0xc4] sm:$0xf]
        %v491 = vld [vmem:[%s1 + $0xc8] sm:$0xf]
        %v492 = vld [vmem:[%s1 + $0xcc] sm:$0xf]
        %v493 = vld [vmem:[%s1 + $0xd0] sm:$0xf]
        %v494 = vld [vmem:[%s1 + $0xd4] sm:$0xf]
        %v495 = vld [vmem:[%s1 + $0xd8] sm:$0xf]
        %v496 = vld [vmem:[%s1 + $0xdc] sm:$0xf]
        %v497 = vld [vmem:[%s1 + $0xe0] sm:$0xf]
        %v498 = vld [vmem:[%s1 + $0xe4] sm:$0xf]
        %v499 = vld [vmem:[%s1 + $0xe8] sm:$0xf]
        %v500 = vld [vmem:[%s1 + $0xec] sm:$0xf]
        %v501 = vld [vmem:[%s1 + $0xf0] sm:$0xf]
        %v502 = vld [vmem:[%s1 + $0xf4] sm:$0xf]
        %v503 = vld [vmem:[%s1 + $0xf8] sm:$0xf]
        %v504 = vld [vmem:[%s1 + $0xfc] sm:$0xf]
        %v505 = vld [vmem:[%s1 + $0x100] sm:$0xf]
        %v506 = vld [vmem:[%s1 + $0x104] sm:$0xf]
        %v507 = vld [vmem:[%s1 + $0x108] sm:$0xf]
        %v508 = vld [vmem:[%s1 + $0x10c] sm:$0xf]
        %v509 = vld [vmem:[%s1 + $0x110] sm:$0xf]
        %v510 = vld [vmem:[%s1 + $0x114] sm:$0xf]
        %v511 = vld [vmem:[%s1 + $0x118] sm:$0xf]
        %v512 = vld [vmem:[%s1 + $0x11c] sm:$0xf]
        %v513 = vld [vmem:[%s1 + $0x120] sm:$0xf]
        %v514 = vld [vmem:[%s1 + $0x124] sm:$0xf]
        %v515 = vld [vmem:[%s1 + $0x128] sm:$0xf]
        %v516 = vld [vmem:[%s1 + $0x12c] sm:$0xf]
        %v517 = vld [vmem:[%s1 + $0x130] sm:$0xf]
        %v518 = vld [vmem:[%s1 + $0x134] sm:$0xf]
        %v519 = vld [vmem:[%s1 + $0x138] sm:$0xf]
        %v520 = vld [vmem:[%s1 + $0x13c] sm:$0xf]
        %v521 = vld [vmem:[%s1 + $0x140] sm:$0xf]
        %v522 = vld [vmem:[%s1 + $0x144] sm:$0xf]
        %v523 = vld [vmem:[%s1 + $0x148] sm:$0xf]
        %v524 = vld [vmem:[%s1 + $0x14c] sm:$0xf]
        %v525 = vld [vmem:[%s1 + $0x150] sm:$0xf]
        %v526 = vld [vmem:[%s1 + $0x154] sm:$0xf]
        %v527 = vld [vmem:[%s1 + $0x158] sm:$0xf]
        %v528 = vld [vmem:[%s1 + $0x15c] sm:$0xf]
        %v529 = vld [vmem:[%s1 + $0x160] sm:$0xf]
        %v530 = vld [vmem:[%s1 + $0x164] sm:$0xf]
        %v531 = vld [vmem:[%s1 + $0x168] sm:$0xf]
        %v532 = vld [vmem:[%s1 + $0x16c] sm:$0xf]
        %v533 = vld [vmem:[%s1 + $0x170] sm:$0xf]
        %v534 = vld [vmem:[%s1 + $0x174] sm:$0xf]
        %v535 = vld [vmem:[%s1 + $0x178] sm:$0xf]
        %v536 = vld [vmem:[%s1 + $0x17c] sm:$0xf]
        %v537 = vld [vmem:[%s1 + $0x180] sm:$0xf]
        %v538 = vld [vmem:[%s1 + $0x184] sm:$0xf]
        %v539 = vld [vmem:[%s1 + $0x188] sm:$0xf]
        %v540 = vld [vmem:[%s1 + $0x18c] sm:$0xf]
        %v541 = vld [vmem:[%s1 + $0x190] sm:$0xf]
        %v542 = vld [vmem:[%s1 + $0x194] sm:$0xf]
        %v543 = vld [vmem:[%s1 + $0x198] sm:$0xf]
        %v544 = vld [vmem:[%s1 + $0x19c] sm:$0xf]
        %v545 = vld [vmem:[%s1 + $0x1a0] sm:$0xf]
        %v546 = vld [vmem:[%s1 + $0x1a4] sm:$0xf]
        %v547 = vld [vmem:[%s1 + $0x1a8] sm:$0xf]
        %v548 = vld [vmem:[%s1 + $0x1ac] sm:$0xf]
        %v549 = vld [vmem:[%s1 + $0x1b0] sm:$0xf]
        %v550 = vld [vmem:[%s1 + $0x1b4] sm:$0xf]
        %v551 = vld [vmem:[%s1 + $0x1b8] sm:$0xf]
        %v552 = vld [vmem:[%s1 + $0x1bc] sm:$0xf]
        %v553 = vld [vmem:[%s1 + $0x1c0] sm:$0xf]
        %v554 = vld [vmem:[%s1 + $0x1c4] sm:$0xf]
        %v555 = vld [vmem:[%s1 + $0x1c8] sm:$0xf]
        %v556 = vld [vmem:[%s1 + $0x1cc] sm:$0xf]
        %v557 = vld [vmem:[%s1 + $0x1d0] sm:$0xf]
        %v558 = vld [vmem:[%s1 + $0x1d4] sm:$0xf]
        %v559 = vld [vmem:[%s1 + $0x1d8] sm:$0xf]
        %v560 = vld [vmem:[%s1 + $0x1dc] sm:$0xf]
        %v561 = vld [vmem:[%s1 + $0x1e0] sm:$0xf]
        %v562 = vld [vmem:[%s1 + $0x1e4] sm:$0xf]
        %v563 = vld [vmem:[%s1 + $0x1e8] sm:$0xf]
        %v564 = vld [vmem:[%s1 + $0x1ec] sm:$0xf]
        %v565 = vld [vmem:[%s1 + $0x1f0] sm:$0xf]
        %v566 = vld [vmem:[%s1 + $0x1f4] sm:$0xf]
        %v567 = vld [vmem:[%s1 + $0x1f8] sm:$0xf]
        %v568 = vld [vmem:[%s1 + $0x1fc] sm:$0xf]
        %v569 = vld [vmem:[%s1 + $0x200] sm:$0xf]
        %v570 = vld [vmem:[%s1 + $0x204] sm:$0xf]
        %v571 = vld [vmem:[%s1 + $0x208] sm:$0xf]
        %v572 = vld [vmem:[%s1 + $0x20c] sm:$0xf]
        %v573 = vld [vmem:[%s1 + $0x210] sm:$0xf]
        %v574 = vld [vmem:[%s1 + $0x214] sm:$0xf]
        %v575 = vld [vmem:[%s1 + $0x218] sm:$0xf]
        %v576 = vld [vmem:[%s1 + $0x21c] sm:$0xf]
        %v577 = vld [vmem:[%s1 + $0x220] sm:$0xf]
        %v578 = vld [vmem:[%s1 + $0x224] sm:$0xf]
        %v579 = vld [vmem:[%s1 + $0x228] sm:$0xf]
        %v580 = vld [vmem:[%s1 + $0x22c] sm:$0xf]
        %v581 = vld [vmem:[%s1 + $0x230] sm:$0xf]
        %v582 = vld [vmem:[%s1 + $0x234] sm:$0xf]
        %v583 = vld [vmem:[%s1 + $0x238] sm:$0xf]
        %v584 = vld [vmem:[%s1 + $0x23c] sm:$0xf]
        %v585 = vld [vmem:[%s1 + $0x240] sm:$0xf]
        %v586 = vld [vmem:[%s1 + $0x244] sm:$0xf]
        %v587 = vld [vmem:[%s1 + $0x248] sm:$0xf]
        %v588 = vld [vmem:[%s1 + $0x24c] sm:$0xf]
        %v589 = vld [vmem:[%s1 + $0x250] sm:$0xf]
        %v590 = vld [vmem:[%s1 + $0x254] sm:$0xf]
        %v591 = vld [vmem:[%s1 + $0x258] sm:$0xf]
        %v592 = vld [vmem:[%s1 + $0x25c] sm:$0xf]
        %v593 = vld [vmem:[%s1 + $0x260] sm:$0xf]
        %v594 = vld [vmem:[%s1 + $0x264] sm:$0xf]
        %v595 = vld [vmem:[%s1 + $0x268] sm:$0xf]
        %v596 = vld [vmem:[%s1 + $0x26c] sm:$0xf]
        %v597 = vld [vmem:[%s1 + $0x270] sm:$0xf]
        %v598 = vld [vmem:[%s1 + $0x274] sm:$0xf]
        %v599 = vld [vmem:[%s1 + $0x278] sm:$0xf]
        %v600 = vld [vmem:[%s1 + $0x27c] sm:$0xf]
        %v601 = vld [vmem:[%s1 + $0x280] sm:$0xf]
        %v602 = vld [vmem:[%s1 + $0x284] sm:$0xf]
        %v603 = vld [vmem:[%s1 + $0x288] sm:$0xf]
        %v604 = vld [vmem:[%s1 + $0x28c] sm:$0xf]
        %v605 = vld [vmem:[%s1 + $0x290] sm:$0xf]
        %v606 = vld [vmem:[%s1 + $0x294] sm:$0xf]
        %v607 = vld [vmem:[%s1 + $0x298] sm:$0xf]
        %v608 = vld [vmem:[%s1 + $0x29c] sm:$0xf]
        %v609 = vld [vmem:[%s1 + $0x2a0] sm:$0xf]
        %v610 = vld [vmem:[%s1 + $0x2a4] sm:$0xf]
        %v611 = vld [vmem:[%s1 + $0x2a8] sm:$0xf]
        %v612 = vld [vmem:[%s1 + $0x2ac] sm:$0xf]
        %v613 = vld [vmem:[%s1 + $0x2b0] sm:$0xf]
        %v614 = vld [vmem:[%s1 + $0x2b4] sm:$0xf]
        %v615 = vld [vmem:[%s1 + $0x2b8] sm:$0xf]
        %v616 = vld [vmem:[%s1 + $0x2bc] sm:$0xf]
        %v617 = vld [vmem:[%s1 + $0x2c0] sm:$0xf]
        %v618 = vld [vmem:[%s1 + $0x2c4] sm:$0xf]
        %v619 = vld [vmem:[%s1 + $0x2c8] sm:$0xf]
        %v620 = vld [vmem:[%s1 + $0x2cc] sm:$0xf]
        %v621 = vld [vmem:[%s1 + $0x2d0] sm:$0xf]
        %v622 = vld [vmem:[%s1 + $0x2d4] sm:$0xf]
        %v623 = vld [vmem:[%s1 + $0x2d8] sm:$0xf]
        %v624 = vld [vmem:[%s1 + $0x2dc] sm:$0xf]
        %v625 = vld [vmem:[%s1 + $0x2e0] sm:$0xf]
        %v626 = vld [vmem:[%s1 + $0x2e4] sm:$0xf]
        %v627 = vld [vmem:[%s1 + $0x2e8] sm:$0xf]
        %v628 = vld [vmem:[%s1 + $0x2ec] sm:$0xf]
        %v629 = vld [vmem:[%s1 + $0x2f0] sm:$0xf]
        %v630 = vld [vmem:[%s1 + $0x2f4] sm:$0xf]
        %v631 = vld [vmem:[%s1 + $0x2f8] sm:$0xf]
        %v632 = vld [vmem:[%s1 + $0x2fc] sm:$0xf]
        %v633 = vld [vmem:[%s1 + $0x300] sm:$0xf]
        %v634 = vld [vmem:[%s1 + $0x304] sm:$0xf]
        %v635 = vld [vmem:[%s1 + $0x308] sm:$0xf]
        %v636 = vld [vmem:[%s1 + $0x30c] sm:$0xf]
        %v637 = vld [vmem:[%s1 + $0x310] sm:$0xf]
        %v638 = vld [vmem:[%s1 + $0x314] sm:$0xf]
        %v639 = vld [vmem:[%s1 + $0x318] sm:$0xf]
        %v640 = vld [vmem:[%s1 + $0x31c] sm:$0xf]
        %v641 = vld [vmem:[%s1 + $0x320] sm:$0xf]
        %v642 = vld [vmem:[%s1 + $0x324] sm:$0xf]
        %v643 = vld [vmem:[%s1 + $0x328] sm:$0xf]
        %v644 = vld [vmem:[%s1 + $0x32c] sm:$0xf]
        %v645 = vld [vmem:[%s1 + $0x330] sm:$0xf]
        %v646 = vld [vmem:[%s1 + $0x334] sm:$0xf]
        %v647 = vld [vmem:[%s1 + $0x338] sm:$0xf]
        %v648 = vld [vmem:[%s1 + $0x33c] sm:$0xf]
        %v649 = vld [vmem:[%s1 + $0x340] sm:$0xf]
        %v650 = vld [vmem:[%s1 + $0x344] sm:$0xf]
        %v651 = vld [vmem:[%s1 + $0x348] sm:$0xf]
        %v652 = vld [vmem:[%s1 + $0x34c] sm:$0xf]
        %v653 = vld [vmem:[%s1 + $0x350] sm:$0xf]
        %v654 = vld [vmem:[%s1 + $0x354] sm:$0xf]
        %v655 = vld [vmem:[%s1 + $0x358] sm:$0xf]
        %v656 = vld [vmem:[%s1 + $0x35c] sm:$0xf]
        %v657 = vld [vmem:[%s1 + $0x360] sm:$0xf]
        %v658 = vld [vmem:[%s1 + $0x364] sm:$0xf]
        %v659 = vld [vmem:[%s1 + $0x368] sm:$0xf]
        %v660 = vld [vmem:[%s1 + $0x36c] sm:$0xf]
        %v661 = vld [vmem:[%s1 + $0x370] sm:$0xf]
        %v662 = vld [vmem:[%s1 + $0x374] sm:$0xf]
        %v663 = vld [vmem:[%s1 + $0x378] sm:$0xf]
        %v664 = vld [vmem:[%s1 + $0x37c] sm:$0xf]
        %v665 = vld [vmem:[%s1 + $0x380] sm:$0xf]
        %v666 = vld [vmem:[%s1 + $0x384] sm:$0xf]
        %v667 = vld [vmem:[%s1 + $0x388] sm:$0xf]
        %v668 = vld [vmem:[%s1 + $0x38c] sm:$0xf]
        %v669 = vld [vmem:[%s1 + $0x390] sm:$0xf]
        %v670 = vld [vmem:[%s1 + $0x394] sm:$0xf]
        %v671 = vld [vmem:[%s1 + $0x398] sm:$0xf]
        %v672 = vld [vmem:[%s1 + $0x39c] sm:$0xf]
        %v673 = vld [vmem:[%s1 + $0x3a0] sm:$0xf]
        %v674 = vld [vmem:[%s1 + $0x3a4] sm:$0xf]
        %v675 = vld [vmem:[%s1 + $0x3a8] sm:$0xf]
        %v676 = vld [vmem:[%s1 + $0x3ac] sm:$0xf]
        %v677 = vld [vmem:[%s1 + $0x3b0] sm:$0xf]
        %v678 = vld [vmem:[%s1 + $0x3b4] sm:$0xf]
        %v679 = vld [vmem:[%s1 + $0x3b8] sm:$0xf]
        %v680 = vld [vmem:[%s1 + $0x3bc] sm:$0xf]
        %v681 = vld [vmem:[%s1 + $0x3c0] sm:$0xf]
        %v682 = vld [vmem:[%s1 + $0x3c4] sm:$0xf]
        %v683 = vld [vmem:[%s1 + $0x3c8] sm:$0xf]
        %v684 = vld [vmem:[%s1 + $0x3cc] sm:$0xf]
        %v685 = vld [vmem:[%s1 + $0x3d0] sm:$0xf]
        %v686 = vld [vmem:[%s1 + $0x3d4] sm:$0xf]
        %v687 = vld [vmem:[%s1 + $0x3d8] sm:$0xf]
        %v688 = vld [vmem:[%s1 + $0x3dc] sm:$0xf]
        %v689 = vld [vmem:[%s1 + $0x3e0] sm:$0xf]
        %v690 = vld [vmem:[%s1 + $0x3e4] sm:$0xf]
        %v691 = vld [vmem:[%s1 + $0x3e8] sm:$0xf]
        %v692 = vld [vmem:[%s1 + $0x3ec] sm:$0xf]
        %v693 = vld [vmem:[%s1 + $0x3f0] sm:$0xf]
        %v694 = vld [vmem:[%s1 + $0x3f4] sm:$0xf]
        %v695 = vld [vmem:[%s1 + $0x3f8] sm:$0xf]
        %v696 = vld [vmem:[%s1 + $0x3fc] sm:$0xf]
        %v697 = vld [vmem:[%s1 + $0x400] sm:$0xf]
        %v698 = vld [vmem:[%s1 + $0x404] sm:$0xf]
        %v699 = vld [vmem:[%s1 + $0x408] sm:$0xf]
        %v700 = vld [vmem:[%s1 + $0x40c] sm:$0xf]
        %v701 = vld [vmem:[%s1 + $0x410] sm:$0xf]
        %v702 = vld [vmem:[%s1 + $0x414] sm:$0xf]
        %v703 = vld [vmem:[%s1 + $0x418] sm:$0xf]
        %v704 = vld [vmem:[%s1 + $0x41c] sm:$0xf]
        %v705 = vld [vmem:[%s1 + $0x420] sm:$0xf]
        %v706 = vld [vmem:[%s1 + $0x424] sm:$0xf]
        %v707 = vld [vmem:[%s1 + $0x428] sm:$0xf]
        %v708 = vld [vmem:[%s1 + $0x42c] sm:$0xf]
        %v709 = vld [vmem:[%s1 + $0x430] sm:$0xf]
        %v710 = vld [vmem:[%s1 + $0x434] sm:$0xf]
        %v711 = vld [vmem:[%s1 + $0x438] sm:$0xf]
        %v712 = vld [vmem:[%s1 + $0x43c] sm:$0xf]
        %v713 = vld [vmem:[%s1 + $0x440] sm:$0xf]
        %v714 = vld [vmem:[%s1 + $0x444] sm:$0xf]
        %v715 = vld [vmem:[%s1 + $0x448] sm:$0xf]
        %v716 = vld [vmem:[%s1 + $0x44c] sm:$0xf]
        %v717 = vld [vmem:[%s1 + $0x450] sm:$0xf]
        %v718 = vld [vmem:[%s1 + $0x454] sm:$0xf]
        %v719 = vld [vmem:[%s1 + $0x458] sm:$0xf]
        %v720 = vld [vmem:[%s1 + $0x45c] sm:$0xf]
        %v721 = vld [vmem:[%s1 + $0x460] sm:$0xf]
        %v722 = vld [vmem:[%s1 + $0x464] sm:$0xf]
        %v723 = vld [vmem:[%s1 + $0x468] sm:$0xf]
        %v724 = vld [vmem:[%s1 + $0x46c] sm:$0xf]
        %v725 = vld [vmem:[%s1 + $0x470] sm:$0xf]
        %v726 = vld [vmem:[%s1 + $0x474] sm:$0xf]
        %v727 = vld [vmem:[%s1 + $0x478] sm:$0xf]
        %v728 = vld [vmem:[%s1 + $0x47c] sm:$0xf]
        %v729 = vld [vmem:[%s1 + $0x480] sm:$0xf]
        %v730 = vld [vmem:[%s1 + $0x484] sm:$0xf]
        %v731 = vld [vmem:[%s1 + $0x488] sm:$0xf]
        %v732 = vld [vmem:[%s1 + $0x48c] sm:$0xf]
        %v733 = vld [vmem:[%s1 + $0x490] sm:$0xf]
        %v734 = vld [vmem:[%s1 + $0x494] sm:$0xf]
        %v735 = vld [vmem:[%s1 + $0x498] sm:$0xf]
        %v736 = vld [vmem:[%s1 + $0x49c] sm:$0xf]
        %v737 = vld [vmem:[%s1 + $0x4a0] sm:$0xf]
        %v738 = vld [vmem:[%s1 + $0x4a4] sm:$0xf]
        %v739 = vld [vmem:[%s1 + $0x4a8] sm:$0xf]
        %v740 = vld [vmem:[%s1 + $0x4ac] sm:$0xf]
        %v741 = vld [vmem:[%s1 + $0x4b0] sm:$0xf]
        %v742 = vld [vmem:[%s1 + $0x4b4] sm:$0xf]
        %v743 = vld [vmem:[%s1 + $0x4b8] sm:$0xf]
        %v744 = vld [vmem:[%s1 + $0x4bc] sm:$0xf]
        %v745 = vld [vmem:[%s1 + $0x4c0] sm:$0xf]
        %v746 = vld [vmem:[%s1 + $0x4c4] sm:$0xf]
        %v747 = vld [vmem:[%s1 + $0x4c8] sm:$0xf]
        %v748 = vld [vmem:[%s1 + $0x4cc] sm:$0xf]
        %v749 = vld [vmem:[%s1 + $0x4d0] sm:$0xf]
        %v750 = vld [vmem:[%s1 + $0x4d4] sm:$0xf]
        %v751 = vld [vmem:[%s1 + $0x4d8] sm:$0xf]
        %v752 = vld [vmem:[%s1 + $0x4dc] sm:$0xf]
        %v753 = vld [vmem:[%s1 + $0x4e0] sm:$0xf]
        %v754 = vld [vmem:[%s1 + $0x4e4] sm:$0xf]
        %v755 = vld [vmem:[%s1 + $0x4e8] sm:$0xf]
        %v756 = vld [vmem:[%s1 + $0x4ec] sm:$0xf]
        %v757 = vld [vmem:[%s1 + $0x4f0] sm:$0xf]
        %v758 = vld [vmem:[%s1 + $0x4f4] sm:$0xf]
        %v759 = vld [vmem:[%s1 + $0x4f8] sm:$0xf]
        %v760 = vld [vmem:[%s1 + $0x4fc] sm:$0xf]
        %v761 = vld [vmem:[%s1 + $0x500] sm:$0xf]
        %v762 = vld [vmem:[%s1 + $0x504] sm:$0xf]
        %v763 = vld [vmem:[%s1 + $0x508] sm:$0xf]
        %v764 = vld [vmem:[%s1 + $0x50c] sm:$0xf]
        %v765 = vld [vmem:[%s1 + $0x510] sm:$0xf]
        %v766 = vld [vmem:[%s1 + $0x514] sm:$0xf]
        %v767 = vld [vmem:[%s1 + $0x518] sm:$0xf]
        %v768 = vld [vmem:[%s1 + $0x51c] sm:$0xf]
        %v769 = vld [vmem:[%s1 + $0x520] sm:$0xf]
        %v770 = vld [vmem:[%s1 + $0x524] sm:$0xf]
        %v771 = vld [vmem:[%s1 + $0x528] sm:$0xf]
        %v772 = vld [vmem:[%s1 + $0x52c] sm:$0xf]
        %v773 = vld [vmem:[%s1 + $0x530] sm:$0xf]
        %v774 = vld [vmem:[%s1 + $0x534] sm:$0xf]
        %v775 = vld [vmem:[%s1 + $0x538] sm:$0xf]
        %v776 = vld [vmem:[%s1 + $0x53c] sm:$0xf]
        %v777 = vld [vmem:[%s1 + $0x540] sm:$0xf]
        %v778 = vld [vmem:[%s1 + $0x544] sm:$0xf]
        %v779 = vld [vmem:[%s1 + $0x548] sm:$0xf]
        %v780 = vld [vmem:[%s1 + $0x54c] sm:$0xf]
        %v781 = vld [vmem:[%s1 + $0x550] sm:$0xf]
        %v782 = vld [vmem:[%s1 + $0x554] sm:$0xf]
        %v783 = vld [vmem:[%s1 + $0x558] sm:$0xf]
        %v784 = vld [vmem:[%s1 + $0x55c] sm:$0xf]
        %v785 = vld [vmem:[%s1 + $0x560] sm:$0xf]
        %v786 = vld [vmem:[%s1 + $0x564] sm:$0xf]
        %v787 = vld [vmem:[%s1 + $0x568] sm:$0xf]
        %v788 = vld [vmem:[%s1 + $0x56c] sm:$0xf]
        %v789 = vld [vmem:[%s1 + $0x570] sm:$0xf]
        %v790 = vld [vmem:[%s1 + $0x574] sm:$0xf]
        %v791 = vld [vmem:[%s1 + $0x578] sm:$0xf]
        %v792 = vld [vmem:[%s1 + $0x57c] sm:$0xf]
        %v793 = vld [vmem:[%s1 + $0x580] sm:$0xf]
        %v794 = vld [vmem:[%s1 + $0x584] sm:$0xf]
        %v795 = vld [vmem:[%s1 + $0x588] sm:$0xf]
        %v796 = vld [vmem:[%s1 + $0x58c] sm:$0xf]
        %v797 = vld [vmem:[%s1 + $0x590] sm:$0xf]
        %v798 = vld [vmem:[%s1 + $0x594] sm:$0xf]
        %v799 = vld [vmem:[%s1 + $0x598] sm:$0xf]
        %v800 = vld [vmem:[%s1 + $0x59c] sm:$0xf]
        %v801 = vld [vmem:[%s1 + $0x5a0] sm:$0xf]
        %v802 = vld [vmem:[%s1 + $0x5a4] sm:$0xf]
        %v803 = vld [vmem:[%s1 + $0x5a8] sm:$0xf]
        %v804 = vld [vmem:[%s1 + $0x5ac] sm:$0xf]
        %v805 = vld [vmem:[%s1 + $0x5b0] sm:$0xf]
        %v806 = vld [vmem:[%s1 + $0x5b4] sm:$0xf]
        %v807 = vld [vmem:[%s1 + $0x5b8] sm:$0xf]
        %v808 = vld [vmem:[%s1 + $0x5bc] sm:$0xf]
        %v809 = vld [vmem:[%s1 + $0x5c0] sm:$0xf]
        %v810 = vld [vmem:[%s1 + $0x5c4] sm:$0xf]
        %v811 = vld [vmem:[%s1 + $0x5c8] sm:$0xf]
        %v812 = vld [vmem:[%s1 + $0x5cc] sm:$0xf]
        %v813 = vld [vmem:[%s1 + $0x5d0] sm:$0xf]
        %v814 = vld [vmem:[%s1 + $0x5d4] sm:$0xf]
        %v815 = vld [vmem:[%s1 + $0x5d8] sm:$0xf]
        %v816 = vld [vmem:[%s1 + $0x5dc] sm:$0xf]
        %v817 = vld [vmem:[%s1 + $0x5e0] sm:$0xf]
        %v818 = vld [vmem:[%s1 + $0x5e4] sm:$0xf]
        %v819 = vld [vmem:[%s1 + $0x5e8] sm:$0xf]
        %v820 = vld [vmem:[%s1 + $0x5ec] sm:$0xf]
        %v821 = vld [vmem:[%s1 + $0x5f0] sm:$0xf]
        %v822 = vld [vmem:[%s1 + $0x5f4] sm:$0xf]
        %v823 = vld [vmem:[%s1 + $0x5f8] sm:$0xf]
        %v824 = vld [vmem:[%s1 + $0x5fc] sm:$0xf]
        %v825 = vld [vmem:[%s1 + $0x600] sm:$0xf]
        %v826 = vld [vmem:[%s1 + $0x604] sm:$0xf]
        %v827 = vld [vmem:[%s1 + $0x608] sm:$0xf]
        %v828 = vld [vmem:[%s1 + $0x60c] sm:$0xf]
        %v829 = vld [vmem:[%s1 + $0x610] sm:$0xf]
        %v830 = vld [vmem:[%s1 + $0x614] sm:$0xf]
        %v831 = vld [vmem:[%s1 + $0x618] sm:$0xf]
        %v832 = vld [vmem:[%s1 + $0x61c] sm:$0xf]
        %v833 = vld [vmem:[%s1 + $0x620] sm:$0xf]
        %v834 = vld [vmem:[%s1 + $0x624] sm:$0xf]
        %v835 = vld [vmem:[%s1 + $0x628] sm:$0xf]
        %v836 = vld [vmem:[%s1 + $0x62c] sm:$0xf]
        %v837 = vld [vmem:[%s1 + $0x630] sm:$0xf]
        %v838 = vld [vmem:[%s1 + $0x634] sm:$0xf]
        %v839 = vld [vmem:[%s1 + $0x638] sm:$0xf]
        %v840 = vld [vmem:[%s1 + $0x63c] sm:$0xf]
        %v841 = vld [vmem:[%s1 + $0x640] sm:$0xf]
        %v842 = vld [vmem:[%s1 + $0x644] sm:$0xf]
        %v843 = vld [vmem:[%s1 + $0x648] sm:$0xf]
        %v844 = vld [vmem:[%s1 + $0x64c] sm:$0xf]
        %v845 = vld [vmem:[%s1 + $0x650] sm:$0xf]
        %v846 = vld [vmem:[%s1 + $0x654] sm:$0xf]
        %v847 = vld [vmem:[%s1 + $0x658] sm:$0xf]
        %v848 = vld [vmem:[%s1 + $0x65c] sm:$0xf]
        %v849 = vld [vmem:[%s1 + $0x660] sm:$0xf]
        %v850 = vld [vmem:[%s1 + $0x664] sm:$0xf]
        %v851 = vld [vmem:[%s1 + $0x668] sm:$0xf]
        %v852 = vld [vmem:[%s1 + $0x66c] sm:$0xf]
        %v853 = vld [vmem:[%s1 + $0x670] sm:$0xf]
        %v854 = vld [vmem:[%s1 + $0x674] sm:$0xf]
        %v855 = vld [vmem:[%s1 + $0x678] sm:$0xf]
        %v856 = vld [vmem:[%s1 + $0x67c] sm:$0xf]
        %v857 = vld [vmem:[%s1 + $0x680] sm:$0xf]
        %v858 = vld [vmem:[%s1 + $0x684] sm:$0xf]
        %v859 = vld [vmem:[%s1 + $0x688] sm:$0xf]
        %v860 = vld [vmem:[%s1 + $0x68c] sm:$0xf]
        %v861 = vld [vmem:[%s1 + $0x690] sm:$0xf]
        %v862 = vld [vmem:[%s1 + $0x694] sm:$0xf]
        %v863 = vld [vmem:[%s1 + $0x698] sm:$0xf]
        %v864 = vld [vmem:[%s1 + $0x69c] sm:$0xf]
        %v865 = vld [vmem:[%s1 + $0x6a0] sm:$0xf]
        %v866 = vld [vmem:[%s1 + $0x6a4] sm:$0xf]
        %v867 = vld [vmem:[%s1 + $0x6a8] sm:$0xf]
        %v868 = vld [vmem:[%s1 + $0x6ac] sm:$0xf]
        %v869 = vld [vmem:[%s1 + $0x6b0] sm:$0xf]
        %v870 = vld [vmem:[%s1 + $0x6b4] sm:$0xf]
        %v871 = vld [vmem:[%s1 + $0x6b8] sm:$0xf]
        %v872 = vld [vmem:[%s1 + $0x6bc] sm:$0xf]
        %v873 = vld [vmem:[%s1 + $0x6c0] sm:$0xf]
        %v874 = vld [vmem:[%s1 + $0x6c4] sm:$0xf]
        %v875 = vld [vmem:[%s1 + $0x6c8] sm:$0xf]
        %v876 = vld [vmem:[%s1 + $0x6cc] sm:$0xf]
        %v877 = vld [vmem:[%s1 + $0x6d0] sm:$0xf]
        %v878 = vld [vmem:[%s1 + $0x6d4] sm:$0xf]
        %v879 = vld [vmem:[%s1 + $0x6d8] sm:$0xf]
        %v880 = vld [vmem:[%s1 + $0x6dc] sm:$0xf]
        %v881 = vld [vmem:[%s1 + $0x6e0] sm:$0xf]
        %v882 = vld [vmem:[%s1 + $0x6e4] sm:$0xf]
        %v883 = vld [vmem:[%s1 + $0x6e8] sm:$0xf]
        %v884 = vld [vmem:[%s1 + $0x6ec] sm:$0xf]
        %v885 = vld [vmem:[%s1 + $0x6f0] sm:$0xf]
        %v886 = vld [vmem:[%s1 + $0x6f4] sm:$0xf]
        %v887 = vld [vmem:[%s1 + $0x6f8] sm:$0xf]
        %v888 = vld [vmem:[%s1 + $0x6fc] sm:$0xf]
        %v889 = vld [vmem:[%s1 + $0x700] sm:$0xf]
        %v890 = vld [vmem:[%s1 + $0x704] sm:$0xf]
        %v891 = vld [vmem:[%s1 + $0x708] sm:$0xf]
        %v892 = vld [vmem:[%s1 + $0x70c] sm:$0xf]
        %v893 = vld [vmem:[%s1 + $0x710] sm:$0xf]
        %v894 = vld [vmem:[%s1 + $0x714] sm:$0xf]
        %v895 = vld [vmem:[%s1 + $0x718] sm:$0xf]
        %v896 = vld [vmem:[%s1 + $0x71c] sm:$0xf]
        %v897 = vld [vmem:[%s1 + $0x720] sm:$0xf]
        %v898 = vld [vmem:[%s1 + $0x724] sm:$0xf]
        %v899 = vld [vmem:[%s1 + $0x728] sm:$0xf]
        %v900 = vld [vmem:[%s1 + $0x72c] sm:$0xf]
        %v901 = vld [vmem:[%s1 + $0x730] sm:$0xf]
        %v902 = vld [vmem:[%s1 + $0x734] sm:$0xf]
        %v903 = vld [vmem:[%s1 + $0x738] sm:$0xf]
        %v904 = vld [vmem:[%s1 + $0x73c] sm:$0xf]
        %v905 = vld [vmem:[%s1 + $0x740] sm:$0xf]
        %v906 = vld [vmem:[%s1 + $0x744] sm:$0xf]
        %v907 = vld [vmem:[%s1 + $0x748] sm:$0xf]
        %v908 = vld [vmem:[%s1 + $0x74c] sm:$0xf]
        %v909 = vld [vmem:[%s1 + $0x750] sm:$0xf]
        %v910 = vld [vmem:[%s1 + $0x754] sm:$0xf]
        %v911 = vld [vmem:[%s1 + $0x758] sm:$0xf]
        %v912 = vld [vmem:[%s1 + $0x75c] sm:$0xf]
        %v913 = vld [vmem:[%s1 + $0x760] sm:$0xf]
        %v914 = vld [vmem:[%s1 + $0x764] sm:$0xf]
        %v915 = vld [vmem:[%s1 + $0x768] sm:$0xf]
        %v916 = vld [vmem:[%s1 + $0x76c] sm:$0xf]
        %v917 = vld [vmem:[%s1 + $0x770] sm:$0xf]
        %v918 = vld [vmem:[%s1 + $0x774] sm:$0xf]
        %v919 = vld [vmem:[%s1 + $0x778] sm:$0xf]
        %v920 = vld [vmem:[%s1 + $0x77c] sm:$0xf]
        %v921 = vld [vmem:[%s1 + $0x780] sm:$0xf]
        %v922 = vld [vmem:[%s1 + $0x784] sm:$0xf]
        %v923 = vld [vmem:[%s1 + $0x788] sm:$0xf]
        %v924 = vld [vmem:[%s1 + $0x78c] sm:$0xf]
        %v925 = vld [vmem:[%s1 + $0x790] sm:$0xf]
        %v926 = vld [vmem:[%s1 + $0x794] sm:$0xf]
        %v927 = vld [vmem:[%s1 + $0x798] sm:$0xf]
        %v928 = vld [vmem:[%s1 + $0x79c] sm:$0xf]
        %v929 = vld [vmem:[%s1 + $0x7a0] sm:$0xf]
        %v930 = vld [vmem:[%s1 + $0x7a4] sm:$0xf]
        %v931 = vld [vmem:[%s1 + $0x7a8] sm:$0xf]
        %v932 = vld [vmem:[%s1 + $0x7ac] sm:$0xf]
        %v933 = vld [vmem:[%s1 + $0x7b0] sm:$0xf]
        %v934 = vld [vmem:[%s1 + $0x7b4] sm:$0xf]
        %v935 = vld [vmem:[%s1 + $0x7b8] sm:$0xf]
        %v936 = vld [vmem:[%s1 + $0x7bc] sm:$0xf]
        %v937 = vld [vmem:[%s1 + $0x7c0] sm:$0xf]
        %v938 = vld [vmem:[%s1 + $0x7c4] sm:$0xf]
        %v939 = vld [vmem:[%s1 + $0x7c8] sm:$0xf]
        %v940 = vld [vmem:[%s1 + $0x7cc] sm:$0xf]
        %v941 = vld [vmem:[%s1 + $0x7d0] sm:$0xf]
        %v942 = vld [vmem:[%s1 + $0x7d4] sm:$0xf]
        %v943 = vld [vmem:[%s1 + $0x7d8] sm:$0xf]
        %v944 = vld [vmem:[%s1 + $0x7dc] sm:$0xf]
        %v945 = vld [vmem:[%s1 + $0x7e0] sm:$0xf]
        %v946 = vld [vmem:[%s1 + $0x7e4] sm:$0xf]
        %v947 = vld [vmem:[%s1 + $0x7e8] sm:$0xf]
        %v948 = vld [vmem:[%s1 + $0x7ec] sm:$0xf]
        %v949 = vld [vmem:[%s1 + $0x7f0] sm:$0xf]
        %v950 = vld [vmem:[%s1 + $0x7f4] sm:$0xf]
        %v951 = vld [vmem:[%s1 + $0x7f8] sm:$0xf]
        %v952 = vld [vmem:[%s1 + $0x7fc] sm:$0xf]
        %v953 = vld [vmem:[%s182] sm:$0xff]
        %v954 = vld [vmem:[%s182 + $0x8] sm:$0xff]
        %v955 = vld [vmem:[%s182 + $0x10] sm:$0xff]
        %v956 = vld [vmem:[%s182 + $0x18] sm:$0xff]
        %v957 = vld [vmem:[%s182 + $0x20] sm:$0xff]
        %v958 = vld [vmem:[%s182 + $0x28] sm:$0xff]
        %v959 = vld [vmem:[%s182 + $0x30] sm:$0xff]
        %v960 = vld [vmem:[%s182 + $0x38] sm:$0xff]
        %v961 = vld [vmem:[%s182 + $0x40] sm:$0xff]
        %v962 = vld [vmem:[%s182 + $0x48] sm:$0xff]
        %v963 = vld [vmem:[%s182 + $0x50] sm:$0xff]
        %v964 = vld [vmem:[%s182 + $0x58] sm:$0xff]
        %v965 = vld [vmem:[%s182 + $0x60] sm:$0xff]
        %v966 = vld [vmem:[%s182 + $0x68] sm:$0xff]
        %v967 = vld [vmem:[%s182 + $0x70] sm:$0xff]
        %v968 = vld [vmem:[%s182 + $0x78] sm:$0xff]
        %v1225 = vunpack.c.l.b16 %v185
        %v1226 = vunpack.c.h.b16 %v185
        %v1227 = vunpack.c.l.b16 %v186
        %v1228 = vunpack.c.h.b16 %v186
        %v1229 = vunpack.c.l.b16 %v187
        %v1230 = vunpack.c.h.b16 %v187
        %v1231 = vunpack.c.l.b16 %v188
        %v1232 = vunpack.c.h.b16 %v188
        %v1233 = vunpack.c.l.b16 %v189
        %v1234 = vunpack.c.h.b16 %v189
        %v1235 = vunpack.c.l.b16 %v190
        %v1236 = vunpack.c.h.b16 %v190
        %v1237 = vunpack.c.l.b16 %v191
        %v1238 = vunpack.c.h.b16 %v191
        %v1239 = vunpack.c.l.b16 %v192
        %v1240 = vunpack.c.h.b16 %v192
        %v1241 = vunpack.c.l.b16 %v193
        %v1242 = vunpack.c.h.b16 %v193
        %v1243 = vunpack.c.l.b16 %v194
        %v1244 = vunpack.c.h.b16 %v194
        %v1245 = vunpack.c.l.b16 %v195
        %v1246 = vunpack.c.h.b16 %v195
        %v1247 = vunpack.c.l.b16 %v196
        %v1248 = vunpack.c.h.b16 %v196
        %v1249 = vunpack.c.l.b16 %v197
        %v1250 = vunpack.c.h.b16 %v197
        %v1251 = vunpack.c.l.b16 %v198
        %v1252 = vunpack.c.h.b16 %v198
        %v1253 = vunpack.c.l.b16 %v199
        %v1254 = vunpack.c.h.b16 %v199
        %v1255 = vunpack.c.l.b16 %v200
        %v1256 = vunpack.c.h.b16 %v200
        %v1257 = vunpack.c.l.b16 %v201
        %v1258 = vunpack.c.h.b16 %v201
        %v1259 = vunpack.c.l.b16 %v202
        %v1260 = vunpack.c.h.b16 %v202
        %v1261 = vunpack.c.l.b16 %v203
        %v1262 = vunpack.c.h.b16 %v203
        %v1263 = vunpack.c.l.b16 %v204
        %v1264 = vunpack.c.h.b16 %v204
        %v1265 = vunpack.c.l.b16 %v205
        %v1266 = vunpack.c.h.b16 %v205
        %v1267 = vunpack.c.l.b16 %v206
        %v1268 = vunpack.c.h.b16 %v206
        %v1269 = vunpack.c.l.b16 %v207
        %v1270 = vunpack.c.h.b16 %v207
        %v1271 = vunpack.c.l.b16 %v208
        %v1272 = vunpack.c.h.b16 %v208
        %v1273 = vunpack.c.l.b16 %v209
        %v1274 = vunpack.c.h.b16 %v209
        %v1275 = vunpack.c.l.b16 %v210
        %v1276 = vunpack.c.h.b16 %v210
        %v1277 = vunpack.c.l.b16 %v211
        %v1278 = vunpack.c.h.b16 %v211
        %v1279 = vunpack.c.l.b16 %v212
        %v1280 = vunpack.c.h.b16 %v212
        %v1281 = vunpack.c.l.b16 %v213
        %v1282 = vunpack.c.h.b16 %v213
        %v1283 = vunpack.c.l.b16 %v214
        %v1284 = vunpack.c.h.b16 %v214
        %v1285 = vunpack.c.l.b16 %v215
        %v1286 = vunpack.c.h.b16 %v215
        %v1287 = vunpack.c.l.b16 %v216
        %v1288 = vunpack.c.h.b16 %v216
        %v1289 = vunpack.c.l.b16 %v217
        %v1290 = vunpack.c.h.b16 %v217
        %v1291 = vunpack.c.l.b16 %v218
        %v1292 = vunpack.c.h.b16 %v218
        %v1293 = vunpack.c.l.b16 %v219
        %v1294 = vunpack.c.h.b16 %v219
        %v1295 = vunpack.c.l.b16 %v220
        %v1296 = vunpack.c.h.b16 %v220
        %v1297 = vunpack.c.l.b16 %v221
        %v1298 = vunpack.c.h.b16 %v221
        %v1299 = vunpack.c.l.b16 %v222
        %v1300 = vunpack.c.h.b16 %v222
        %v1301 = vunpack.c.l.b16 %v223
        %v1302 = vunpack.c.h.b16 %v223
        %v1303 = vunpack.c.l.b16 %v224
        %v1304 = vunpack.c.h.b16 %v224
        %v1305 = vunpack.c.l.b16 %v225
        %v1306 = vunpack.c.h.b16 %v225
        %v1307 = vunpack.c.l.b16 %v226
        %v1308 = vunpack.c.h.b16 %v226
        %v1309 = vunpack.c.l.b16 %v227
        %v1310 = vunpack.c.h.b16 %v227
        %v1311 = vunpack.c.l.b16 %v228
        %v1312 = vunpack.c.h.b16 %v228
        %v1313 = vunpack.c.l.b16 %v229
        %v1314 = vunpack.c.h.b16 %v229
        %v1315 = vunpack.c.l.b16 %v230
        %v1316 = vunpack.c.h.b16 %v230
        %v1317 = vunpack.c.l.b16 %v231
        %v1318 = vunpack.c.h.b16 %v231
        %v1319 = vunpack.c.l.b16 %v232
        %v1320 = vunpack.c.h.b16 %v232
        %v1321 = vunpack.c.l.b16 %v233
        %v1322 = vunpack.c.h.b16 %v233
        %v1323 = vunpack.c.l.b16 %v234
        %v1324 = vunpack.c.h.b16 %v234
        %v1325 = vunpack.c.l.b16 %v235
        %v1326 = vunpack.c.h.b16 %v235
        %v1327 = vunpack.c.l.b16 %v236
        %v1328 = vunpack.c.h.b16 %v236
        %v1329 = vunpack.c.l.b16 %v237
        %v1330 = vunpack.c.h.b16 %v237
        %v1331 = vunpack.c.l.b16 %v238
        %v1332 = vunpack.c.h.b16 %v238
        %v1333 = vunpack.c.l.b16 %v239
        %v1334 = vunpack.c.h.b16 %v239
        %v1335 = vunpack.c.l.b16 %v240
        %v1336 = vunpack.c.h.b16 %v240
        %v1337 = vunpack.c.l.b16 %v241
        %v1338 = vunpack.c.h.b16 %v241
        %v1339 = vunpack.c.l.b16 %v242
        %v1340 = vunpack.c.h.b16 %v242
        %v1341 = vunpack.c.l.b16 %v243
        %v1342 = vunpack.c.h.b16 %v243
        %v1343 = vunpack.c.l.b16 %v244
        %v1344 = vunpack.c.h.b16 %v244
        %v1345 = vunpack.c.l.b16 %v245
        %v1346 = vunpack.c.h.b16 %v245
        %v1347 = vunpack.c.l.b16 %v246
        %v1348 = vunpack.c.h.b16 %v246
        %v1349 = vunpack.c.l.b16 %v247
        %v1350 = vunpack.c.h.b16 %v247
        %v1351 = vunpack.c.l.b16 %v248
        %v1352 = vunpack.c.h.b16 %v248
        %v1353 = vunpack.c.l.b16 %v249
        %v1354 = vunpack.c.h.b16 %v249
        %v1355 = vunpack.c.l.b16 %v250
        %v1356 = vunpack.c.h.b16 %v250
        %v1357 = vunpack.c.l.b16 %v251
        %v1358 = vunpack.c.h.b16 %v251
        %v1359 = vunpack.c.l.b16 %v252
        %v1360 = vunpack.c.h.b16 %v252
        %v1361 = vunpack.c.l.b16 %v253
        %v1362 = vunpack.c.h.b16 %v253
        %v1363 = vunpack.c.l.b16 %v254
        %v1364 = vunpack.c.h.b16 %v254
        %v1365 = vunpack.c.l.b16 %v255
        %v1366 = vunpack.c.h.b16 %v255
        %v1367 = vunpack.c.l.b16 %v256
        %v1368 = vunpack.c.h.b16 %v256
        %v1369 = vunpack.c.l.b16 %v257
        %v1370 = vunpack.c.h.b16 %v257
        %v1371 = vunpack.c.l.b16 %v258
        %v1372 = vunpack.c.h.b16 %v258
        %v1373 = vunpack.c.l.b16 %v259
        %v1374 = vunpack.c.h.b16 %v259
        %v1375 = vunpack.c.l.b16 %v260
        %v1376 = vunpack.c.h.b16 %v260
        %v1377 = vunpack.c.l.b16 %v261
        %v1378 = vunpack.c.h.b16 %v261
        %v1379 = vunpack.c.l.b16 %v262
        %v1380 = vunpack.c.h.b16 %v262
        %v1381 = vunpack.c.l.b16 %v263
        %v1382 = vunpack.c.h.b16 %v263
        %v1383 = vunpack.c.l.b16 %v264
        %v1384 = vunpack.c.h.b16 %v264
        %v1385 = vunpack.c.l.b16 %v265
        %v1386 = vunpack.c.h.b16 %v265
        %v1387 = vunpack.c.l.b16 %v266
        %v1388 = vunpack.c.h.b16 %v266
        %v1389 = vunpack.c.l.b16 %v267
        %v1390 = vunpack.c.h.b16 %v267
        %v1391 = vunpack.c.l.b16 %v268
        %v1392 = vunpack.c.h.b16 %v268
        %v1393 = vunpack.c.l.b16 %v269
        %v1394 = vunpack.c.h.b16 %v269
        %v1395 = vunpack.c.l.b16 %v270
        %v1396 = vunpack.c.h.b16 %v270
        %v1397 = vunpack.c.l.b16 %v271
        %v1398 = vunpack.c.h.b16 %v271
        %v1399 = vunpack.c.l.b16 %v272
        %v1400 = vunpack.c.h.b16 %v272
        %v1401 = vunpack.c.l.b16 %v273
        %v1402 = vunpack.c.h.b16 %v273
        %v1403 = vunpack.c.l.b16 %v274
        %v1404 = vunpack.c.h.b16 %v274
        %v1405 = vunpack.c.l.b16 %v275
        %v1406 = vunpack.c.h.b16 %v275
        %v1407 = vunpack.c.l.b16 %v276
        %v1408 = vunpack.c.h.b16 %v276
        %v1409 = vunpack.c.l.b16 %v277
        %v1410 = vunpack.c.h.b16 %v277
        %v1411 = vunpack.c.l.b16 %v278
        %v1412 = vunpack.c.h.b16 %v278
        %v1413 = vunpack.c.l.b16 %v279
        %v1414 = vunpack.c.h.b16 %v279
        %v1415 = vunpack.c.l.b16 %v280
        %v1416 = vunpack.c.h.b16 %v280
        %v1417 = vunpack.c.l.b16 %v281
        %v1418 = vunpack.c.h.b16 %v281
        %v1419 = vunpack.c.l.b16 %v282
        %v1420 = vunpack.c.h.b16 %v282
        %v1421 = vunpack.c.l.b16 %v283
        %v1422 = vunpack.c.h.b16 %v283
        %v1423 = vunpack.c.l.b16 %v284
        %v1424 = vunpack.c.h.b16 %v284
        %v1425 = vunpack.c.l.b16 %v285
        %v1426 = vunpack.c.h.b16 %v285
        %v1427 = vunpack.c.l.b16 %v286
        %v1428 = vunpack.c.h.b16 %v286
        %v1429 = vunpack.c.l.b16 %v287
        %v1430 = vunpack.c.h.b16 %v287
        %v1431 = vunpack.c.l.b16 %v288
        %v1432 = vunpack.c.h.b16 %v288
        %v1433 = vunpack.c.l.b16 %v289
        %v1434 = vunpack.c.h.b16 %v289
        %v1435 = vunpack.c.l.b16 %v290
        %v1436 = vunpack.c.h.b16 %v290
        %v1437 = vunpack.c.l.b16 %v291
        %v1438 = vunpack.c.h.b16 %v291
        %v1439 = vunpack.c.l.b16 %v292
        %v1440 = vunpack.c.h.b16 %v292
        %v1441 = vunpack.c.l.b16 %v293
        %v1442 = vunpack.c.h.b16 %v293
        %v1443 = vunpack.c.l.b16 %v294
        %v1444 = vunpack.c.h.b16 %v294
        %v1445 = vunpack.c.l.b16 %v295
        %v1446 = vunpack.c.h.b16 %v295
        %v1447 = vunpack.c.l.b16 %v296
        %v1448 = vunpack.c.h.b16 %v296
        %v1449 = vunpack.c.l.b16 %v297
        %v1450 = vunpack.c.h.b16 %v297
        %v1451 = vunpack.c.l.b16 %v298
        %v1452 = vunpack.c.h.b16 %v298
        %v1453 = vunpack.c.l.b16 %v299
        %v1454 = vunpack.c.h.b16 %v299
        %v1455 = vunpack.c.l.b16 %v300
        %v1456 = vunpack.c.h.b16 %v300
        %v1457 = vunpack.c.l.b16 %v301
        %v1458 = vunpack.c.h.b16 %v301
        %v1459 = vunpack.c.l.b16 %v302
        %v1460 = vunpack.c.h.b16 %v302
        %v1461 = vunpack.c.l.b16 %v303
        %v1462 = vunpack.c.h.b16 %v303
        %v1463 = vunpack.c.l.b16 %v304
        %v1464 = vunpack.c.h.b16 %v304
        %v1465 = vunpack.c.l.b16 %v305
        %v1466 = vunpack.c.h.b16 %v305
        %v1467 = vunpack.c.l.b16 %v306
        %v1468 = vunpack.c.h.b16 %v306
        %v1469 = vunpack.c.l.b16 %v307
        %v1470 = vunpack.c.h.b16 %v307
        %v1471 = vunpack.c.l.b16 %v308
        %v1472 = vunpack.c.h.b16 %v308
        %v1473 = vunpack.c.l.b16 %v309
        %v1474 = vunpack.c.h.b16 %v309
        %v1475 = vunpack.c.l.b16 %v310
        %v1476 = vunpack.c.h.b16 %v310
        %v1477 = vunpack.c.l.b16 %v311
        %v1478 = vunpack.c.h.b16 %v311
        %v1479 = vunpack.c.l.b16 %v312
        %v1480 = vunpack.c.h.b16 %v312
        %v1481 = vunpack.c.l.b16 %v313
        %v1482 = vunpack.c.h.b16 %v313
        %v1483 = vunpack.c.l.b16 %v314
        %v1484 = vunpack.c.h.b16 %v314
        %v1485 = vunpack.c.l.b16 %v315
        %v1486 = vunpack.c.h.b16 %v315
        %v1487 = vunpack.c.l.b16 %v316
        %v1488 = vunpack.c.h.b16 %v316
        %v1489 = vunpack.c.l.b16 %v317
        %v1490 = vunpack.c.h.b16 %v317
        %v1491 = vunpack.c.l.b16 %v318
        %v1492 = vunpack.c.h.b16 %v318
        %v1493 = vunpack.c.l.b16 %v319
        %v1494 = vunpack.c.h.b16 %v319
        %v1495 = vunpack.c.l.b16 %v320
        %v1496 = vunpack.c.h.b16 %v320
        %v1497 = vunpack.c.l.b16 %v321
        %v1498 = vunpack.c.h.b16 %v321
        %v1499 = vunpack.c.l.b16 %v322
        %v1500 = vunpack.c.h.b16 %v322
        %v1501 = vunpack.c.l.b16 %v323
        %v1502 = vunpack.c.h.b16 %v323
        %v1503 = vunpack.c.l.b16 %v324
        %v1504 = vunpack.c.h.b16 %v324
        %v1505 = vunpack.c.l.b16 %v325
        %v1506 = vunpack.c.h.b16 %v325
        %v1507 = vunpack.c.l.b16 %v326
        %v1508 = vunpack.c.h.b16 %v326
        %v1509 = vunpack.c.l.b16 %v327
        %v1510 = vunpack.c.h.b16 %v327
        %v1511 = vunpack.c.l.b16 %v328
        %v1512 = vunpack.c.h.b16 %v328
        %v1513 = vunpack.c.l.b16 %v329
        %v1514 = vunpack.c.h.b16 %v329
        %v1515 = vunpack.c.l.b16 %v330
        %v1516 = vunpack.c.h.b16 %v330
        %v1517 = vunpack.c.l.b16 %v331
        %v1518 = vunpack.c.h.b16 %v331
        %v1519 = vunpack.c.l.b16 %v332
        %v1520 = vunpack.c.h.b16 %v332
        %v1521 = vunpack.c.l.b16 %v333
        %v1522 = vunpack.c.h.b16 %v333
        %v1523 = vunpack.c.l.b16 %v334
        %v1524 = vunpack.c.h.b16 %v334
        %v1525 = vunpack.c.l.b16 %v335
        %v1526 = vunpack.c.h.b16 %v335
        %v1527 = vunpack.c.l.b16 %v336
        %v1528 = vunpack.c.h.b16 %v336
        %v1529 = vunpack.c.l.b16 %v337
        %v1530 = vunpack.c.h.b16 %v337
        %v1531 = vunpack.c.l.b16 %v338
        %v1532 = vunpack.c.h.b16 %v338
        %v1533 = vunpack.c.l.b16 %v339
        %v1534 = vunpack.c.h.b16 %v339
        %v1535 = vunpack.c.l.b16 %v340
        %v1536 = vunpack.c.h.b16 %v340
        %v1537 = vunpack.c.l.b16 %v341
        %v1538 = vunpack.c.h.b16 %v341
        %v1539 = vunpack.c.l.b16 %v342
        %v1540 = vunpack.c.h.b16 %v342
        %v1541 = vunpack.c.l.b16 %v343
        %v1542 = vunpack.c.h.b16 %v343
        %v1543 = vunpack.c.l.b16 %v344
        %v1544 = vunpack.c.h.b16 %v344
        %v1545 = vunpack.c.l.b16 %v345
        %v1546 = vunpack.c.h.b16 %v345
        %v1547 = vunpack.c.l.b16 %v346
        %v1548 = vunpack.c.h.b16 %v346
        %v1549 = vunpack.c.l.b16 %v347
        %v1550 = vunpack.c.h.b16 %v347
        %v1551 = vunpack.c.l.b16 %v348
        %v1552 = vunpack.c.h.b16 %v348
        %v1553 = vunpack.c.l.b16 %v349
        %v1554 = vunpack.c.h.b16 %v349
        %v1555 = vunpack.c.l.b16 %v350
        %v1556 = vunpack.c.h.b16 %v350
        %v1557 = vunpack.c.l.b16 %v351
        %v1558 = vunpack.c.h.b16 %v351
        %v1559 = vunpack.c.l.b16 %v352
        %v1560 = vunpack.c.h.b16 %v352
        %v1561 = vunpack.c.l.b16 %v353
        %v1562 = vunpack.c.h.b16 %v353
        %v1563 = vunpack.c.l.b16 %v354
        %v1564 = vunpack.c.h.b16 %v354
        %v1565 = vunpack.c.l.b16 %v355
        %v1566 = vunpack.c.h.b16 %v355
        %v1567 = vunpack.c.l.b16 %v356
        %v1568 = vunpack.c.h.b16 %v356
        %v1569 = vunpack.c.l.b16 %v357
        %v1570 = vunpack.c.h.b16 %v357
        %v1571 = vunpack.c.l.b16 %v358
        %v1572 = vunpack.c.h.b16 %v358
        %v1573 = vunpack.c.l.b16 %v359
        %v1574 = vunpack.c.h.b16 %v359
        %v1575 = vunpack.c.l.b16 %v360
        %v1576 = vunpack.c.h.b16 %v360
        %v1577 = vunpack.c.l.b16 %v361
        %v1578 = vunpack.c.h.b16 %v361
        %v1579 = vunpack.c.l.b16 %v362
        %v1580 = vunpack.c.h.b16 %v362
        %v1581 = vunpack.c.l.b16 %v363
        %v1582 = vunpack.c.h.b16 %v363
        %v1583 = vunpack.c.l.b16 %v364
        %v1584 = vunpack.c.h.b16 %v364
        %v1585 = vunpack.c.l.b16 %v365
        %v1586 = vunpack.c.h.b16 %v365
        %v1587 = vunpack.c.l.b16 %v366
        %v1588 = vunpack.c.h.b16 %v366
        %v1589 = vunpack.c.l.b16 %v367
        %v1590 = vunpack.c.h.b16 %v367
        %v1591 = vunpack.c.l.b16 %v368
        %v1592 = vunpack.c.h.b16 %v368
        %v1593 = vunpack.c.l.b16 %v369
        %v1594 = vunpack.c.h.b16 %v369
        %v1595 = vunpack.c.l.b16 %v370
        %v1596 = vunpack.c.h.b16 %v370
        %v1597 = vunpack.c.l.b16 %v371
        %v1598 = vunpack.c.h.b16 %v371
        %v1599 = vunpack.c.l.b16 %v372
        %v1600 = vunpack.c.h.b16 %v372
        %v1601 = vunpack.c.l.b16 %v373
        %v1602 = vunpack.c.h.b16 %v373
        %v1603 = vunpack.c.l.b16 %v374
        %v1604 = vunpack.c.h.b16 %v374
        %v1605 = vunpack.c.l.b16 %v375
        %v1606 = vunpack.c.h.b16 %v375
        %v1607 = vunpack.c.l.b16 %v376
        %v1608 = vunpack.c.h.b16 %v376
        %v1609 = vunpack.c.l.b16 %v377
        %v1610 = vunpack.c.h.b16 %v377
        %v1611 = vunpack.c.l.b16 %v378
        %v1612 = vunpack.c.h.b16 %v378
        %v1613 = vunpack.c.l.b16 %v379
        %v1614 = vunpack.c.h.b16 %v379
        %v1615 = vunpack.c.l.b16 %v380
        %v1616 = vunpack.c.h.b16 %v380
        %v1617 = vunpack.c.l.b16 %v381
        %v1618 = vunpack.c.h.b16 %v381
        %v1619 = vunpack.c.l.b16 %v382
        %v1620 = vunpack.c.h.b16 %v382
        %v1621 = vunpack.c.l.b16 %v383
        %v1622 = vunpack.c.h.b16 %v383
        %v1623 = vunpack.c.l.b16 %v384
        %v1624 = vunpack.c.h.b16 %v384
        %v1625 = vunpack.c.l.b16 %v385
        %v1626 = vunpack.c.h.b16 %v385
        %v1627 = vunpack.c.l.b16 %v386
        %v1628 = vunpack.c.h.b16 %v386
        %v1629 = vunpack.c.l.b16 %v387
        %v1630 = vunpack.c.h.b16 %v387
        %v1631 = vunpack.c.l.b16 %v388
        %v1632 = vunpack.c.h.b16 %v388
        %v1633 = vunpack.c.l.b16 %v389
        %v1634 = vunpack.c.h.b16 %v389
        %v1635 = vunpack.c.l.b16 %v390
        %v1636 = vunpack.c.h.b16 %v390
        %v1637 = vunpack.c.l.b16 %v391
        %v1638 = vunpack.c.h.b16 %v391
        %v1639 = vunpack.c.l.b16 %v392
        %v1640 = vunpack.c.h.b16 %v392
        %v1641 = vunpack.c.l.b16 %v393
        %v1642 = vunpack.c.h.b16 %v393
        %v1643 = vunpack.c.l.b16 %v394
        %v1644 = vunpack.c.h.b16 %v394
        %v1645 = vunpack.c.l.b16 %v395
        %v1646 = vunpack.c.h.b16 %v395
        %v1647 = vunpack.c.l.b16 %v396
        %v1648 = vunpack.c.h.b16 %v396
        %v1649 = vunpack.c.l.b16 %v397
        %v1650 = vunpack.c.h.b16 %v397
        %v1651 = vunpack.c.l.b16 %v398
        %v1652 = vunpack.c.h.b16 %v398
        %v1653 = vunpack.c.l.b16 %v399
        %v1654 = vunpack.c.h.b16 %v399
        %v1655 = vunpack.c.l.b16 %v400
        %v1656 = vunpack.c.h.b16 %v400
        %v1657 = vunpack.c.l.b16 %v401
        %v1658 = vunpack.c.h.b16 %v401
        %v1659 = vunpack.c.l.b16 %v402
        %v1660 = vunpack.c.h.b16 %v402
        %v1661 = vunpack.c.l.b16 %v403
        %v1662 = vunpack.c.h.b16 %v403
        %v1663 = vunpack.c.l.b16 %v404
        %v1664 = vunpack.c.h.b16 %v404
        %v1665 = vunpack.c.l.b16 %v405
        %v1666 = vunpack.c.h.b16 %v405
        %v1667 = vunpack.c.l.b16 %v406
        %v1668 = vunpack.c.h.b16 %v406
        %v1669 = vunpack.c.l.b16 %v407
        %v1670 = vunpack.c.h.b16 %v407
        %v1671 = vunpack.c.l.b16 %v408
        %v1672 = vunpack.c.h.b16 %v408
        %v1673 = vunpack.c.l.b16 %v409
        %v1674 = vunpack.c.h.b16 %v409
        %v1675 = vunpack.c.l.b16 %v410
        %v1676 = vunpack.c.h.b16 %v410
        %v1677 = vunpack.c.l.b16 %v411
        %v1678 = vunpack.c.h.b16 %v411
        %v1679 = vunpack.c.l.b16 %v412
        %v1680 = vunpack.c.h.b16 %v412
        %v1681 = vunpack.c.l.b16 %v413
        %v1682 = vunpack.c.h.b16 %v413
        %v1683 = vunpack.c.l.b16 %v414
        %v1684 = vunpack.c.h.b16 %v414
        %v1685 = vunpack.c.l.b16 %v415
        %v1686 = vunpack.c.h.b16 %v415
        %v1687 = vunpack.c.l.b16 %v416
        %v1688 = vunpack.c.h.b16 %v416
        %v1689 = vunpack.c.l.b16 %v417
        %v1690 = vunpack.c.h.b16 %v417
        %v1691 = vunpack.c.l.b16 %v418
        %v1692 = vunpack.c.h.b16 %v418
        %v1693 = vunpack.c.l.b16 %v419
        %v1694 = vunpack.c.h.b16 %v419
        %v1695 = vunpack.c.l.b16 %v420
        %v1696 = vunpack.c.h.b16 %v420
        %v1697 = vunpack.c.l.b16 %v421
        %v1698 = vunpack.c.h.b16 %v421
        %v1699 = vunpack.c.l.b16 %v422
        %v1700 = vunpack.c.h.b16 %v422
        %v1701 = vunpack.c.l.b16 %v423
        %v1702 = vunpack.c.h.b16 %v423
        %v1703 = vunpack.c.l.b16 %v424
        %v1704 = vunpack.c.h.b16 %v424
        %v1705 = vunpack.c.l.b16 %v425
        %v1706 = vunpack.c.h.b16 %v425
        %v1707 = vunpack.c.l.b16 %v426
        %v1708 = vunpack.c.h.b16 %v426
        %v1709 = vunpack.c.l.b16 %v427
        %v1710 = vunpack.c.h.b16 %v427
        %v1711 = vunpack.c.l.b16 %v428
        %v1712 = vunpack.c.h.b16 %v428
        %v1713 = vunpack.c.l.b16 %v429
        %v1714 = vunpack.c.h.b16 %v429
        %v1715 = vunpack.c.l.b16 %v430
        %v1716 = vunpack.c.h.b16 %v430
        %v1717 = vunpack.c.l.b16 %v431
        %v1718 = vunpack.c.h.b16 %v431
        %v1719 = vunpack.c.l.b16 %v432
        %v1720 = vunpack.c.h.b16 %v432
        %v1721 = vunpack.c.l.b16 %v433
        %v1722 = vunpack.c.h.b16 %v433
        %v1723 = vunpack.c.l.b16 %v434
        %v1724 = vunpack.c.h.b16 %v434
        %v1725 = vunpack.c.l.b16 %v435
        %v1726 = vunpack.c.h.b16 %v435
        %v1727 = vunpack.c.l.b16 %v436
        %v1728 = vunpack.c.h.b16 %v436
        %v1729 = vunpack.c.l.b16 %v437
        %v1730 = vunpack.c.h.b16 %v437
        %v1731 = vunpack.c.l.b16 %v438
        %v1732 = vunpack.c.h.b16 %v438
        %v1733 = vunpack.c.l.b16 %v439
        %v1734 = vunpack.c.h.b16 %v439
        %v1735 = vunpack.c.l.b16 %v440
        %v1736 = vunpack.c.h.b16 %v440
        %v1737 = vpack.c.b16 %v1257, %v1225
        %v1738 = vpack.c.b16 %v1258, %v1226
        %v1739 = vpack.c.b16 %v1259, %v1227
        %v1740 = vpack.c.b16 %v1260, %v1228
        %v1741 = vpack.c.b16 %v1261, %v1229
        %v1742 = vpack.c.b16 %v1262, %v1230
        %v1743 = vpack.c.b16 %v1263, %v1231
        %v1744 = vpack.c.b16 %v1264, %v1232
        %v1745 = vpack.c.b16 %v1265, %v1233
        %v1746 = vpack.c.b16 %v1266, %v1234
        %v1747 = vpack.c.b16 %v1267, %v1235
        %v1748 = vpack.c.b16 %v1268, %v1236
        %v1749 = vpack.c.b16 %v1269, %v1237
        %v1750 = vpack.c.b16 %v1270, %v1238
        %v1751 = vpack.c.b16 %v1271, %v1239
        %v1752 = vpack.c.b16 %v1272, %v1240
        %v1753 = vpack.c.b16 %v1273, %v1241
        %v1754 = vpack.c.b16 %v1274, %v1242
        %v1755 = vpack.c.b16 %v1275, %v1243
        %v1756 = vpack.c.b16 %v1276, %v1244
        %v1757 = vpack.c.b16 %v1277, %v1245
        %v1758 = vpack.c.b16 %v1278, %v1246
        %v1759 = vpack.c.b16 %v1279, %v1247
        %v1760 = vpack.c.b16 %v1280, %v1248
        %v1761 = vpack.c.b16 %v1281, %v1249
        %v1762 = vpack.c.b16 %v1282, %v1250
        %v1763 = vpack.c.b16 %v1283, %v1251
        %v1764 = vpack.c.b16 %v1284, %v1252
        %v1765 = vpack.c.b16 %v1285, %v1253
        %v1766 = vpack.c.b16 %v1286, %v1254
        %v1767 = vpack.c.b16 %v1287, %v1255
        %v1768 = vpack.c.b16 %v1288, %v1256
        %v1769 = vpack.c.b16 %v1321, %v1289
        %v1770 = vpack.c.b16 %v1322, %v1290
        %v1771 = vpack.c.b16 %v1323, %v1291
        %v1772 = vpack.c.b16 %v1324, %v1292
        %v1773 = vpack.c.b16 %v1325, %v1293
        %v1774 = vpack.c.b16 %v1326, %v1294
        %v1775 = vpack.c.b16 %v1327, %v1295
        %v1776 = vpack.c.b16 %v1328, %v1296
        %v1777 = vpack.c.b16 %v1329, %v1297
        %v1778 = vpack.c.b16 %v1330, %v1298
        %v1779 = vpack.c.b16 %v1331, %v1299
        %v1780 = vpack.c.b16 %v1332, %v1300
        %v1781 = vpack.c.b16 %v1333, %v1301
        %v1782 = vpack.c.b16 %v1334, %v1302
        %v1783 = vpack.c.b16 %v1335, %v1303
        %v1784 = vpack.c.b16 %v1336, %v1304
        %v1785 = vpack.c.b16 %v1337, %v1305
        %v1786 = vpack.c.b16 %v1338, %v1306
        %v1787 = vpack.c.b16 %v1339, %v1307
        %v1788 = vpack.c.b16 %v1340, %v1308
        %v1789 = vpack.c.b16 %v1341, %v1309
        %v1790 = vpack.c.b16 %v1342, %v1310
        %v1791 = vpack.c.b16 %v1343, %v1311
        %v1792 = vpack.c.b16 %v1344, %v1312
        %v1793 = vpack.c.b16 %v1345, %v1313
        %v1794 = vpack.c.b16 %v1346, %v1314
        %v1795 = vpack.c.b16 %v1347, %v1315
        %v1796 = vpack.c.b16 %v1348, %v1316
        %v1797 = vpack.c.b16 %v1349, %v1317
        %v1798 = vpack.c.b16 %v1350, %v1318
        %v1799 = vpack.c.b16 %v1351, %v1319
        %v1800 = vpack.c.b16 %v1352, %v1320
        %v1801 = vpack.c.b16 %v1385, %v1353
        %v1802 = vpack.c.b16 %v1386, %v1354
        %v1803 = vpack.c.b16 %v1387, %v1355
        %v1804 = vpack.c.b16 %v1388, %v1356
        %v1805 = vpack.c.b16 %v1389, %v1357
        %v1806 = vpack.c.b16 %v1390, %v1358
        %v1807 = vpack.c.b16 %v1391, %v1359
        %v1808 = vpack.c.b16 %v1392, %v1360
        %v1809 = vpack.c.b16 %v1393, %v1361
        %v1810 = vpack.c.b16 %v1394, %v1362
        %v1811 = vpack.c.b16 %v1395, %v1363
        %v1812 = vpack.c.b16 %v1396, %v1364
        %v1813 = vpack.c.b16 %v1397, %v1365
        %v1814 = vpack.c.b16 %v1398, %v1366
        %v1815 = vpack.c.b16 %v1399, %v1367
        %v1816 = vpack.c.b16 %v1400, %v1368
        %v1817 = vpack.c.b16 %v1401, %v1369
        %v1818 = vpack.c.b16 %v1402, %v1370
        %v1819 = vpack.c.b16 %v1403, %v1371
        %v1820 = vpack.c.b16 %v1404, %v1372
        %v1821 = vpack.c.b16 %v1405, %v1373
        %v1822 = vpack.c.b16 %v1406, %v1374
        %v1823 = vpack.c.b16 %v1407, %v1375
        %v1824 = vpack.c.b16 %v1408, %v1376
        %v1825 = vpack.c.b16 %v1409, %v1377
        %v1826 = vpack.c.b16 %v1410, %v1378
        %v1827 = vpack.c.b16 %v1411, %v1379
        %v1828 = vpack.c.b16 %v1412, %v1380
        %v1829 = vpack.c.b16 %v1413, %v1381
        %v1830 = vpack.c.b16 %v1414, %v1382
        %v1831 = vpack.c.b16 %v1415, %v1383
        %v1832 = vpack.c.b16 %v1416, %v1384
        %v1833 = vpack.c.b16 %v1449, %v1417
        %v1834 = vpack.c.b16 %v1450, %v1418
        %v1835 = vpack.c.b16 %v1451, %v1419
        %v1836 = vpack.c.b16 %v1452, %v1420
        %v1837 = vpack.c.b16 %v1453, %v1421
        %v1838 = vpack.c.b16 %v1454, %v1422
        %v1839 = vpack.c.b16 %v1455, %v1423
        %v1840 = vpack.c.b16 %v1456, %v1424
        %v1841 = vpack.c.b16 %v1457, %v1425
        %v1842 = vpack.c.b16 %v1458, %v1426
        %v1843 = vpack.c.b16 %v1459, %v1427
        %v1844 = vpack.c.b16 %v1460, %v1428
        %v1845 = vpack.c.b16 %v1461, %v1429
        %v1846 = vpack.c.b16 %v1462, %v1430
        %v1847 = vpack.c.b16 %v1463, %v1431
        %v1848 = vpack.c.b16 %v1464, %v1432
        %v1849 = vpack.c.b16 %v1465, %v1433
        %v1850 = vpack.c.b16 %v1466, %v1434
        %v1851 = vpack.c.b16 %v1467, %v1435
        %v1852 = vpack.c.b16 %v1468, %v1436
        %v1853 = vpack.c.b16 %v1469, %v1437
        %v1854 = vpack.c.b16 %v1470, %v1438
        %v1855 = vpack.c.b16 %v1471, %v1439
        %v1856 = vpack.c.b16 %v1472, %v1440
        %v1857 = vpack.c.b16 %v1473, %v1441
        %v1858 = vpack.c.b16 %v1474, %v1442
        %v1859 = vpack.c.b16 %v1475, %v1443
        %v1860 = vpack.c.b16 %v1476, %v1444
        %v1861 = vpack.c.b16 %v1477, %v1445
        %v1862 = vpack.c.b16 %v1478, %v1446
        %v1863 = vpack.c.b16 %v1479, %v1447
        %v1864 = vpack.c.b16 %v1480, %v1448
        %v1865 = vpack.c.b16 %v1513, %v1481
        %v1866 = vpack.c.b16 %v1514, %v1482
        %v1867 = vpack.c.b16 %v1515, %v1483
        %v1868 = vpack.c.b16 %v1516, %v1484
        %v1869 = vpack.c.b16 %v1517, %v1485
        %v1870 = vpack.c.b16 %v1518, %v1486
        %v1871 = vpack.c.b16 %v1519, %v1487
        %v1872 = vpack.c.b16 %v1520, %v1488
        %v1873 = vpack.c.b16 %v1521, %v1489
        %v1874 = vpack.c.b16 %v1522, %v1490
        %v1875 = vpack.c.b16 %v1523, %v1491
        %v1876 = vpack.c.b16 %v1524, %v1492
        %v1877 = vpack.c.b16 %v1525, %v1493
        %v1878 = vpack.c.b16 %v1526, %v1494
        %v1879 = vpack.c.b16 %v1527, %v1495
        %v1880 = vpack.c.b16 %v1528, %v1496
        %v1881 = vpack.c.b16 %v1529, %v1497
        %v1882 = vpack.c.b16 %v1530, %v1498
        %v1883 = vpack.c.b16 %v1531, %v1499
        %v1884 = vpack.c.b16 %v1532, %v1500
        %v1885 = vpack.c.b16 %v1533, %v1501
        %v1886 = vpack.c.b16 %v1534, %v1502
        %v1887 = vpack.c.b16 %v1535, %v1503
        %v1888 = vpack.c.b16 %v1536, %v1504
        %v1889 = vpack.c.b16 %v1537, %v1505
        %v1890 = vpack.c.b16 %v1538, %v1506
        %v1891 = vpack.c.b16 %v1539, %v1507
        %v1892 = vpack.c.b16 %v1540, %v1508
        %v1893 = vpack.c.b16 %v1541, %v1509
        %v1894 = vpack.c.b16 %v1542, %v1510
        %v1895 = vpack.c.b16 %v1543, %v1511
        %v1896 = vpack.c.b16 %v1544, %v1512
        %v1897 = vpack.c.b16 %v1577, %v1545
        %v1898 = vpack.c.b16 %v1578, %v1546
        %v1899 = vpack.c.b16 %v1579, %v1547
        %v1900 = vpack.c.b16 %v1580, %v1548
        %v1901 = vpack.c.b16 %v1581, %v1549
        %v1902 = vpack.c.b16 %v1582, %v1550
        %v1903 = vpack.c.b16 %v1583, %v1551
        %v1904 = vpack.c.b16 %v1584, %v1552
        %v1905 = vpack.c.b16 %v1585, %v1553
        %v1906 = vpack.c.b16 %v1586, %v1554
        %v1907 = vpack.c.b16 %v1587, %v1555
        %v1908 = vpack.c.b16 %v1588, %v1556
        %v1909 = vpack.c.b16 %v1589, %v1557
        %v1910 = vpack.c.b16 %v1590, %v1558
        %v1911 = vpack.c.b16 %v1591, %v1559
        %v1912 = vpack.c.b16 %v1592, %v1560
        %v1913 = vpack.c.b16 %v1593, %v1561
        %v1914 = vpack.c.b16 %v1594, %v1562
        %v1915 = vpack.c.b16 %v1595, %v1563
        %v1916 = vpack.c.b16 %v1596, %v1564
        %v1917 = vpack.c.b16 %v1597, %v1565
        %v1918 = vpack.c.b16 %v1598, %v1566
        %v1919 = vpack.c.b16 %v1599, %v1567
        %v1920 = vpack.c.b16 %v1600, %v1568
        %v1921 = vpack.c.b16 %v1601, %v1569
        %v1922 = vpack.c.b16 %v1602, %v1570
        %v1923 = vpack.c.b16 %v1603, %v1571
        %v1924 = vpack.c.b16 %v1604, %v1572
        %v1925 = vpack.c.b16 %v1605, %v1573
        %v1926 = vpack.c.b16 %v1606, %v1574
        %v1927 = vpack.c.b16 %v1607, %v1575
        %v1928 = vpack.c.b16 %v1608, %v1576
        %v1929 = vpack.c.b16 %v1641, %v1609
        %v1930 = vpack.c.b16 %v1642, %v1610
        %v1931 = vpack.c.b16 %v1643, %v1611
        %v1932 = vpack.c.b16 %v1644, %v1612
        %v1933 = vpack.c.b16 %v1645, %v1613
        %v1934 = vpack.c.b16 %v1646, %v1614
        %v1935 = vpack.c.b16 %v1647, %v1615
        %v1936 = vpack.c.b16 %v1648, %v1616
        %v1937 = vpack.c.b16 %v1649, %v1617
        %v1938 = vpack.c.b16 %v1650, %v1618
        %v1939 = vpack.c.b16 %v1651, %v1619
        %v1940 = vpack.c.b16 %v1652, %v1620
        %v1941 = vpack.c.b16 %v1653, %v1621
        %v1942 = vpack.c.b16 %v1654, %v1622
        %v1943 = vpack.c.b16 %v1655, %v1623
        %v1944 = vpack.c.b16 %v1656, %v1624
        %v1945 = vpack.c.b16 %v1657, %v1625
        %v1946 = vpack.c.b16 %v1658, %v1626
        %v1947 = vpack.c.b16 %v1659, %v1627
        %v1948 = vpack.c.b16 %v1660, %v1628
        %v1949 = vpack.c.b16 %v1661, %v1629
        %v1950 = vpack.c.b16 %v1662, %v1630
        %v1951 = vpack.c.b16 %v1663, %v1631
        %v1952 = vpack.c.b16 %v1664, %v1632
        %v1953 = vpack.c.b16 %v1665, %v1633
        %v1954 = vpack.c.b16 %v1666, %v1634
        %v1955 = vpack.c.b16 %v1667, %v1635
        %v1956 = vpack.c.b16 %v1668, %v1636
        %v1957 = vpack.c.b16 %v1669, %v1637
        %v1958 = vpack.c.b16 %v1670, %v1638
        %v1959 = vpack.c.b16 %v1671, %v1639
        %v1960 = vpack.c.b16 %v1672, %v1640
        %v1961 = vpack.c.b16 %v1705, %v1673
        %v1962 = vpack.c.b16 %v1706, %v1674
        %v1963 = vpack.c.b16 %v1707, %v1675
        %v1964 = vpack.c.b16 %v1708, %v1676
        %v1965 = vpack.c.b16 %v1709, %v1677
        %v1966 = vpack.c.b16 %v1710, %v1678
        %v1967 = vpack.c.b16 %v1711, %v1679
        %v1968 = vpack.c.b16 %v1712, %v1680
        %v1969 = vpack.c.b16 %v1713, %v1681
        %v1970 = vpack.c.b16 %v1714, %v1682
        %v1971 = vpack.c.b16 %v1715, %v1683
        %v1972 = vpack.c.b16 %v1716, %v1684
        %v1973 = vpack.c.b16 %v1717, %v1685
        %v1974 = vpack.c.b16 %v1718, %v1686
        %v1975 = vpack.c.b16 %v1719, %v1687
        %v1976 = vpack.c.b16 %v1720, %v1688
        %v1977 = vpack.c.b16 %v1721, %v1689
        %v1978 = vpack.c.b16 %v1722, %v1690
        %v1979 = vpack.c.b16 %v1723, %v1691
        %v1980 = vpack.c.b16 %v1724, %v1692
        %v1981 = vpack.c.b16 %v1725, %v1693
        %v1982 = vpack.c.b16 %v1726, %v1694
        %v1983 = vpack.c.b16 %v1727, %v1695
        %v1984 = vpack.c.b16 %v1728, %v1696
        %v1985 = vpack.c.b16 %v1729, %v1697
        %v1986 = vpack.c.b16 %v1730, %v1698
        %v1987 = vpack.c.b16 %v1731, %v1699
        %v1988 = vpack.c.b16 %v1732, %v1700
        %v1989 = vpack.c.b16 %v1733, %v1701
        %v1990 = vpack.c.b16 %v1734, %v1702
        %v1991 = vpack.c.b16 %v1735, %v1703
        %v1992 = vpack.c.b16 %v1736, %v1704
        %v2761 = vunpack.c.l.b16 %v441
        %v2762 = vunpack.c.l.b16 %v442
        %v2763 = vunpack.c.l.b16 %v443
        %v2764 = vunpack.c.l.b16 %v444
        %v2765 = vunpack.c.l.b16 %v445
        %v2766 = vunpack.c.l.b16 %v446
        %v2767 = vunpack.c.l.b16 %v447
        %v2768 = vunpack.c.l.b16 %v448
        %v2769 = vunpack.c.l.b16 %v449
        %v2770 = vunpack.c.l.b16 %v450
        %v2771 = vunpack.c.l.b16 %v451
        %v2772 = vunpack.c.l.b16 %v452
        %v2773 = vunpack.c.l.b16 %v453
        %v2774 = vunpack.c.l.b16 %v454
        %v2775 = vunpack.c.l.b16 %v455
        %v2776 = vunpack.c.l.b16 %v456
        %v2777 = vunpack.c.l.b16 %v457
        %v2778 = vunpack.c.l.b16 %v458
        %v2779 = vunpack.c.l.b16 %v459
        %v2780 = vunpack.c.l.b16 %v460
        %v2781 = vunpack.c.l.b16 %v461
        %v2782 = vunpack.c.l.b16 %v462
        %v2783 = vunpack.c.l.b16 %v463
        %v2784 = vunpack.c.l.b16 %v464
        %v2785 = vunpack.c.l.b16 %v465
        %v2786 = vunpack.c.l.b16 %v466
        %v2787 = vunpack.c.l.b16 %v467
        %v2788 = vunpack.c.l.b16 %v468
        %v2789 = vunpack.c.l.b16 %v469
        %v2790 = vunpack.c.l.b16 %v470
        %v2791 = vunpack.c.l.b16 %v471
        %v2792 = vunpack.c.l.b16 %v472
        %v2793 = vunpack.c.l.b16 %v473
        %v2794 = vunpack.c.l.b16 %v474
        %v2795 = vunpack.c.l.b16 %v475
        %v2796 = vunpack.c.l.b16 %v476
        %v2797 = vunpack.c.l.b16 %v477
        %v2798 = vunpack.c.l.b16 %v478
        %v2799 = vunpack.c.l.b16 %v479
        %v2800 = vunpack.c.l.b16 %v480
        %v2801 = vunpack.c.l.b16 %v481
        %v2802 = vunpack.c.l.b16 %v482
        %v2803 = vunpack.c.l.b16 %v483
        %v2804 = vunpack.c.l.b16 %v484
        %v2805 = vunpack.c.l.b16 %v485
        %v2806 = vunpack.c.l.b16 %v486
        %v2807 = vunpack.c.l.b16 %v487
        %v2808 = vunpack.c.l.b16 %v488
        %v2809 = vunpack.c.l.b16 %v489
        %v2810 = vunpack.c.l.b16 %v490
        %v2811 = vunpack.c.l.b16 %v491
        %v2812 = vunpack.c.l.b16 %v492
        %v2813 = vunpack.c.l.b16 %v493
        %v2814 = vunpack.c.l.b16 %v494
        %v2815 = vunpack.c.l.b16 %v495
        %v2816 = vunpack.c.l.b16 %v496
        %v2817 = vunpack.c.l.b16 %v497
        %v2818 = vunpack.c.l.b16 %v498
        %v2819 = vunpack.c.l.b16 %v499
        %v2820 = vunpack.c.l.b16 %v500
        %v2821 = vunpack.c.l.b16 %v501
        %v2822 = vunpack.c.l.b16 %v502
        %v2823 = vunpack.c.l.b16 %v503
        %v2824 = vunpack.c.l.b16 %v504
        %v2825 = vunpack.c.l.b16 %v505
        %v2826 = vunpack.c.l.b16 %v506
        %v2827 = vunpack.c.l.b16 %v507
        %v2828 = vunpack.c.l.b16 %v508
        %v2829 = vunpack.c.l.b16 %v509
        %v2830 = vunpack.c.l.b16 %v510
        %v2831 = vunpack.c.l.b16 %v511
        %v2832 = vunpack.c.l.b16 %v512
        %v2833 = vunpack.c.l.b16 %v513
        %v2834 = vunpack.c.l.b16 %v514
        %v2835 = vunpack.c.l.b16 %v515
        %v2836 = vunpack.c.l.b16 %v516
        %v2837 = vunpack.c.l.b16 %v517
        %v2838 = vunpack.c.l.b16 %v518
        %v2839 = vunpack.c.l.b16 %v519
        %v2840 = vunpack.c.l.b16 %v520
        %v2841 = vunpack.c.l.b16 %v521
        %v2842 = vunpack.c.l.b16 %v522
        %v2843 = vunpack.c.l.b16 %v523
        %v2844 = vunpack.c.l.b16 %v524
        %v2845 = vunpack.c.l.b16 %v525
        %v2846 = vunpack.c.l.b16 %v526
        %v2847 = vunpack.c.l.b16 %v527
        %v2848 = vunpack.c.l.b16 %v528
        %v2849 = vunpack.c.l.b16 %v529
        %v2850 = vunpack.c.l.b16 %v530
        %v2851 = vunpack.c.l.b16 %v531
        %v2852 = vunpack.c.l.b16 %v532
        %v2853 = vunpack.c.l.b16 %v533
        %v2854 = vunpack.c.l.b16 %v534
        %v2855 = vunpack.c.l.b16 %v535
        %v2856 = vunpack.c.l.b16 %v536
        %v2857 = vunpack.c.l.b16 %v537
        %v2858 = vunpack.c.l.b16 %v538
        %v2859 = vunpack.c.l.b16 %v539
        %v2860 = vunpack.c.l.b16 %v540
        %v2861 = vunpack.c.l.b16 %v541
        %v2862 = vunpack.c.l.b16 %v542
        %v2863 = vunpack.c.l.b16 %v543
        %v2864 = vunpack.c.l.b16 %v544
        %v2865 = vunpack.c.l.b16 %v545
        %v2866 = vunpack.c.l.b16 %v546
        %v2867 = vunpack.c.l.b16 %v547
        %v2868 = vunpack.c.l.b16 %v548
        %v2869 = vunpack.c.l.b16 %v549
        %v2870 = vunpack.c.l.b16 %v550
        %v2871 = vunpack.c.l.b16 %v551
        %v2872 = vunpack.c.l.b16 %v552
        %v2873 = vunpack.c.l.b16 %v553
        %v2874 = vunpack.c.l.b16 %v554
        %v2875 = vunpack.c.l.b16 %v555
        %v2876 = vunpack.c.l.b16 %v556
        %v2877 = vunpack.c.l.b16 %v557
        %v2878 = vunpack.c.l.b16 %v558
        %v2879 = vunpack.c.l.b16 %v559
        %v2880 = vunpack.c.l.b16 %v560
        %v2881 = vunpack.c.l.b16 %v561
        %v2882 = vunpack.c.l.b16 %v562
        %v2883 = vunpack.c.l.b16 %v563
        %v2884 = vunpack.c.l.b16 %v564
        %v2885 = vunpack.c.l.b16 %v565
        %v2886 = vunpack.c.l.b16 %v566
        %v2887 = vunpack.c.l.b16 %v567
        %v2888 = vunpack.c.l.b16 %v568
        %v2889 = vunpack.c.l.b16 %v569
        %v2890 = vunpack.c.l.b16 %v570
        %v2891 = vunpack.c.l.b16 %v571
        %v2892 = vunpack.c.l.b16 %v572
        %v2893 = vunpack.c.l.b16 %v573
        %v2894 = vunpack.c.l.b16 %v574
        %v2895 = vunpack.c.l.b16 %v575
        %v2896 = vunpack.c.l.b16 %v576
        %v2897 = vunpack.c.l.b16 %v577
        %v2898 = vunpack.c.l.b16 %v578
        %v2899 = vunpack.c.l.b16 %v579
        %v2900 = vunpack.c.l.b16 %v580
        %v2901 = vunpack.c.l.b16 %v581
        %v2902 = vunpack.c.l.b16 %v582
        %v2903 = vunpack.c.l.b16 %v583
        %v2904 = vunpack.c.l.b16 %v584
        %v2905 = vunpack.c.l.b16 %v585
        %v2906 = vunpack.c.l.b16 %v586
        %v2907 = vunpack.c.l.b16 %v587
        %v2908 = vunpack.c.l.b16 %v588
        %v2909 = vunpack.c.l.b16 %v589
        %v2910 = vunpack.c.l.b16 %v590
        %v2911 = vunpack.c.l.b16 %v591
        %v2912 = vunpack.c.l.b16 %v592
        %v2913 = vunpack.c.l.b16 %v593
        %v2914 = vunpack.c.l.b16 %v594
        %v2915 = vunpack.c.l.b16 %v595
        %v2916 = vunpack.c.l.b16 %v596
        %v2917 = vunpack.c.l.b16 %v597
        %v2918 = vunpack.c.l.b16 %v598
        %v2919 = vunpack.c.l.b16 %v599
        %v2920 = vunpack.c.l.b16 %v600
        %v2921 = vunpack.c.l.b16 %v601
        %v2922 = vunpack.c.l.b16 %v602
        %v2923 = vunpack.c.l.b16 %v603
        %v2924 = vunpack.c.l.b16 %v604
        %v2925 = vunpack.c.l.b16 %v605
        %v2926 = vunpack.c.l.b16 %v606
        %v2927 = vunpack.c.l.b16 %v607
        %v2928 = vunpack.c.l.b16 %v608
        %v2929 = vunpack.c.l.b16 %v609
        %v2930 = vunpack.c.l.b16 %v610
        %v2931 = vunpack.c.l.b16 %v611
        %v2932 = vunpack.c.l.b16 %v612
        %v2933 = vunpack.c.l.b16 %v613
        %v2934 = vunpack.c.l.b16 %v614
        %v2935 = vunpack.c.l.b16 %v615
        %v2936 = vunpack.c.l.b16 %v616
        %v2937 = vunpack.c.l.b16 %v617
        %v2938 = vunpack.c.l.b16 %v618
        %v2939 = vunpack.c.l.b16 %v619
        %v2940 = vunpack.c.l.b16 %v620
        %v2941 = vunpack.c.l.b16 %v621
        %v2942 = vunpack.c.l.b16 %v622
        %v2943 = vunpack.c.l.b16 %v623
        %v2944 = vunpack.c.l.b16 %v624
        %v2945 = vunpack.c.l.b16 %v625
        %v2946 = vunpack.c.l.b16 %v626
        %v2947 = vunpack.c.l.b16 %v627
        %v2948 = vunpack.c.l.b16 %v628
        %v2949 = vunpack.c.l.b16 %v629
        %v2950 = vunpack.c.l.b16 %v630
        %v2951 = vunpack.c.l.b16 %v631
        %v2952 = vunpack.c.l.b16 %v632
        %v2953 = vunpack.c.l.b16 %v633
        %v2954 = vunpack.c.l.b16 %v634
        %v2955 = vunpack.c.l.b16 %v635
        %v2956 = vunpack.c.l.b16 %v636
        %v2957 = vunpack.c.l.b16 %v637
        %v2958 = vunpack.c.l.b16 %v638
        %v2959 = vunpack.c.l.b16 %v639
        %v2960 = vunpack.c.l.b16 %v640
        %v2961 = vunpack.c.l.b16 %v641
        %v2962 = vunpack.c.l.b16 %v642
        %v2963 = vunpack.c.l.b16 %v643
        %v2964 = vunpack.c.l.b16 %v644
        %v2965 = vunpack.c.l.b16 %v645
        %v2966 = vunpack.c.l.b16 %v646
        %v2967 = vunpack.c.l.b16 %v647
        %v2968 = vunpack.c.l.b16 %v648
        %v2969 = vunpack.c.l.b16 %v649
        %v2970 = vunpack.c.l.b16 %v650
        %v2971 = vunpack.c.l.b16 %v651
        %v2972 = vunpack.c.l.b16 %v652
        %v2973 = vunpack.c.l.b16 %v653
        %v2974 = vunpack.c.l.b16 %v654
        %v2975 = vunpack.c.l.b16 %v655
        %v2976 = vunpack.c.l.b16 %v656
        %v2977 = vunpack.c.l.b16 %v657
        %v2978 = vunpack.c.l.b16 %v658
        %v2979 = vunpack.c.l.b16 %v659
        %v2980 = vunpack.c.l.b16 %v660
        %v2981 = vunpack.c.l.b16 %v661
        %v2982 = vunpack.c.l.b16 %v662
        %v2983 = vunpack.c.l.b16 %v663
        %v2984 = vunpack.c.l.b16 %v664
        %v2985 = vunpack.c.l.b16 %v665
        %v2986 = vunpack.c.l.b16 %v666
        %v2987 = vunpack.c.l.b16 %v667
        %v2988 = vunpack.c.l.b16 %v668
        %v2989 = vunpack.c.l.b16 %v669
        %v2990 = vunpack.c.l.b16 %v670
        %v2991 = vunpack.c.l.b16 %v671
        %v2992 = vunpack.c.l.b16 %v672
        %v2993 = vunpack.c.l.b16 %v673
        %v2994 = vunpack.c.l.b16 %v674
        %v2995 = vunpack.c.l.b16 %v675
        %v2996 = vunpack.c.l.b16 %v676
        %v2997 = vunpack.c.l.b16 %v677
        %v2998 = vunpack.c.l.b16 %v678
        %v2999 = vunpack.c.l.b16 %v679
        %v3000 = vunpack.c.l.b16 %v680
        %v3001 = vunpack.c.l.b16 %v681
        %v3002 = vunpack.c.l.b16 %v682
        %v3003 = vunpack.c.l.b16 %v683
        %v3004 = vunpack.c.l.b16 %v684
        %v3005 = vunpack.c.l.b16 %v685
        %v3006 = vunpack.c.l.b16 %v686
        %v3007 = vunpack.c.l.b16 %v687
        %v3008 = vunpack.c.l.b16 %v688
        %v3009 = vunpack.c.l.b16 %v689
        %v3010 = vunpack.c.l.b16 %v690
        %v3011 = vunpack.c.l.b16 %v691
        %v3012 = vunpack.c.l.b16 %v692
        %v3013 = vunpack.c.l.b16 %v693
        %v3014 = vunpack.c.l.b16 %v694
        %v3015 = vunpack.c.l.b16 %v695
        %v3016 = vunpack.c.l.b16 %v696
        %v3017 = vunpack.c.l.b16 %v697
        %v3018 = vunpack.c.l.b16 %v698
        %v3019 = vunpack.c.l.b16 %v699
        %v3020 = vunpack.c.l.b16 %v700
        %v3021 = vunpack.c.l.b16 %v701
        %v3022 = vunpack.c.l.b16 %v702
        %v3023 = vunpack.c.l.b16 %v703
        %v3024 = vunpack.c.l.b16 %v704
        %v3025 = vunpack.c.l.b16 %v705
        %v3026 = vunpack.c.l.b16 %v706
        %v3027 = vunpack.c.l.b16 %v707
        %v3028 = vunpack.c.l.b16 %v708
        %v3029 = vunpack.c.l.b16 %v709
        %v3030 = vunpack.c.l.b16 %v710
        %v3031 = vunpack.c.l.b16 %v711
        %v3032 = vunpack.c.l.b16 %v712
        %v3033 = vunpack.c.l.b16 %v713
        %v3034 = vunpack.c.l.b16 %v714
        %v3035 = vunpack.c.l.b16 %v715
        %v3036 = vunpack.c.l.b16 %v716
        %v3037 = vunpack.c.l.b16 %v717
        %v3038 = vunpack.c.l.b16 %v718
        %v3039 = vunpack.c.l.b16 %v719
        %v3040 = vunpack.c.l.b16 %v720
        %v3041 = vunpack.c.l.b16 %v721
        %v3042 = vunpack.c.l.b16 %v722
        %v3043 = vunpack.c.l.b16 %v723
        %v3044 = vunpack.c.l.b16 %v724
        %v3045 = vunpack.c.l.b16 %v725
        %v3046 = vunpack.c.l.b16 %v726
        %v3047 = vunpack.c.l.b16 %v727
        %v3048 = vunpack.c.l.b16 %v728
        %v3049 = vunpack.c.l.b16 %v729
        %v3050 = vunpack.c.l.b16 %v730
        %v3051 = vunpack.c.l.b16 %v731
        %v3052 = vunpack.c.l.b16 %v732
        %v3053 = vunpack.c.l.b16 %v733
        %v3054 = vunpack.c.l.b16 %v734
        %v3055 = vunpack.c.l.b16 %v735
        %v3056 = vunpack.c.l.b16 %v736
        %v3057 = vunpack.c.l.b16 %v737
        %v3058 = vunpack.c.l.b16 %v738
        %v3059 = vunpack.c.l.b16 %v739
        %v3060 = vunpack.c.l.b16 %v740
        %v3061 = vunpack.c.l.b16 %v741
        %v3062 = vunpack.c.l.b16 %v742
        %v3063 = vunpack.c.l.b16 %v743
        %v3064 = vunpack.c.l.b16 %v744
        %v3065 = vunpack.c.l.b16 %v745
        %v3066 = vunpack.c.l.b16 %v746
        %v3067 = vunpack.c.l.b16 %v747
        %v3068 = vunpack.c.l.b16 %v748
        %v3069 = vunpack.c.l.b16 %v749
        %v3070 = vunpack.c.l.b16 %v750
        %v3071 = vunpack.c.l.b16 %v751
        %v3072 = vunpack.c.l.b16 %v752
        %v3073 = vunpack.c.l.b16 %v753
        %v3074 = vunpack.c.l.b16 %v754
        %v3075 = vunpack.c.l.b16 %v755
        %v3076 = vunpack.c.l.b16 %v756
        %v3077 = vunpack.c.l.b16 %v757
        %v3078 = vunpack.c.l.b16 %v758
        %v3079 = vunpack.c.l.b16 %v759
        %v3080 = vunpack.c.l.b16 %v760
        %v3081 = vunpack.c.l.b16 %v761
        %v3082 = vunpack.c.l.b16 %v762
        %v3083 = vunpack.c.l.b16 %v763
        %v3084 = vunpack.c.l.b16 %v764
        %v3085 = vunpack.c.l.b16 %v765
        %v3086 = vunpack.c.l.b16 %v766
        %v3087 = vunpack.c.l.b16 %v767
        %v3088 = vunpack.c.l.b16 %v768
        %v3089 = vunpack.c.l.b16 %v769
        %v3090 = vunpack.c.l.b16 %v770
        %v3091 = vunpack.c.l.b16 %v771
        %v3092 = vunpack.c.l.b16 %v772
        %v3093 = vunpack.c.l.b16 %v773
        %v3094 = vunpack.c.l.b16 %v774
        %v3095 = vunpack.c.l.b16 %v775
        %v3096 = vunpack.c.l.b16 %v776
        %v3097 = vunpack.c.l.b16 %v777
        %v3098 = vunpack.c.l.b16 %v778
        %v3099 = vunpack.c.l.b16 %v779
        %v3100 = vunpack.c.l.b16 %v780
        %v3101 = vunpack.c.l.b16 %v781
        %v3102 = vunpack.c.l.b16 %v782
        %v3103 = vunpack.c.l.b16 %v783
        %v3104 = vunpack.c.l.b16 %v784
        %v3105 = vunpack.c.l.b16 %v785
        %v3106 = vunpack.c.l.b16 %v786
        %v3107 = vunpack.c.l.b16 %v787
        %v3108 = vunpack.c.l.b16 %v788
        %v3109 = vunpack.c.l.b16 %v789
        %v3110 = vunpack.c.l.b16 %v790
        %v3111 = vunpack.c.l.b16 %v791
        %v3112 = vunpack.c.l.b16 %v792
        %v3113 = vunpack.c.l.b16 %v793
        %v3114 = vunpack.c.l.b16 %v794
        %v3115 = vunpack.c.l.b16 %v795
        %v3116 = vunpack.c.l.b16 %v796
        %v3117 = vunpack.c.l.b16 %v797
        %v3118 = vunpack.c.l.b16 %v798
        %v3119 = vunpack.c.l.b16 %v799
        %v3120 = vunpack.c.l.b16 %v800
        %v3121 = vunpack.c.l.b16 %v801
        %v3122 = vunpack.c.l.b16 %v802
        %v3123 = vunpack.c.l.b16 %v803
        %v3124 = vunpack.c.l.b16 %v804
        %v3125 = vunpack.c.l.b16 %v805
        %v3126 = vunpack.c.l.b16 %v806
        %v3127 = vunpack.c.l.b16 %v807
        %v3128 = vunpack.c.l.b16 %v808
        %v3129 = vunpack.c.l.b16 %v809
        %v3130 = vunpack.c.l.b16 %v810
        %v3131 = vunpack.c.l.b16 %v811
        %v3132 = vunpack.c.l.b16 %v812
        %v3133 = vunpack.c.l.b16 %v813
        %v3134 = vunpack.c.l.b16 %v814
        %v3135 = vunpack.c.l.b16 %v815
        %v3136 = vunpack.c.l.b16 %v816
        %v3137 = vunpack.c.l.b16 %v817
        %v3138 = vunpack.c.l.b16 %v818
        %v3139 = vunpack.c.l.b16 %v819
        %v3140 = vunpack.c.l.b16 %v820
        %v3141 = vunpack.c.l.b16 %v821
        %v3142 = vunpack.c.l.b16 %v822
        %v3143 = vunpack.c.l.b16 %v823
        %v3144 = vunpack.c.l.b16 %v824
        %v3145 = vunpack.c.l.b16 %v825
        %v3146 = vunpack.c.l.b16 %v826
        %v3147 = vunpack.c.l.b16 %v827
        %v3148 = vunpack.c.l.b16 %v828
        %v3149 = vunpack.c.l.b16 %v829
        %v3150 = vunpack.c.l.b16 %v830
        %v3151 = vunpack.c.l.b16 %v831
        %v3152 = vunpack.c.l.b16 %v832
        %v3153 = vunpack.c.l.b16 %v833
        %v3154 = vunpack.c.l.b16 %v834
        %v3155 = vunpack.c.l.b16 %v835
        %v3156 = vunpack.c.l.b16 %v836
        %v3157 = vunpack.c.l.b16 %v837
        %v3158 = vunpack.c.l.b16 %v838
        %v3159 = vunpack.c.l.b16 %v839
        %v3160 = vunpack.c.l.b16 %v840
        %v3161 = vunpack.c.l.b16 %v841
        %v3162 = vunpack.c.l.b16 %v842
        %v3163 = vunpack.c.l.b16 %v843
        %v3164 = vunpack.c.l.b16 %v844
        %v3165 = vunpack.c.l.b16 %v845
        %v3166 = vunpack.c.l.b16 %v846
        %v3167 = vunpack.c.l.b16 %v847
        %v3168 = vunpack.c.l.b16 %v848
        %v3169 = vunpack.c.l.b16 %v849
        %v3170 = vunpack.c.l.b16 %v850
        %v3171 = vunpack.c.l.b16 %v851
        %v3172 = vunpack.c.l.b16 %v852
        %v3173 = vunpack.c.l.b16 %v853
        %v3174 = vunpack.c.l.b16 %v854
        %v3175 = vunpack.c.l.b16 %v855
        %v3176 = vunpack.c.l.b16 %v856
        %v3177 = vunpack.c.l.b16 %v857
        %v3178 = vunpack.c.l.b16 %v858
        %v3179 = vunpack.c.l.b16 %v859
        %v3180 = vunpack.c.l.b16 %v860
        %v3181 = vunpack.c.l.b16 %v861
        %v3182 = vunpack.c.l.b16 %v862
        %v3183 = vunpack.c.l.b16 %v863
        %v3184 = vunpack.c.l.b16 %v864
        %v3185 = vunpack.c.l.b16 %v865
        %v3186 = vunpack.c.l.b16 %v866
        %v3187 = vunpack.c.l.b16 %v867
        %v3188 = vunpack.c.l.b16 %v868
        %v3189 = vunpack.c.l.b16 %v869
        %v3190 = vunpack.c.l.b16 %v870
        %v3191 = vunpack.c.l.b16 %v871
        %v3192 = vunpack.c.l.b16 %v872
        %v3193 = vunpack.c.l.b16 %v873
        %v3194 = vunpack.c.l.b16 %v874
        %v3195 = vunpack.c.l.b16 %v875
        %v3196 = vunpack.c.l.b16 %v876
        %v3197 = vunpack.c.l.b16 %v877
        %v3198 = vunpack.c.l.b16 %v878
        %v3199 = vunpack.c.l.b16 %v879
        %v3200 = vunpack.c.l.b16 %v880
        %v3201 = vunpack.c.l.b16 %v881
        %v3202 = vunpack.c.l.b16 %v882
        %v3203 = vunpack.c.l.b16 %v883
        %v3204 = vunpack.c.l.b16 %v884
        %v3205 = vunpack.c.l.b16 %v885
        %v3206 = vunpack.c.l.b16 %v886
        %v3207 = vunpack.c.l.b16 %v887
        %v3208 = vunpack.c.l.b16 %v888
        %v3209 = vunpack.c.l.b16 %v889
        %v3210 = vunpack.c.l.b16 %v890
        %v3211 = vunpack.c.l.b16 %v891
        %v3212 = vunpack.c.l.b16 %v892
        %v3213 = vunpack.c.l.b16 %v893
        %v3214 = vunpack.c.l.b16 %v894
        %v3215 = vunpack.c.l.b16 %v895
        %v3216 = vunpack.c.l.b16 %v896
        %v3217 = vunpack.c.l.b16 %v897
        %v3218 = vunpack.c.l.b16 %v898
        %v3219 = vunpack.c.l.b16 %v899
        %v3220 = vunpack.c.l.b16 %v900
        %v3221 = vunpack.c.l.b16 %v901
        %v3222 = vunpack.c.l.b16 %v902
        %v3223 = vunpack.c.l.b16 %v903
        %v3224 = vunpack.c.l.b16 %v904
        %v3225 = vunpack.c.l.b16 %v905
        %v3226 = vunpack.c.l.b16 %v906
        %v3227 = vunpack.c.l.b16 %v907
        %v3228 = vunpack.c.l.b16 %v908
        %v3229 = vunpack.c.l.b16 %v909
        %v3230 = vunpack.c.l.b16 %v910
        %v3231 = vunpack.c.l.b16 %v911
        %v3232 = vunpack.c.l.b16 %v912
        %v3233 = vunpack.c.l.b16 %v913
        %v3234 = vunpack.c.l.b16 %v914
        %v3235 = vunpack.c.l.b16 %v915
        %v3236 = vunpack.c.l.b16 %v916
        %v3237 = vunpack.c.l.b16 %v917
        %v3238 = vunpack.c.l.b16 %v918
        %v3239 = vunpack.c.l.b16 %v919
        %v3240 = vunpack.c.l.b16 %v920
        %v3241 = vunpack.c.l.b16 %v921
        %v3242 = vunpack.c.l.b16 %v922
        %v3243 = vunpack.c.l.b16 %v923
        %v3244 = vunpack.c.l.b16 %v924
        %v3245 = vunpack.c.l.b16 %v925
        %v3246 = vunpack.c.l.b16 %v926
        %v3247 = vunpack.c.l.b16 %v927
        %v3248 = vunpack.c.l.b16 %v928
        %v3249 = vunpack.c.l.b16 %v929
        %v3250 = vunpack.c.l.b16 %v930
        %v3251 = vunpack.c.l.b16 %v931
        %v3252 = vunpack.c.l.b16 %v932
        %v3253 = vunpack.c.l.b16 %v933
        %v3254 = vunpack.c.l.b16 %v934
        %v3255 = vunpack.c.l.b16 %v935
        %v3256 = vunpack.c.l.b16 %v936
        %v3257 = vunpack.c.l.b16 %v937
        %v3258 = vunpack.c.l.b16 %v938
        %v3259 = vunpack.c.l.b16 %v939
        %v3260 = vunpack.c.l.b16 %v940
        %v3261 = vunpack.c.l.b16 %v941
        %v3262 = vunpack.c.l.b16 %v942
        %v3263 = vunpack.c.l.b16 %v943
        %v3264 = vunpack.c.l.b16 %v944
        %v3265 = vunpack.c.l.b16 %v945
        %v3266 = vunpack.c.l.b16 %v946
        %v3267 = vunpack.c.l.b16 %v947
        %v3268 = vunpack.c.l.b16 %v948
        %v3269 = vunpack.c.l.b16 %v949
        %v3270 = vunpack.c.l.b16 %v950
        %v3271 = vunpack.c.l.b16 %v951
        %v3272 = vunpack.c.l.b16 %v952
        %v3273 = vpack.c.b16 %v2762, %v2761
        %v3274 = vpack.c.b16 %v2764, %v2763
        %v3275 = vpack.c.b16 %v2766, %v2765
        %v3276 = vpack.c.b16 %v2768, %v2767
        %v3277 = vpack.c.b16 %v2770, %v2769
        %v3278 = vpack.c.b16 %v2772, %v2771
        %v3279 = vpack.c.b16 %v2774, %v2773
        %v3280 = vpack.c.b16 %v2776, %v2775
        %v3281 = vpack.c.b16 %v2778, %v2777
        %v3282 = vpack.c.b16 %v2780, %v2779
        %v3283 = vpack.c.b16 %v2782, %v2781
        %v3284 = vpack.c.b16 %v2784, %v2783
        %v3285 = vpack.c.b16 %v2786, %v2785
        %v3286 = vpack.c.b16 %v2788, %v2787
        %v3287 = vpack.c.b16 %v2790, %v2789
        %v3288 = vpack.c.b16 %v2792, %v2791
        %v3289 = vpack.c.b16 %v2794, %v2793
        %v3290 = vpack.c.b16 %v2796, %v2795
        %v3291 = vpack.c.b16 %v2798, %v2797
        %v3292 = vpack.c.b16 %v2800, %v2799
        %v3293 = vpack.c.b16 %v2802, %v2801
        %v3294 = vpack.c.b16 %v2804, %v2803
        %v3295 = vpack.c.b16 %v2806, %v2805
        %v3296 = vpack.c.b16 %v2808, %v2807
        %v3297 = vpack.c.b16 %v2810, %v2809
        %v3298 = vpack.c.b16 %v2812, %v2811
        %v3299 = vpack.c.b16 %v2814, %v2813
        %v3300 = vpack.c.b16 %v2816, %v2815
        %v3301 = vpack.c.b16 %v2818, %v2817
        %v3302 = vpack.c.b16 %v2820, %v2819
        %v3303 = vpack.c.b16 %v2822, %v2821
        %v3304 = vpack.c.b16 %v2824, %v2823
        %v3305 = vpack.c.b16 %v2826, %v2825
        %v3306 = vpack.c.b16 %v2828, %v2827
        %v3307 = vpack.c.b16 %v2830, %v2829
        %v3308 = vpack.c.b16 %v2832, %v2831
        %v3309 = vpack.c.b16 %v2834, %v2833
        %v3310 = vpack.c.b16 %v2836, %v2835
        %v3311 = vpack.c.b16 %v2838, %v2837
        %v3312 = vpack.c.b16 %v2840, %v2839
        %v3313 = vpack.c.b16 %v2842, %v2841
        %v3314 = vpack.c.b16 %v2844, %v2843
        %v3315 = vpack.c.b16 %v2846, %v2845
        %v3316 = vpack.c.b16 %v2848, %v2847
        %v3317 = vpack.c.b16 %v2850, %v2849
        %v3318 = vpack.c.b16 %v2852, %v2851
        %v3319 = vpack.c.b16 %v2854, %v2853
        %v3320 = vpack.c.b16 %v2856, %v2855
        %v3321 = vpack.c.b16 %v2858, %v2857
        %v3322 = vpack.c.b16 %v2860, %v2859
        %v3323 = vpack.c.b16 %v2862, %v2861
        %v3324 = vpack.c.b16 %v2864, %v2863
        %v3325 = vpack.c.b16 %v2866, %v2865
        %v3326 = vpack.c.b16 %v2868, %v2867
        %v3327 = vpack.c.b16 %v2870, %v2869
        %v3328 = vpack.c.b16 %v2872, %v2871
        %v3329 = vpack.c.b16 %v2874, %v2873
        %v3330 = vpack.c.b16 %v2876, %v2875
        %v3331 = vpack.c.b16 %v2878, %v2877
        %v3332 = vpack.c.b16 %v2880, %v2879
        %v3333 = vpack.c.b16 %v2882, %v2881
        %v3334 = vpack.c.b16 %v2884, %v2883
        %v3335 = vpack.c.b16 %v2886, %v2885
        %v3336 = vpack.c.b16 %v2888, %v2887
        %v3337 = vpack.c.b16 %v2890, %v2889
        %v3338 = vpack.c.b16 %v2892, %v2891
        %v3339 = vpack.c.b16 %v2894, %v2893
        %v3340 = vpack.c.b16 %v2896, %v2895
        %v3341 = vpack.c.b16 %v2898, %v2897
        %v3342 = vpack.c.b16 %v2900, %v2899
        %v3343 = vpack.c.b16 %v2902, %v2901
        %v3344 = vpack.c.b16 %v2904, %v2903
        %v3345 = vpack.c.b16 %v2906, %v2905
        %v3346 = vpack.c.b16 %v2908, %v2907
        %v3347 = vpack.c.b16 %v2910, %v2909
        %v3348 = vpack.c.b16 %v2912, %v2911
        %v3349 = vpack.c.b16 %v2914, %v2913
        %v3350 = vpack.c.b16 %v2916, %v2915
        %v3351 = vpack.c.b16 %v2918, %v2917
        %v3352 = vpack.c.b16 %v2920, %v2919
        %v3353 = vpack.c.b16 %v2922, %v2921
        %v3354 = vpack.c.b16 %v2924, %v2923
        %v3355 = vpack.c.b16 %v2926, %v2925
        %v3356 = vpack.c.b16 %v2928, %v2927
        %v3357 = vpack.c.b16 %v2930, %v2929
        %v3358 = vpack.c.b16 %v2932, %v2931
        %v3359 = vpack.c.b16 %v2934, %v2933
        %v3360 = vpack.c.b16 %v2936, %v2935
        %v3361 = vpack.c.b16 %v2938, %v2937
        %v3362 = vpack.c.b16 %v2940, %v2939
        %v3363 = vpack.c.b16 %v2942, %v2941
        %v3364 = vpack.c.b16 %v2944, %v2943
        %v3365 = vpack.c.b16 %v2946, %v2945
        %v3366 = vpack.c.b16 %v2948, %v2947
        %v3367 = vpack.c.b16 %v2950, %v2949
        %v3368 = vpack.c.b16 %v2952, %v2951
        %v3369 = vpack.c.b16 %v2954, %v2953
        %v3370 = vpack.c.b16 %v2956, %v2955
        %v3371 = vpack.c.b16 %v2958, %v2957
        %v3372 = vpack.c.b16 %v2960, %v2959
        %v3373 = vpack.c.b16 %v2962, %v2961
        %v3374 = vpack.c.b16 %v2964, %v2963
        %v3375 = vpack.c.b16 %v2966, %v2965
        %v3376 = vpack.c.b16 %v2968, %v2967
        %v3377 = vpack.c.b16 %v2970, %v2969
        %v3378 = vpack.c.b16 %v2972, %v2971
        %v3379 = vpack.c.b16 %v2974, %v2973
        %v3380 = vpack.c.b16 %v2976, %v2975
        %v3381 = vpack.c.b16 %v2978, %v2977
        %v3382 = vpack.c.b16 %v2980, %v2979
        %v3383 = vpack.c.b16 %v2982, %v2981
        %v3384 = vpack.c.b16 %v2984, %v2983
        %v3385 = vpack.c.b16 %v2986, %v2985
        %v3386 = vpack.c.b16 %v2988, %v2987
        %v3387 = vpack.c.b16 %v2990, %v2989
        %v3388 = vpack.c.b16 %v2992, %v2991
        %v3389 = vpack.c.b16 %v2994, %v2993
        %v3390 = vpack.c.b16 %v2996, %v2995
        %v3391 = vpack.c.b16 %v2998, %v2997
        %v3392 = vpack.c.b16 %v3000, %v2999
        %v3393 = vpack.c.b16 %v3002, %v3001
        %v3394 = vpack.c.b16 %v3004, %v3003
        %v3395 = vpack.c.b16 %v3006, %v3005
        %v3396 = vpack.c.b16 %v3008, %v3007
        %v3397 = vpack.c.b16 %v3010, %v3009
        %v3398 = vpack.c.b16 %v3012, %v3011
        %v3399 = vpack.c.b16 %v3014, %v3013
        %v3400 = vpack.c.b16 %v3016, %v3015
        %v3401 = vpack.c.b16 %v3018, %v3017
        %v3402 = vpack.c.b16 %v3020, %v3019
        %v3403 = vpack.c.b16 %v3022, %v3021
        %v3404 = vpack.c.b16 %v3024, %v3023
        %v3405 = vpack.c.b16 %v3026, %v3025
        %v3406 = vpack.c.b16 %v3028, %v3027
        %v3407 = vpack.c.b16 %v3030, %v3029
        %v3408 = vpack.c.b16 %v3032, %v3031
        %v3409 = vpack.c.b16 %v3034, %v3033
        %v3410 = vpack.c.b16 %v3036, %v3035
        %v3411 = vpack.c.b16 %v3038, %v3037
        %v3412 = vpack.c.b16 %v3040, %v3039
        %v3413 = vpack.c.b16 %v3042, %v3041
        %v3414 = vpack.c.b16 %v3044, %v3043
        %v3415 = vpack.c.b16 %v3046, %v3045
        %v3416 = vpack.c.b16 %v3048, %v3047
        %v3417 = vpack.c.b16 %v3050, %v3049
        %v3418 = vpack.c.b16 %v3052, %v3051
        %v3419 = vpack.c.b16 %v3054, %v3053
        %v3420 = vpack.c.b16 %v3056, %v3055
        %v3421 = vpack.c.b16 %v3058, %v3057
        %v3422 = vpack.c.b16 %v3060, %v3059
        %v3423 = vpack.c.b16 %v3062, %v3061
        %v3424 = vpack.c.b16 %v3064, %v3063
        %v3425 = vpack.c.b16 %v3066, %v3065
        %v3426 = vpack.c.b16 %v3068, %v3067
        %v3427 = vpack.c.b16 %v3070, %v3069
        %v3428 = vpack.c.b16 %v3072, %v3071
        %v3429 = vpack.c.b16 %v3074, %v3073
        %v3430 = vpack.c.b16 %v3076, %v3075
        %v3431 = vpack.c.b16 %v3078, %v3077
        %v3432 = vpack.c.b16 %v3080, %v3079
        %v3433 = vpack.c.b16 %v3082, %v3081
        %v3434 = vpack.c.b16 %v3084, %v3083
        %v3435 = vpack.c.b16 %v3086, %v3085
        %v3436 = vpack.c.b16 %v3088, %v3087
        %v3437 = vpack.c.b16 %v3090, %v3089
        %v3438 = vpack.c.b16 %v3092, %v3091
        %v3439 = vpack.c.b16 %v3094, %v3093
        %v3440 = vpack.c.b16 %v3096, %v3095
        %v3441 = vpack.c.b16 %v3098, %v3097
        %v3442 = vpack.c.b16 %v3100, %v3099
        %v3443 = vpack.c.b16 %v3102, %v3101
        %v3444 = vpack.c.b16 %v3104, %v3103
        %v3445 = vpack.c.b16 %v3106, %v3105
        %v3446 = vpack.c.b16 %v3108, %v3107
        %v3447 = vpack.c.b16 %v3110, %v3109
        %v3448 = vpack.c.b16 %v3112, %v3111
        %v3449 = vpack.c.b16 %v3114, %v3113
        %v3450 = vpack.c.b16 %v3116, %v3115
        %v3451 = vpack.c.b16 %v3118, %v3117
        %v3452 = vpack.c.b16 %v3120, %v3119
        %v3453 = vpack.c.b16 %v3122, %v3121
        %v3454 = vpack.c.b16 %v3124, %v3123
        %v3455 = vpack.c.b16 %v3126, %v3125
        %v3456 = vpack.c.b16 %v3128, %v3127
        %v3457 = vpack.c.b16 %v3130, %v3129
        %v3458 = vpack.c.b16 %v3132, %v3131
        %v3459 = vpack.c.b16 %v3134, %v3133
        %v3460 = vpack.c.b16 %v3136, %v3135
        %v3461 = vpack.c.b16 %v3138, %v3137
        %v3462 = vpack.c.b16 %v3140, %v3139
        %v3463 = vpack.c.b16 %v3142, %v3141
        %v3464 = vpack.c.b16 %v3144, %v3143
        %v3465 = vpack.c.b16 %v3146, %v3145
        %v3466 = vpack.c.b16 %v3148, %v3147
        %v3467 = vpack.c.b16 %v3150, %v3149
        %v3468 = vpack.c.b16 %v3152, %v3151
        %v3469 = vpack.c.b16 %v3154, %v3153
        %v3470 = vpack.c.b16 %v3156, %v3155
        %v3471 = vpack.c.b16 %v3158, %v3157
        %v3472 = vpack.c.b16 %v3160, %v3159
        %v3473 = vpack.c.b16 %v3162, %v3161
        %v3474 = vpack.c.b16 %v3164, %v3163
        %v3475 = vpack.c.b16 %v3166, %v3165
        %v3476 = vpack.c.b16 %v3168, %v3167
        %v3477 = vpack.c.b16 %v3170, %v3169
        %v3478 = vpack.c.b16 %v3172, %v3171
        %v3479 = vpack.c.b16 %v3174, %v3173
        %v3480 = vpack.c.b16 %v3176, %v3175
        %v3481 = vpack.c.b16 %v3178, %v3177
        %v3482 = vpack.c.b16 %v3180, %v3179
        %v3483 = vpack.c.b16 %v3182, %v3181
        %v3484 = vpack.c.b16 %v3184, %v3183
        %v3485 = vpack.c.b16 %v3186, %v3185
        %v3486 = vpack.c.b16 %v3188, %v3187
        %v3487 = vpack.c.b16 %v3190, %v3189
        %v3488 = vpack.c.b16 %v3192, %v3191
        %v3489 = vpack.c.b16 %v3194, %v3193
        %v3490 = vpack.c.b16 %v3196, %v3195
        %v3491 = vpack.c.b16 %v3198, %v3197
        %v3492 = vpack.c.b16 %v3200, %v3199
        %v3493 = vpack.c.b16 %v3202, %v3201
        %v3494 = vpack.c.b16 %v3204, %v3203
        %v3495 = vpack.c.b16 %v3206, %v3205
        %v3496 = vpack.c.b16 %v3208, %v3207
        %v3497 = vpack.c.b16 %v3210, %v3209
        %v3498 = vpack.c.b16 %v3212, %v3211
        %v3499 = vpack.c.b16 %v3214, %v3213
        %v3500 = vpack.c.b16 %v3216, %v3215
        %v3501 = vpack.c.b16 %v3218, %v3217
        %v3502 = vpack.c.b16 %v3220, %v3219
        %v3503 = vpack.c.b16 %v3222, %v3221
        %v3504 = vpack.c.b16 %v3224, %v3223
        %v3505 = vpack.c.b16 %v3226, %v3225
        %v3506 = vpack.c.b16 %v3228, %v3227
        %v3507 = vpack.c.b16 %v3230, %v3229
        %v3508 = vpack.c.b16 %v3232, %v3231
        %v3509 = vpack.c.b16 %v3234, %v3233
        %v3510 = vpack.c.b16 %v3236, %v3235
        %v3511 = vpack.c.b16 %v3238, %v3237
        %v3512 = vpack.c.b16 %v3240, %v3239
        %v3513 = vpack.c.b16 %v3242, %v3241
        %v3514 = vpack.c.b16 %v3244, %v3243
        %v3515 = vpack.c.b16 %v3246, %v3245
        %v3516 = vpack.c.b16 %v3248, %v3247
        %v3517 = vpack.c.b16 %v3250, %v3249
        %v3518 = vpack.c.b16 %v3252, %v3251
        %v3519 = vpack.c.b16 %v3254, %v3253
        %v3520 = vpack.c.b16 %v3256, %v3255
        %v3521 = vpack.c.b16 %v3258, %v3257
        %v3522 = vpack.c.b16 %v3260, %v3259
        %v3523 = vpack.c.b16 %v3262, %v3261
        %v3524 = vpack.c.b16 %v3264, %v3263
        %v3525 = vpack.c.b16 %v3266, %v3265
        %v3526 = vpack.c.b16 %v3268, %v3267
        %v3527 = vpack.c.b16 %v3270, %v3269
        %v3528 = vpack.c.b16 %v3272, %v3271
        %3785 = vmatprep.subr.bf16.mxu0 0
        %3786 = vmatpush1.bf16.msra.mxu0 %v3273
        %3787 = vmatprep.subr.bf16.mxu0 0
        %3788 = vmatpush1.bf16.msra.mxu0 %v3274
        %3789 = vmatprep.subr.bf16.mxu0 0
        %3790 = vmatpush1.bf16.msra.mxu0 %v3275
        %3791 = vmatprep.subr.bf16.mxu0 0
        %3792 = vmatpush1.bf16.msra.mxu0 %v3276
        %3793 = vmatprep.subr.bf16.mxu0 0
        %3794 = vmatpush1.bf16.msra.mxu0 %v3277
        %3795 = vmatprep.subr.bf16.mxu0 0
        %3796 = vmatpush1.bf16.msra.mxu0 %v3278
        %3797 = vmatprep.subr.bf16.mxu0 0
        %3798 = vmatpush1.bf16.msra.mxu0 %v3279
        %3799 = vmatprep.subr.bf16.mxu0 0
        %3800 = vmatpush1.bf16.msra.mxu0 %v3280
        %3801 = vmatprep.subr.bf16.mxu0 0
        %3802 = vmatpush1.bf16.msra.mxu0 %v3281
        %3803 = vmatprep.subr.bf16.mxu0 0
        %3804 = vmatpush1.bf16.msra.mxu0 %v3282
        %3805 = vmatprep.subr.bf16.mxu0 0
        %3806 = vmatpush1.bf16.msra.mxu0 %v3283
        %3807 = vmatprep.subr.bf16.mxu0 0
        %3808 = vmatpush1.bf16.msra.mxu0 %v3284
        %3809 = vmatprep.subr.bf16.mxu0 0
        %3810 = vmatpush1.bf16.msra.mxu0 %v3285
        %3811 = vmatprep.subr.bf16.mxu0 0
        %3812 = vmatpush1.bf16.msra.mxu0 %v3286
        %3813 = vmatprep.subr.bf16.mxu0 0
        %3814 = vmatpush1.bf16.msra.mxu0 %v3287
        %3815 = vmatprep.subr.bf16.mxu0 0
        %3816 = vmatpush1.bf16.msra.mxu0 %v3288
        %3817 = vmatprep.mubr.bf16.mxu0 %v1738
        %3818 = vmatmul.mubr.bf16.gmra.mrb[0].mxu0 %v1737
        %v3819 = vpop.f32.mrb[0].mxu0
        %v3820 = vadd.f32 %v953, %v3819
        %v3821 = vpop.f32.mrb[0].mxu0
        %v3822 = vpop.f32.mrb[0].mxu0
        %v3823 = vadd.f32 %v954, %v3822
        %v3824 = vpop.f32.mrb[0].mxu0
        %3825 = vmatprep.mubr.bf16.mxu0 %v1770
        %3826 = vmatmul.mubr.bf16.gmra.mrb[0].mxu0 %v1769
        %v3827 = vpop.f32.mrb[0].mxu0
        %v3828 = vadd.f32 %v955, %v3827
        %v3829 = vpop.f32.mrb[0].mxu0
        %v3830 = vpop.f32.mrb[0].mxu0
        %v3831 = vadd.f32 %v956, %v3830
        %v3832 = vpop.f32.mrb[0].mxu0
        %3833 = vmatprep.mubr.bf16.mxu0 %v1802
        %3834 = vmatmul.mubr.bf16.gmra.mrb[0].mxu0 %v1801
        %v3835 = vpop.f32.mrb[0].mxu0
        %v3836 = vadd.f32 %v957, %v3835
        %v3837 = vpop.f32.mrb[0].mxu0
        %v3838 = vpop.f32.mrb[0].mxu0
        %v3839 = vadd.f32 %v958, %v3838
        %v3840 = vpop.f32.mrb[0].mxu0
        %3841 = vmatprep.mubr.bf16.mxu0 %v1834
        %3842 = vmatmul.mubr.bf16.gmra.mrb[0].mxu0 %v1833
        %v3843 = vpop.f32.mrb[0].mxu0
        %v3844 = vadd.f32 %v959, %v3843
        %v3845 = vpop.f32.mrb[0].mxu0
        %v3846 = vpop.f32.mrb[0].mxu0
        %v3847 = vadd.f32 %v960, %v3846
        %v3848 = vpop.f32.mrb[0].mxu0
        %3849 = vmatprep.mubr.bf16.mxu0 %v1866
        %3850 = vmatmul.mubr.bf16.gmra.mrb[0].mxu0 %v1865
        %v3851 = vpop.f32.mrb[0].mxu0
        %v3852 = vadd.f32 %v961, %v3851
        %v3853 = vpop.f32.mrb[0].mxu0
        %v3854 = vpop.f32.mrb[0].mxu0
        %v3855 = vadd.f32 %v962, %v3854
        %v3856 = vpop.f32.mrb[0].mxu0
        %3857 = vmatprep.mubr.bf16.mxu0 %v1898
        %3858 = vmatmul.mubr.bf16.gmra.mrb[0].mxu0 %v1897
        %v3859 = vpop.f32.mrb[0].mxu0
        %v3860 = vadd.f32 %v963, %v3859
        %v3861 = vpop.f32.mrb[0].mxu0
        %v3862 = vpop.f32.mrb[0].mxu0
        %v3863 = vadd.f32 %v964, %v3862
        %v3864 = vpop.f32.mrb[0].mxu0
        %3865 = vmatprep.mubr.bf16.mxu0 %v1930
        %3866 = vmatmul.mubr.bf16.gmra.mrb[0].mxu0 %v1929
        %v3867 = vpop.f32.mrb[0].mxu0
        %v3868 = vadd.f32 %v965, %v3867
        %v3869 = vpop.f32.mrb[0].mxu0
        %v3870 = vpop.f32.mrb[0].mxu0
        %v3871 = vadd.f32 %v966, %v3870
        %v3872 = vpop.f32.mrb[0].mxu0
        %3873 = vmatprep.mubr.bf16.mxu0 %v1962
        %3874 = vmatmul.mubr.bf16.gmra.mrb[0].mxu0 %v1961
        %v3875 = vpop.f32.mrb[0].mxu0
        %v3876 = vadd.f32 %v967, %v3875
        %v3877 = vpop.f32.mrb[0].mxu0
        %v3878 = vpop.f32.mrb[0].mxu0
        %v3879 = vadd.f32 %v968, %v3878
        %v3880 = vpop.f32.mrb[0].mxu0
        %3881 = vdwg.mxu0
        %3882 = vmatprep.subr.bf16.mxu0 0
        %3883 = vmatpush1.bf16.msra.mxu0 %v3289
        %3884 = vmatprep.subr.bf16.mxu0 0
        %3885 = vmatpush1.bf16.msra.mxu0 %v3290
        %3886 = vmatprep.subr.bf16.mxu0 0
        %3887 = vmatpush1.bf16.msra.mxu0 %v3291
        %3888 = vmatprep.subr.bf16.mxu0 0
        %3889 = vmatpush1.bf16.msra.mxu0 %v3292
        %3890 = vmatprep.subr.bf16.mxu0 0
        %3891 = vmatpush1.bf16.msra.mxu0 %v3293
        %3892 = vmatprep.subr.bf16.mxu0 0
        %3893 = vmatpush1.bf16.msra.mxu0 %v3294
        %3894 = vmatprep.subr.bf16.mxu0 0
        %3895 = vmatpush1.bf16.msra.mxu0 %v3295
        %3896 = vmatprep.subr.bf16.mxu0 0
        %3897 = vmatpush1.bf16.msra.mxu0 %v3296
        %3898 = vmatprep.subr.bf16.mxu0 0
        %3899 = vmatpush1.bf16.msra.mxu0 %v3297
        %3900 = vmatprep.subr.bf16.mxu0 0
        %3901 = vmatpush1.bf16.msra.mxu0 %v3298
        %3902 = vmatprep.subr.bf16.mxu0 0
        %3903 = vmatpush1.bf16.msra.mxu0 %v3299
        %3904 = vmatprep.subr.bf16.mxu0 0
        %3905 = vmatpush1.bf16.msra.mxu0 %v3300
        %3906 = vmatprep.subr.bf16.mxu0 0
        %3907 = vmatpush1.bf16.msra.mxu0 %v3301
        %3908 = vmatprep.subr.bf16.mxu0 0
        %3909 = vmatpush1.bf16.msra.mxu0 %v3302
        %3910 = vmatprep.subr.bf16.mxu0 0
        %3911 = vmatpush1.bf16.msra.mxu0 %v3303
        %3912 = vmatprep.subr.bf16.mxu0 0
        %3913 = vmatpush1.bf16.msra.mxu0 %v3304
        %3914 = vmatprep.mubr.bf16.mxu0 %v1740
        %3915 = vmatmul.mubr.bf16.gmra.mrb[0].mxu0 %v1739
        %v3916 = vpop.f32.mrb[0].mxu0
        %v3917 = vadd.f32 %v3820, %v3916
        %v3918 = vpop.f32.mrb[0].mxu0
        %v3919 = vpop.f32.mrb[0].mxu0
        %v3920 = vadd.f32 %v3823, %v3919
        %v3921 = vpop.f32.mrb[0].mxu0
        %3922 = vmatprep.mubr.bf16.mxu0 %v1772
        %3923 = vmatmul.mubr.bf16.gmra.mrb[0].mxu0 %v1771
        %v3924 = vpop.f32.mrb[0].mxu0
        %v3925 = vadd.f32 %v3828, %v3924
        %v3926 = vpop.f32.mrb[0].mxu0
        %v3927 = vpop.f32.mrb[0].mxu0
        %v3928 = vadd.f32 %v3831, %v3927
        %v3929 = vpop.f32.mrb[0].mxu0
        %3930 = vmatprep.mubr.bf16.mxu0 %v1804
        %3931 = vmatmul.mubr.bf16.gmra.mrb[0].mxu0 %v1803
        %v3932 = vpop.f32.mrb[0].mxu0
        %v3933 = vadd.f32 %v3836, %v3932
        %v3934 = vpop.f32.mrb[0].mxu0
        %v3935 = vpop.f32.mrb[0].mxu0
        %v3936 = vadd.f32 %v3839, %v3935
        %v3937 = vpop.f32.mrb[0].mxu0
        %3938 = vmatprep.mubr.bf16.mxu0 %v1836
        %3939 = vmatmul.mubr.bf16.gmra.mrb[0].mxu0 %v1835
        %v3940 = vpop.f32.mrb[0].mxu0
        %v3941 = vadd.f32 %v3844, %v3940
        %v3942 = vpop.f32.mrb[0].mxu0
        %v3943 = vpop.f32.mrb[0].mxu0
        %v3944 = vadd.f32 %v3847, %v3943
        %v3945 = vpop.f32.mrb[0].mxu0
        %3946 = vmatprep.mubr.bf16.mxu0 %v1868
        %3947 = vmatmul.mubr.bf16.gmra.mrb[0].mxu0 %v1867
        %v3948 = vpop.f32.mrb[0].mxu0
        %v3949 = vadd.f32 %v3852, %v3948
        %v3950 = vpop.f32.mrb[0].mxu0
        %v3951 = vpop.f32.mrb[0].mxu0
        %v3952 = vadd.f32 %v3855, %v3951
        %v3953 = vpop.f32.mrb[0].mxu0
        %3954 = vmatprep.mubr.bf16.mxu0 %v1900
        %3955 = vmatmul.mubr.bf16.gmra.mrb[0].mxu0 %v1899
        %v3956 = vpop.f32.mrb[0].mxu0
        %v3957 = vadd.f32 %v3860, %v3956
        %v3958 = vpop.f32.mrb[0].mxu0
        %v3959 = vpop.f32.mrb[0].mxu0
        %v3960 = vadd.f32 %v3863, %v3959
        %v3961 = vpop.f32.mrb[0].mxu0
        %3962 = vmatprep.mubr.bf16.mxu0 %v1932
        %3963 = vmatmul.mubr.bf16.gmra.mrb[0].mxu0 %v1931
        %v3964 = vpop.f32.mrb[0].mxu0
        %v3965 = vadd.f32 %v3868, %v3964
        %v3966 = vpop.f32.mrb[0].mxu0
        %v3967 = vpop.f32.mrb[0].mxu0
        %v3968 = vadd.f32 %v3871, %v3967
        %v3969 = vpop.f32.mrb[0].mxu0
        %3970 = vmatprep.mubr.bf16.mxu0 %v1964
        %3971 = vmatmul.mubr.bf16.gmra.mrb[0].mxu0 %v1963
        %v3972 = vpop.f32.mrb[0].mxu0
        %v3973 = vadd.f32 %v3876, %v3972
        %v3974 = vpop.f32.mrb[0].mxu0
        %v3975 = vpop.f32.mrb[0].mxu0
        %v3976 = vadd.f32 %v3879, %v3975
        %v3977 = vpop.f32.mrb[0].mxu0
        %3978 = vdwg.mxu0
        %3979 = vmatprep.subr.bf16.mxu0 0
        %3980 = vmatpush1.bf16.msra.mxu0 %v3305
        %3981 = vmatprep.subr.bf16.mxu0 0
        %3982 = vmatpush1.bf16.msra.mxu0 %v3306
        %3983 = vmatprep.subr.bf16.mxu0 0
        %3984 = vmatpush1.bf16.msra.mxu0 %v3307
        %3985 = vmatprep.subr.bf16.mxu0 0
        %3986 = vmatpush1.bf16.msra.mxu0 %v3308
        %3987 = vmatprep.subr.bf16.mxu0 0
        %3988 = vmatpush1.bf16.msra.mxu0 %v3309
        %3989 = vmatprep.subr.bf16.mxu0 0
        %3990 = vmatpush1.bf16.msra.mxu0 %v3310
        %3991 = vmatprep.subr.bf16.mxu0 0
        %3992 = vmatpush1.bf16.msra.mxu0 %v3311
        %3993 = vmatprep.subr.bf16.mxu0 0
        %3994 = vmatpush1.bf16.msra.mxu0 %v3312
        %3995 = vmatprep.subr.bf16.mxu0 0
        %3996 = vmatpush1.bf16.msra.mxu0 %v3313
        %3997 = vmatprep.subr.bf16.mxu0 0
        %3998 = vmatpush1.bf16.msra.mxu0 %v3314
        %3999 = vmatprep.subr.bf16.mxu0 0
        %4000 = vmatpush1.bf16.msra.mxu0 %v3315
        %4001 = vmatprep.subr.bf16.mxu0 0
        %4002 = vmatpush1.bf16.msra.mxu0 %v3316
        %4003 = vmatprep.subr.bf16.mxu0 0
        %4004 = vmatpush1.bf16.msra.mxu0 %v3317
        %4005 = vmatprep.subr.bf16.mxu0 0
        %4006 = vmatpush1.bf16.msra.mxu0 %v3318
        %4007 = vmatprep.subr.bf16.mxu0 0
        %4008 = vmatpush1.bf16.msra.mxu0 %v3319
        %4009 = vmatprep.subr.bf16.mxu0 0
        %4010 = vmatpush1.bf16.msra.mxu0 %v3320
        %4011 = vmatprep.mubr.bf16.mxu0 %v1742
        %4012 = vmatmul.mubr.bf16.gmra.mrb[0].mxu0 %v1741
        %v4013 = vpop.f32.mrb[0].mxu0
        %v4014 = vadd.f32 %v3917, %v4013
        %v4015 = vpop.f32.mrb[0].mxu0
        %v4016 = vpop.f32.mrb[0].mxu0
        %v4017 = vadd.f32 %v3920, %v4016
        %v4018 = vpop.f32.mrb[0].mxu0
        %4019 = vmatprep.mubr.bf16.mxu0 %v1774
        %4020 = vmatmul.mubr.bf16.gmra.mrb[0].mxu0 %v1773
        %v4021 = vpop.f32.mrb[0].mxu0
        %v4022 = vadd.f32 %v3925, %v4021
        %v4023 = vpop.f32.mrb[0].mxu0
        %v4024 = vpop.f32.mrb[0].mxu0
        %v4025 = vadd.f32 %v3928, %v4024
        %v4026 = vpop.f32.mrb[0].mxu0
        %4027 = vmatprep.mubr.bf16.mxu0 %v1806
        %4028 = vmatmul.mubr.bf16.gmra.mrb[0].mxu0 %v1805
        %v4029 = vpop.f32.mrb[0].mxu0
        %v4030 = vadd.f32 %v3933, %v4029
        %v4031 = vpop.f32.mrb[0].mxu0
        %v4032 = vpop.f32.mrb[0].mxu0
        %v4033 = vadd.f32 %v3936, %v4032
        %v4034 = vpop.f32.mrb[0].mxu0
        %4035 = vmatprep.mubr.bf16.mxu0 %v1838
        %4036 = vmatmul.mubr.bf16.gmra.mrb[0].mxu0 %v1837
        %v4037 = vpop.f32.mrb[0].mxu0
        %v4038 = vadd.f32 %v3941, %v4037
        %v4039 = vpop.f32.mrb[0].mxu0
        %v4040 = vpop.f32.mrb[0].mxu0
        %v4041 = vadd.f32 %v3944, %v4040
        %v4042 = vpop.f32.mrb[0].mxu0
        %4043 = vmatprep.mubr.bf16.mxu0 %v1870
        %4044 = vmatmul.mubr.bf16.gmra.mrb[0].mxu0 %v1869
        %v4045 = vpop.f32.mrb[0].mxu0
        %v4046 = vadd.f32 %v3949, %v4045
        %v4047 = vpop.f32.mrb[0].mxu0
        %v4048 = vpop.f32.mrb[0].mxu0
        %v4049 = vadd.f32 %v3952, %v4048
        %v4050 = vpop.f32.mrb[0].mxu0
        %4051 = vmatprep.mubr.bf16.mxu0 %v1902
        %4052 = vmatmul.mubr.bf16.gmra.mrb[0].mxu0 %v1901
        %v4053 = vpop.f32.mrb[0].mxu0
        %v4054 = vadd.f32 %v3957, %v4053
        %v4055 = vpop.f32.mrb[0].mxu0
        %v4056 = vpop.f32.mrb[0].mxu0
        %v4057 = vadd.f32 %v3960, %v4056
        %v4058 = vpop.f32.mrb[0].mxu0
        %4059 = vmatprep.mubr.bf16.mxu0 %v1934
        %4060 = vmatmul.mubr.bf16.gmra.mrb[0].mxu0 %v1933
        %v4061 = vpop.f32.mrb[0].mxu0
        %v4062 = vadd.f32 %v3965, %v4061
        %v4063 = vpop.f32.mrb[0].mxu0
        %v4064 = vpop.f32.mrb[0].mxu0
        %v4065 = vadd.f32 %v3968, %v4064
        %v4066 = vpop.f32.mrb[0].mxu0
        %4067 = vmatprep.mubr.bf16.mxu0 %v1966
        %4068 = vmatmul.mubr.bf16.gmra.mrb[0].mxu0 %v1965
        %v4069 = vpop.f32.mrb[0].mxu0
        %v4070 = vadd.f32 %v3973, %v4069
        %v4071 = vpop.f32.mrb[0].mxu0
        %v4072 = vpop.f32.mrb[0].mxu0
        %v4073 = vadd.f32 %v3976, %v4072
        %v4074 = vpop.f32.mrb[0].mxu0
        %4075 = vdwg.mxu0
        %4076 = vmatprep.subr.bf16.mxu0 0
        %4077 = vmatpush1.bf16.msra.mxu0 %v3321
        %4078 = vmatprep.subr.bf16.mxu0 0
        %4079 = vmatpush1.bf16.msra.mxu0 %v3322
        %4080 = vmatprep.subr.bf16.mxu0 0
        %4081 = vmatpush1.bf16.msra.mxu0 %v3323
        %4082 = vmatprep.subr.bf16.mxu0 0
        %4083 = vmatpush1.bf16.msra.mxu0 %v3324
        %4084 = vmatprep.subr.bf16.mxu0 0
        %4085 = vmatpush1.bf16.msra.mxu0 %v3325
        %4086 = vmatprep.subr.bf16.mxu0 0
        %4087 = vmatpush1.bf16.msra.mxu0 %v3326
        %4088 = vmatprep.subr.bf16.mxu0 0
        %4089 = vmatpush1.bf16.msra.mxu0 %v3327
        %4090 = vmatprep.subr.bf16.mxu0 0
        %4091 = vmatpush1.bf16.msra.mxu0 %v3328
        %4092 = vmatprep.subr.bf16.mxu0 0
        %4093 = vmatpush1.bf16.msra.mxu0 %v3329
        %4094 = vmatprep.subr.bf16.mxu0 0
        %4095 = vmatpush1.bf16.msra.mxu0 %v3330
        %4096 = vmatprep.subr.bf16.mxu0 0
        %4097 = vmatpush1.bf16.msra.mxu0 %v3331
        %4098 = vmatprep.subr.bf16.mxu0 0
        %4099 = vmatpush1.bf16.msra.mxu0 %v3332
        %4100 = vmatprep.subr.bf16.mxu0 0
        %4101 = vmatpush1.bf16.msra.mxu0 %v3333
        %4102 = vmatprep.subr.bf16.mxu0 0
        %4103 = vmatpush1.bf16.msra.mxu0 %v3334
        %4104 = vmatprep.subr.bf16.mxu0 0
        %4105 = vmatpush1.bf16.msra.mxu0 %v3335
        %4106 = vmatprep.subr.bf16.mxu0 0
        %4107 = vmatpush1.bf16.msra.mxu0 %v3336
        %4108 = vmatprep.mubr.bf16.mxu0 %v1744
        %4109 = vmatmul.mubr.bf16.gmra.mrb[0].mxu0 %v1743
        %v4110 = vpop.f32.mrb[0].mxu0
        %v4111 = vadd.f32 %v4014, %v4110
        %v4112 = vpop.f32.mrb[0].mxu0
        %v4113 = vpop.f32.mrb[0].mxu0
        %v4114 = vadd.f32 %v4017, %v4113
        %v4115 = vpop.f32.mrb[0].mxu0
        %4116 = vmatprep.mubr.bf16.mxu0 %v1776
        %4117 = vmatmul.mubr.bf16.gmra.mrb[0].mxu0 %v1775
        %v4118 = vpop.f32.mrb[0].mxu0
        %v4119 = vadd.f32 %v4022, %v4118
        %v4120 = vpop.f32.mrb[0].mxu0
        %v4121 = vpop.f32.mrb[0].mxu0
        %v4122 = vadd.f32 %v4025, %v4121
        %v4123 = vpop.f32.mrb[0].mxu0
        %4124 = vmatprep.mubr.bf16.mxu0 %v1808
        %4125 = vmatmul.mubr.bf16.gmra.mrb[0].mxu0 %v1807
        %v4126 = vpop.f32.mrb[0].mxu0
        %v4127 = vadd.f32 %v4030, %v4126
        %v4128 = vpop.f32.mrb[0].mxu0
        %v4129 = vpop.f32.mrb[0].mxu0
        %v4130 = vadd.f32 %v4033, %v4129
        %v4131 = vpop.f32.mrb[0].mxu0
        %4132 = vmatprep.mubr.bf16.mxu0 %v1840
        %4133 = vmatmul.mubr.bf16.gmra.mrb[0].mxu0 %v1839
        %v4134 = vpop.f32.mrb[0].mxu0
        %v4135 = vadd.f32 %v4038, %v4134
        %v4136 = vpop.f32.mrb[0].mxu0
        %v4137 = vpop.f32.mrb[0].mxu0
        %v4138 = vadd.f32 %v4041, %v4137
        %v4139 = vpop.f32.mrb[0].mxu0
        %4140 = vmatprep.mubr.bf16.mxu0 %v1872
        %4141 = vmatmul.mubr.bf16.gmra.mrb[0].mxu0 %v1871
        %v4142 = vpop.f32.mrb[0].mxu0
        %v4143 = vadd.f32 %v4046, %v4142
        %v4144 = vpop.f32.mrb[0].mxu0
        %v4145 = vpop.f32.mrb[0].mxu0
        %v4146 = vadd.f32 %v4049, %v4145
        %v4147 = vpop.f32.mrb[0].mxu0
        %4148 = vmatprep.mubr.bf16.mxu0 %v1904
        %4149 = vmatmul.mubr.bf16.gmra.mrb[0].mxu0 %v1903
        %v4150 = vpop.f32.mrb[0].mxu0
        %v4151 = vadd.f32 %v4054, %v4150
        %v4152 = vpop.f32.mrb[0].mxu0
        %v4153 = vpop.f32.mrb[0].mxu0
        %v4154 = vadd.f32 %v4057, %v4153
        %v4155 = vpop.f32.mrb[0].mxu0
        %4156 = vmatprep.mubr.bf16.mxu0 %v1936
        %4157 = vmatmul.mubr.bf16.gmra.mrb[0].mxu0 %v1935
        %v4158 = vpop.f32.mrb[0].mxu0
        %v4159 = vadd.f32 %v4062, %v4158
        %v4160 = vpop.f32.mrb[0].mxu0
        %v4161 = vpop.f32.mrb[0].mxu0
        %v4162 = vadd.f32 %v4065, %v4161
        %v4163 = vpop.f32.mrb[0].mxu0
        %4164 = vmatprep.mubr.bf16.mxu0 %v1968
        %4165 = vmatmul.mubr.bf16.gmra.mrb[0].mxu0 %v1967
        %v4166 = vpop.f32.mrb[0].mxu0
        %v4167 = vadd.f32 %v4070, %v4166
        %v4168 = vpop.f32.mrb[0].mxu0
        %v4169 = vpop.f32.mrb[0].mxu0
        %v4170 = vadd.f32 %v4073, %v4169
        %v4171 = vpop.f32.mrb[0].mxu0
        %4172 = vdwg.mxu0
        %4173 = vmatprep.subr.bf16.mxu0 0
        %4174 = vmatpush1.bf16.msra.mxu0 %v3337
        %4175 = vmatprep.subr.bf16.mxu0 0
        %4176 = vmatpush1.bf16.msra.mxu0 %v3338
        %4177 = vmatprep.subr.bf16.mxu0 0
        %4178 = vmatpush1.bf16.msra.mxu0 %v3339
        %4179 = vmatprep.subr.bf16.mxu0 0
        %4180 = vmatpush1.bf16.msra.mxu0 %v3340
        %4181 = vmatprep.subr.bf16.mxu0 0
        %4182 = vmatpush1.bf16.msra.mxu0 %v3341
        %4183 = vmatprep.subr.bf16.mxu0 0
        %4184 = vmatpush1.bf16.msra.mxu0 %v3342
        %4185 = vmatprep.subr.bf16.mxu0 0
        %4186 = vmatpush1.bf16.msra.mxu0 %v3343
        %4187 = vmatprep.subr.bf16.mxu0 0
        %4188 = vmatpush1.bf16.msra.mxu0 %v3344
        %4189 = vmatprep.subr.bf16.mxu0 0
        %4190 = vmatpush1.bf16.msra.mxu0 %v3345
        %4191 = vmatprep.subr.bf16.mxu0 0
        %4192 = vmatpush1.bf16.msra.mxu0 %v3346
        %4193 = vmatprep.subr.bf16.mxu0 0
        %4194 = vmatpush1.bf16.msra.mxu0 %v3347
        %4195 = vmatprep.subr.bf16.mxu0 0
        %4196 = vmatpush1.bf16.msra.mxu0 %v3348
        %4197 = vmatprep.subr.bf16.mxu0 0
        %4198 = vmatpush1.bf16.msra.mxu0 %v3349
        %4199 = vmatprep.subr.bf16.mxu0 0
        %4200 = vmatpush1.bf16.msra.mxu0 %v3350
        %4201 = vmatprep.subr.bf16.mxu0 0
        %4202 = vmatpush1.bf16.msra.mxu0 %v3351
        %4203 = vmatprep.subr.bf16.mxu0 0
        %4204 = vmatpush1.bf16.msra.mxu0 %v3352
        %4205 = vmatprep.mubr.bf16.mxu0 %v1746
        %4206 = vmatmul.mubr.bf16.gmra.mrb[0].mxu0 %v1745
        %v4207 = vpop.f32.mrb[0].mxu0
        %v4208 = vadd.f32 %v4111, %v4207
        %v4209 = vpop.f32.mrb[0].mxu0
        %v4210 = vpop.f32.mrb[0].mxu0
        %v4211 = vadd.f32 %v4114, %v4210
        %v4212 = vpop.f32.mrb[0].mxu0
        %4213 = vmatprep.mubr.bf16.mxu0 %v1778
        %4214 = vmatmul.mubr.bf16.gmra.mrb[0].mxu0 %v1777
        %v4215 = vpop.f32.mrb[0].mxu0
        %v4216 = vadd.f32 %v4119, %v4215
        %v4217 = vpop.f32.mrb[0].mxu0
        %v4218 = vpop.f32.mrb[0].mxu0
        %v4219 = vadd.f32 %v4122, %v4218
        %v4220 = vpop.f32.mrb[0].mxu0
        %4221 = vmatprep.mubr.bf16.mxu0 %v1810
        %4222 = vmatmul.mubr.bf16.gmra.mrb[0].mxu0 %v1809
        %v4223 = vpop.f32.mrb[0].mxu0
        %v4224 = vadd.f32 %v4127, %v4223
        %v4225 = vpop.f32.mrb[0].mxu0
        %v4226 = vpop.f32.mrb[0].mxu0
        %v4227 = vadd.f32 %v4130, %v4226
        %v4228 = vpop.f32.mrb[0].mxu0
        %4229 = vmatprep.mubr.bf16.mxu0 %v1842
        %4230 = vmatmul.mubr.bf16.gmra.mrb[0].mxu0 %v1841
        %v4231 = vpop.f32.mrb[0].mxu0
        %v4232 = vadd.f32 %v4135, %v4231
        %v4233 = vpop.f32.mrb[0].mxu0
        %v4234 = vpop.f32.mrb[0].mxu0
        %v4235 = vadd.f32 %v4138, %v4234
        %v4236 = vpop.f32.mrb[0].mxu0
        %4237 = vmatprep.mubr.bf16.mxu0 %v1874
        %4238 = vmatmul.mubr.bf16.gmra.mrb[0].mxu0 %v1873
        %v4239 = vpop.f32.mrb[0].mxu0
        %v4240 = vadd.f32 %v4143, %v4239
        %v4241 = vpop.f32.mrb[0].mxu0
        %v4242 = vpop.f32.mrb[0].mxu0
        %v4243 = vadd.f32 %v4146, %v4242
        %v4244 = vpop.f32.mrb[0].mxu0
        %4245 = vmatprep.mubr.bf16.mxu0 %v1906
        %4246 = vmatmul.mubr.bf16.gmra.mrb[0].mxu0 %v1905
        %v4247 = vpop.f32.mrb[0].mxu0
        %v4248 = vadd.f32 %v4151, %v4247
        %v4249 = vpop.f32.mrb[0].mxu0
        %v4250 = vpop.f32.mrb[0].mxu0
        %v4251 = vadd.f32 %v4154, %v4250
        %v4252 = vpop.f32.mrb[0].mxu0
        %4253 = vmatprep.mubr.bf16.mxu0 %v1938
        %4254 = vmatmul.mubr.bf16.gmra.mrb[0].mxu0 %v1937
        %v4255 = vpop.f32.mrb[0].mxu0
        %v4256 = vadd.f32 %v4159, %v4255
        %v4257 = vpop.f32.mrb[0].mxu0
        %v4258 = vpop.f32.mrb[0].mxu0
        %v4259 = vadd.f32 %v4162, %v4258
        %v4260 = vpop.f32.mrb[0].mxu0
        %4261 = vmatprep.mubr.bf16.mxu0 %v1970
        %4262 = vmatmul.mubr.bf16.gmra.mrb[0].mxu0 %v1969
        %v4263 = vpop.f32.mrb[0].mxu0
        %v4264 = vadd.f32 %v4167, %v4263
        %v4265 = vpop.f32.mrb[0].mxu0
        %v4266 = vpop.f32.mrb[0].mxu0
        %v4267 = vadd.f32 %v4170, %v4266
        %v4268 = vpop.f32.mrb[0].mxu0
        %4269 = vdwg.mxu0
        %4270 = vmatprep.subr.bf16.mxu0 0
        %4271 = vmatpush1.bf16.msra.mxu0 %v3353
        %4272 = vmatprep.subr.bf16.mxu0 0
        %4273 = vmatpush1.bf16.msra.mxu0 %v3354
        %4274 = vmatprep.subr.bf16.mxu0 0
        %4275 = vmatpush1.bf16.msra.mxu0 %v3355
        %4276 = vmatprep.subr.bf16.mxu0 0
        %4277 = vmatpush1.bf16.msra.mxu0 %v3356
        %4278 = vmatprep.subr.bf16.mxu0 0
        %4279 = vmatpush1.bf16.msra.mxu0 %v3357
        %4280 = vmatprep.subr.bf16.mxu0 0
        %4281 = vmatpush1.bf16.msra.mxu0 %v3358
        %4282 = vmatprep.subr.bf16.mxu0 0
        %4283 = vmatpush1.bf16.msra.mxu0 %v3359
        %4284 = vmatprep.subr.bf16.mxu0 0
        %4285 = vmatpush1.bf16.msra.mxu0 %v3360
        %4286 = vmatprep.subr.bf16.mxu0 0
        %4287 = vmatpush1.bf16.msra.mxu0 %v3361
        %4288 = vmatprep.subr.bf16.mxu0 0
        %4289 = vmatpush1.bf16.msra.mxu0 %v3362
        %4290 = vmatprep.subr.bf16.mxu0 0
        %4291 = vmatpush1.bf16.msra.mxu0 %v3363
        %4292 = vmatprep.subr.bf16.mxu0 0
        %4293 = vmatpush1.bf16.msra.mxu0 %v3364
        %4294 = vmatprep.subr.bf16.mxu0 0
        %4295 = vmatpush1.bf16.msra.mxu0 %v3365
        %4296 = vmatprep.subr.bf16.mxu0 0
        %4297 = vmatpush1.bf16.msra.mxu0 %v3366
        %4298 = vmatprep.subr.bf16.mxu0 0
        %4299 = vmatpush1.bf16.msra.mxu0 %v3367
        %4300 = vmatprep.subr.bf16.mxu0 0
        %4301 = vmatpush1.bf16.msra.mxu0 %v3368
        %4302 = vmatprep.mubr.bf16.mxu0 %v1748
        %4303 = vmatmul.mubr.bf16.gmra.mrb[0].mxu0 %v1747
        %v4304 = vpop.f32.mrb[0].mxu0
        %v4305 = vadd.f32 %v4208, %v4304
        %v4306 = vpop.f32.mrb[0].mxu0
        %v4307 = vpop.f32.mrb[0].mxu0
        %v4308 = vadd.f32 %v4211, %v4307
        %v4309 = vpop.f32.mrb[0].mxu0
        %4310 = vmatprep.mubr.bf16.mxu0 %v1780
        %4311 = vmatmul.mubr.bf16.gmra.mrb[0].mxu0 %v1779
        %v4312 = vpop.f32.mrb[0].mxu0
        %v4313 = vadd.f32 %v4216, %v4312
        %v4314 = vpop.f32.mrb[0].mxu0
        %v4315 = vpop.f32.mrb[0].mxu0
        %v4316 = vadd.f32 %v4219, %v4315
        %v4317 = vpop.f32.mrb[0].mxu0
        %4318 = vmatprep.mubr.bf16.mxu0 %v1812
        %4319 = vmatmul.mubr.bf16.gmra.mrb[0].mxu0 %v1811
        %v4320 = vpop.f32.mrb[0].mxu0
        %v4321 = vadd.f32 %v4224, %v4320
        %v4322 = vpop.f32.mrb[0].mxu0
        %v4323 = vpop.f32.mrb[0].mxu0
        %v4324 = vadd.f32 %v4227, %v4323
        %v4325 = vpop.f32.mrb[0].mxu0
        %4326 = vmatprep.mubr.bf16.mxu0 %v1844
        %4327 = vmatmul.mubr.bf16.gmra.mrb[0].mxu0 %v1843
        %v4328 = vpop.f32.mrb[0].mxu0
        %v4329 = vadd.f32 %v4232, %v4328
        %v4330 = vpop.f32.mrb[0].mxu0
        %v4331 = vpop.f32.mrb[0].mxu0
        %v4332 = vadd.f32 %v4235, %v4331
        %v4333 = vpop.f32.mrb[0].mxu0
        %4334 = vmatprep.mubr.bf16.mxu0 %v1876
        %4335 = vmatmul.mubr.bf16.gmra.mrb[0].mxu0 %v1875
        %v4336 = vpop.f32.mrb[0].mxu0
        %v4337 = vadd.f32 %v4240, %v4336
        %v4338 = vpop.f32.mrb[0].mxu0
        %v4339 = vpop.f32.mrb[0].mxu0
        %v4340 = vadd.f32 %v4243, %v4339
        %v4341 = vpop.f32.mrb[0].mxu0
        %4342 = vmatprep.mubr.bf16.mxu0 %v1908
        %4343 = vmatmul.mubr.bf16.gmra.mrb[0].mxu0 %v1907
        %v4344 = vpop.f32.mrb[0].mxu0
        %v4345 = vadd.f32 %v4248, %v4344
        %v4346 = vpop.f32.mrb[0].mxu0
        %v4347 = vpop.f32.mrb[0].mxu0
        %v4348 = vadd.f32 %v4251, %v4347
        %v4349 = vpop.f32.mrb[0].mxu0
        %4350 = vmatprep.mubr.bf16.mxu0 %v1940
        %4351 = vmatmul.mubr.bf16.gmra.mrb[0].mxu0 %v1939
        %v4352 = vpop.f32.mrb[0].mxu0
        %v4353 = vadd.f32 %v4256, %v4352
        %v4354 = vpop.f32.mrb[0].mxu0
        %v4355 = vpop.f32.mrb[0].mxu0
        %v4356 = vadd.f32 %v4259, %v4355
        %v4357 = vpop.f32.mrb[0].mxu0
        %4358 = vmatprep.mubr.bf16.mxu0 %v1972
        %4359 = vmatmul.mubr.bf16.gmra.mrb[0].mxu0 %v1971
        %v4360 = vpop.f32.mrb[0].mxu0
        %v4361 = vadd.f32 %v4264, %v4360
        %v4362 = vpop.f32.mrb[0].mxu0
        %v4363 = vpop.f32.mrb[0].mxu0
        %v4364 = vadd.f32 %v4267, %v4363
        %v4365 = vpop.f32.mrb[0].mxu0
        %4366 = vdwg.mxu0
        %4367 = vmatprep.subr.bf16.mxu0 0
        %4368 = vmatpush1.bf16.msra.mxu0 %v3369
        %4369 = vmatprep.subr.bf16.mxu0 0
        %4370 = vmatpush1.bf16.msra.mxu0 %v3370
        %4371 = vmatprep.subr.bf16.mxu0 0
        %4372 = vmatpush1.bf16.msra.mxu0 %v3371
        %4373 = vmatprep.subr.bf16.mxu0 0
        %4374 = vmatpush1.bf16.msra.mxu0 %v3372
        %4375 = vmatprep.subr.bf16.mxu0 0
        %4376 = vmatpush1.bf16.msra.mxu0 %v3373
        %4377 = vmatprep.subr.bf16.mxu0 0
        %4378 = vmatpush1.bf16.msra.mxu0 %v3374
        %4379 = vmatprep.subr.bf16.mxu0 0
        %4380 = vmatpush1.bf16.msra.mxu0 %v3375
        %4381 = vmatprep.subr.bf16.mxu0 0
        %4382 = vmatpush1.bf16.msra.mxu0 %v3376
        %4383 = vmatprep.subr.bf16.mxu0 0
        %4384 = vmatpush1.bf16.msra.mxu0 %v3377
        %4385 = vmatprep.subr.bf16.mxu0 0
        %4386 = vmatpush1.bf16.msra.mxu0 %v3378
        %4387 = vmatprep.subr.bf16.mxu0 0
        %4388 = vmatpush1.bf16.msra.mxu0 %v3379
        %4389 = vmatprep.subr.bf16.mxu0 0
        %4390 = vmatpush1.bf16.msra.mxu0 %v3380
        %4391 = vmatprep.subr.bf16.mxu0 0
        %4392 = vmatpush1.bf16.msra.mxu0 %v3381
        %4393 = vmatprep.subr.bf16.mxu0 0
        %4394 = vmatpush1.bf16.msra.mxu0 %v3382
        %4395 = vmatprep.subr.bf16.mxu0 0
        %4396 = vmatpush1.bf16.msra.mxu0 %v3383
        %4397 = vmatprep.subr.bf16.mxu0 0
        %4398 = vmatpush1.bf16.msra.mxu0 %v3384
        %4399 = vmatprep.mubr.bf16.mxu0 %v1750
        %4400 = vmatmul.mubr.bf16.gmra.mrb[0].mxu0 %v1749
        %v4401 = vpop.f32.mrb[0].mxu0
        %v4402 = vadd.f32 %v4305, %v4401
        %v4403 = vpop.f32.mrb[0].mxu0
        %v4404 = vpop.f32.mrb[0].mxu0
        %v4405 = vadd.f32 %v4308, %v4404
        %v4406 = vpop.f32.mrb[0].mxu0
        %4407 = vmatprep.mubr.bf16.mxu0 %v1782
        %4408 = vmatmul.mubr.bf16.gmra.mrb[0].mxu0 %v1781
        %v4409 = vpop.f32.mrb[0].mxu0
        %v4410 = vadd.f32 %v4313, %v4409
        %v4411 = vpop.f32.mrb[0].mxu0
        %v4412 = vpop.f32.mrb[0].mxu0
        %v4413 = vadd.f32 %v4316, %v4412
        %v4414 = vpop.f32.mrb[0].mxu0
        %4415 = vmatprep.mubr.bf16.mxu0 %v1814
        %4416 = vmatmul.mubr.bf16.gmra.mrb[0].mxu0 %v1813
        %v4417 = vpop.f32.mrb[0].mxu0
        %v4418 = vadd.f32 %v4321, %v4417
        %v4419 = vpop.f32.mrb[0].mxu0
        %v4420 = vpop.f32.mrb[0].mxu0
        %v4421 = vadd.f32 %v4324, %v4420
        %v4422 = vpop.f32.mrb[0].mxu0
        %4423 = vmatprep.mubr.bf16.mxu0 %v1846
        %4424 = vmatmul.mubr.bf16.gmra.mrb[0].mxu0 %v1845
        %v4425 = vpop.f32.mrb[0].mxu0
        %v4426 = vadd.f32 %v4329, %v4425
        %v4427 = vpop.f32.mrb[0].mxu0
        %v4428 = vpop.f32.mrb[0].mxu0
        %v4429 = vadd.f32 %v4332, %v4428
        %v4430 = vpop.f32.mrb[0].mxu0
        %4431 = vmatprep.mubr.bf16.mxu0 %v1878
        %4432 = vmatmul.mubr.bf16.gmra.mrb[0].mxu0 %v1877
        %v4433 = vpop.f32.mrb[0].mxu0
        %v4434 = vadd.f32 %v4337, %v4433
        %v4435 = vpop.f32.mrb[0].mxu0
        %v4436 = vpop.f32.mrb[0].mxu0
        %v4437 = vadd.f32 %v4340, %v4436
        %v4438 = vpop.f32.mrb[0].mxu0
        %4439 = vmatprep.mubr.bf16.mxu0 %v1910
        %4440 = vmatmul.mubr.bf16.gmra.mrb[0].mxu0 %v1909
        %v4441 = vpop.f32.mrb[0].mxu0
        %v4442 = vadd.f32 %v4345, %v4441
        %v4443 = vpop.f32.mrb[0].mxu0
        %v4444 = vpop.f32.mrb[0].mxu0
        %v4445 = vadd.f32 %v4348, %v4444
        %v4446 = vpop.f32.mrb[0].mxu0
        %4447 = vmatprep.mubr.bf16.mxu0 %v1942
        %4448 = vmatmul.mubr.bf16.gmra.mrb[0].mxu0 %v1941
        %v4449 = vpop.f32.mrb[0].mxu0
        %v4450 = vadd.f32 %v4353, %v4449
        %v4451 = vpop.f32.mrb[0].mxu0
        %v4452 = vpop.f32.mrb[0].mxu0
        %v4453 = vadd.f32 %v4356, %v4452
        %v4454 = vpop.f32.mrb[0].mxu0
        %4455 = vmatprep.mubr.bf16.mxu0 %v1974
        %4456 = vmatmul.mubr.bf16.gmra.mrb[0].mxu0 %v1973
        %v4457 = vpop.f32.mrb[0].mxu0
        %v4458 = vadd.f32 %v4361, %v4457
        %v4459 = vpop.f32.mrb[0].mxu0
        %v4460 = vpop.f32.mrb[0].mxu0
        %v4461 = vadd.f32 %v4364, %v4460
        %v4462 = vpop.f32.mrb[0].mxu0
        %4463 = vdwg.mxu0
        %4464 = vmatprep.subr.bf16.mxu0 0
        %4465 = vmatpush1.bf16.msra.mxu0 %v3385
        %4466 = vmatprep.subr.bf16.mxu0 0
        %4467 = vmatpush1.bf16.msra.mxu0 %v3386
        %4468 = vmatprep.subr.bf16.mxu0 0
        %4469 = vmatpush1.bf16.msra.mxu0 %v3387
        %4470 = vmatprep.subr.bf16.mxu0 0
        %4471 = vmatpush1.bf16.msra.mxu0 %v3388
        %4472 = vmatprep.subr.bf16.mxu0 0
        %4473 = vmatpush1.bf16.msra.mxu0 %v3389
        %4474 = vmatprep.subr.bf16.mxu0 0
        %4475 = vmatpush1.bf16.msra.mxu0 %v3390
        %4476 = vmatprep.subr.bf16.mxu0 0
        %4477 = vmatpush1.bf16.msra.mxu0 %v3391
        %4478 = vmatprep.subr.bf16.mxu0 0
        %4479 = vmatpush1.bf16.msra.mxu0 %v3392
        %4480 = vmatprep.subr.bf16.mxu0 0
        %4481 = vmatpush1.bf16.msra.mxu0 %v3393
        %4482 = vmatprep.subr.bf16.mxu0 0
        %4483 = vmatpush1.bf16.msra.mxu0 %v3394
        %4484 = vmatprep.subr.bf16.mxu0 0
        %4485 = vmatpush1.bf16.msra.mxu0 %v3395
        %4486 = vmatprep.subr.bf16.mxu0 0
        %4487 = vmatpush1.bf16.msra.mxu0 %v3396
        %4488 = vmatprep.subr.bf16.mxu0 0
        %4489 = vmatpush1.bf16.msra.mxu0 %v3397
        %4490 = vmatprep.subr.bf16.mxu0 0
        %4491 = vmatpush1.bf16.msra.mxu0 %v3398
        %4492 = vmatprep.subr.bf16.mxu0 0
        %4493 = vmatpush1.bf16.msra.mxu0 %v3399
        %4494 = vmatprep.subr.bf16.mxu0 0
        %4495 = vmatpush1.bf16.msra.mxu0 %v3400
        %4496 = vmatprep.mubr.bf16.mxu0 %v1752
        %4497 = vmatmul.mubr.bf16.gmra.mrb[0].mxu0 %v1751
        %v4498 = vpop.f32.mrb[0].mxu0
        %v4499 = vadd.f32 %v4402, %v4498
        %v4500 = vpop.f32.mrb[0].mxu0
        %v4501 = vpop.f32.mrb[0].mxu0
        %v4502 = vadd.f32 %v4405, %v4501
        %v4503 = vpop.f32.mrb[0].mxu0
        %4504 = vmatprep.mubr.bf16.mxu0 %v1784
        %4505 = vmatmul.mubr.bf16.gmra.mrb[0].mxu0 %v1783
        %v4506 = vpop.f32.mrb[0].mxu0
        %v4507 = vadd.f32 %v4410, %v4506
        %v4508 = vpop.f32.mrb[0].mxu0
        %v4509 = vpop.f32.mrb[0].mxu0
        %v4510 = vadd.f32 %v4413, %v4509
        %v4511 = vpop.f32.mrb[0].mxu0
        %4512 = vmatprep.mubr.bf16.mxu0 %v1816
        %4513 = vmatmul.mubr.bf16.gmra.mrb[0].mxu0 %v1815
        %v4514 = vpop.f32.mrb[0].mxu0
        %v4515 = vadd.f32 %v4418, %v4514
        %v4516 = vpop.f32.mrb[0].mxu0
        %v4517 = vpop.f32.mrb[0].mxu0
        %v4518 = vadd.f32 %v4421, %v4517
        %v4519 = vpop.f32.mrb[0].mxu0
        %4520 = vmatprep.mubr.bf16.mxu0 %v1848
        %4521 = vmatmul.mubr.bf16.gmra.mrb[0].mxu0 %v1847
        %v4522 = vpop.f32.mrb[0].mxu0
        %v4523 = vadd.f32 %v4426, %v4522
        %v4524 = vpop.f32.mrb[0].mxu0
        %v4525 = vpop.f32.mrb[0].mxu0
        %v4526 = vadd.f32 %v4429, %v4525
        %v4527 = vpop.f32.mrb[0].mxu0
        %4528 = vmatprep.mubr.bf16.mxu0 %v1880
        %4529 = vmatmul.mubr.bf16.gmra.mrb[0].mxu0 %v1879
        %v4530 = vpop.f32.mrb[0].mxu0
        %v4531 = vadd.f32 %v4434, %v4530
        %v4532 = vpop.f32.mrb[0].mxu0
        %v4533 = vpop.f32.mrb[0].mxu0
        %v4534 = vadd.f32 %v4437, %v4533
        %v4535 = vpop.f32.mrb[0].mxu0
        %4536 = vmatprep.mubr.bf16.mxu0 %v1912
        %4537 = vmatmul.mubr.bf16.gmra.mrb[0].mxu0 %v1911
        %v4538 = vpop.f32.mrb[0].mxu0
        %v4539 = vadd.f32 %v4442, %v4538
        %v4540 = vpop.f32.mrb[0].mxu0
        %v4541 = vpop.f32.mrb[0].mxu0
        %v4542 = vadd.f32 %v4445, %v4541
        %v4543 = vpop.f32.mrb[0].mxu0
        %4544 = vmatprep.mubr.bf16.mxu0 %v1944
        %4545 = vmatmul.mubr.bf16.gmra.mrb[0].mxu0 %v1943
        %v4546 = vpop.f32.mrb[0].mxu0
        %v4547 = vadd.f32 %v4450, %v4546
        %v4548 = vpop.f32.mrb[0].mxu0
        %v4549 = vpop.f32.mrb[0].mxu0
        %v4550 = vadd.f32 %v4453, %v4549
        %v4551 = vpop.f32.mrb[0].mxu0
        %4552 = vmatprep.mubr.bf16.mxu0 %v1976
        %4553 = vmatmul.mubr.bf16.gmra.mrb[0].mxu0 %v1975
        %v4554 = vpop.f32.mrb[0].mxu0
        %v4555 = vadd.f32 %v4458, %v4554
        %v4556 = vpop.f32.mrb[0].mxu0
        %v4557 = vpop.f32.mrb[0].mxu0
        %v4558 = vadd.f32 %v4461, %v4557
        %v4559 = vpop.f32.mrb[0].mxu0
        %4560 = vdwg.mxu0
        %4561 = vmatprep.subr.bf16.mxu0 0
        %4562 = vmatpush1.bf16.msra.mxu0 %v3401
        %4563 = vmatprep.subr.bf16.mxu0 0
        %4564 = vmatpush1.bf16.msra.mxu0 %v3402
        %4565 = vmatprep.subr.bf16.mxu0 0
        %4566 = vmatpush1.bf16.msra.mxu0 %v3403
        %4567 = vmatprep.subr.bf16.mxu0 0
        %4568 = vmatpush1.bf16.msra.mxu0 %v3404
        %4569 = vmatprep.subr.bf16.mxu0 0
        %4570 = vmatpush1.bf16.msra.mxu0 %v3405
        %4571 = vmatprep.subr.bf16.mxu0 0
        %4572 = vmatpush1.bf16.msra.mxu0 %v3406
        %4573 = vmatprep.subr.bf16.mxu0 0
        %4574 = vmatpush1.bf16.msra.mxu0 %v3407
        %4575 = vmatprep.subr.bf16.mxu0 0
        %4576 = vmatpush1.bf16.msra.mxu0 %v3408
        %4577 = vmatprep.subr.bf16.mxu0 0
        %4578 = vmatpush1.bf16.msra.mxu0 %v3409
        %4579 = vmatprep.subr.bf16.mxu0 0
        %4580 = vmatpush1.bf16.msra.mxu0 %v3410
        %4581 = vmatprep.subr.bf16.mxu0 0
        %4582 = vmatpush1.bf16.msra.mxu0 %v3411
        %4583 = vmatprep.subr.bf16.mxu0 0
        %4584 = vmatpush1.bf16.msra.mxu0 %v3412
        %4585 = vmatprep.subr.bf16.mxu0 0
        %4586 = vmatpush1.bf16.msra.mxu0 %v3413
        %4587 = vmatprep.subr.bf16.mxu0 0
        %4588 = vmatpush1.bf16.msra.mxu0 %v3414
        %4589 = vmatprep.subr.bf16.mxu0 0
        %4590 = vmatpush1.bf16.msra.mxu0 %v3415
        %4591 = vmatprep.subr.bf16.mxu0 0
        %4592 = vmatpush1.bf16.msra.mxu0 %v3416
        %4593 = vmatprep.mubr.bf16.mxu0 %v1754
        %4594 = vmatmul.mubr.bf16.gmra.mrb[0].mxu0 %v1753
        %v4595 = vpop.f32.mrb[0].mxu0
        %v4596 = vadd.f32 %v4499, %v4595
        %v4597 = vpop.f32.mrb[0].mxu0
        %v4598 = vpop.f32.mrb[0].mxu0
        %v4599 = vadd.f32 %v4502, %v4598
        %v4600 = vpop.f32.mrb[0].mxu0
        %4601 = vmatprep.mubr.bf16.mxu0 %v1786
        %4602 = vmatmul.mubr.bf16.gmra.mrb[0].mxu0 %v1785
        %v4603 = vpop.f32.mrb[0].mxu0
        %v4604 = vadd.f32 %v4507, %v4603
        %v4605 = vpop.f32.mrb[0].mxu0
        %v4606 = vpop.f32.mrb[0].mxu0
        %v4607 = vadd.f32 %v4510, %v4606
        %v4608 = vpop.f32.mrb[0].mxu0
        %4609 = vmatprep.mubr.bf16.mxu0 %v1818
        %4610 = vmatmul.mubr.bf16.gmra.mrb[0].mxu0 %v1817
        %v4611 = vpop.f32.mrb[0].mxu0
        %v4612 = vadd.f32 %v4515, %v4611
        %v4613 = vpop.f32.mrb[0].mxu0
        %v4614 = vpop.f32.mrb[0].mxu0
        %v4615 = vadd.f32 %v4518, %v4614
        %v4616 = vpop.f32.mrb[0].mxu0
        %4617 = vmatprep.mubr.bf16.mxu0 %v1850
        %4618 = vmatmul.mubr.bf16.gmra.mrb[0].mxu0 %v1849
        %v4619 = vpop.f32.mrb[0].mxu0
        %v4620 = vadd.f32 %v4523, %v4619
        %v4621 = vpop.f32.mrb[0].mxu0
        %v4622 = vpop.f32.mrb[0].mxu0
        %v4623 = vadd.f32 %v4526, %v4622
        %v4624 = vpop.f32.mrb[0].mxu0
        %4625 = vmatprep.mubr.bf16.mxu0 %v1882
        %4626 = vmatmul.mubr.bf16.gmra.mrb[0].mxu0 %v1881
        %v4627 = vpop.f32.mrb[0].mxu0
        %v4628 = vadd.f32 %v4531, %v4627
        %v4629 = vpop.f32.mrb[0].mxu0
        %v4630 = vpop.f32.mrb[0].mxu0
        %v4631 = vadd.f32 %v4534, %v4630
        %v4632 = vpop.f32.mrb[0].mxu0
        %4633 = vmatprep.mubr.bf16.mxu0 %v1914
        %4634 = vmatmul.mubr.bf16.gmra.mrb[0].mxu0 %v1913
        %v4635 = vpop.f32.mrb[0].mxu0
        %v4636 = vadd.f32 %v4539, %v4635
        %v4637 = vpop.f32.mrb[0].mxu0
        %v4638 = vpop.f32.mrb[0].mxu0
        %v4639 = vadd.f32 %v4542, %v4638
        %v4640 = vpop.f32.mrb[0].mxu0
        %4641 = vmatprep.mubr.bf16.mxu0 %v1946
        %4642 = vmatmul.mubr.bf16.gmra.mrb[0].mxu0 %v1945
        %v4643 = vpop.f32.mrb[0].mxu0
        %v4644 = vadd.f32 %v4547, %v4643
        %v4645 = vpop.f32.mrb[0].mxu0
        %v4646 = vpop.f32.mrb[0].mxu0
        %v4647 = vadd.f32 %v4550, %v4646
        %v4648 = vpop.f32.mrb[0].mxu0
        %4649 = vmatprep.mubr.bf16.mxu0 %v1978
        %4650 = vmatmul.mubr.bf16.gmra.mrb[0].mxu0 %v1977
        %v4651 = vpop.f32.mrb[0].mxu0
        %v4652 = vadd.f32 %v4555, %v4651
        %v4653 = vpop.f32.mrb[0].mxu0
        %v4654 = vpop.f32.mrb[0].mxu0
        %v4655 = vadd.f32 %v4558, %v4654
        %v4656 = vpop.f32.mrb[0].mxu0
        %4657 = vdwg.mxu0
        %4658 = vmatprep.subr.bf16.mxu0 0
        %4659 = vmatpush1.bf16.msra.mxu0 %v3417
        %4660 = vmatprep.subr.bf16.mxu0 0
        %4661 = vmatpush1.bf16.msra.mxu0 %v3418
        %4662 = vmatprep.subr.bf16.mxu0 0
        %4663 = vmatpush1.bf16.msra.mxu0 %v3419
        %4664 = vmatprep.subr.bf16.mxu0 0
        %4665 = vmatpush1.bf16.msra.mxu0 %v3420
        %4666 = vmatprep.subr.bf16.mxu0 0
        %4667 = vmatpush1.bf16.msra.mxu0 %v3421
        %4668 = vmatprep.subr.bf16.mxu0 0
        %4669 = vmatpush1.bf16.msra.mxu0 %v3422
        %4670 = vmatprep.subr.bf16.mxu0 0
        %4671 = vmatpush1.bf16.msra.mxu0 %v3423
        %4672 = vmatprep.subr.bf16.mxu0 0
        %4673 = vmatpush1.bf16.msra.mxu0 %v3424
        %4674 = vmatprep.subr.bf16.mxu0 0
        %4675 = vmatpush1.bf16.msra.mxu0 %v3425
        %4676 = vmatprep.subr.bf16.mxu0 0
        %4677 = vmatpush1.bf16.msra.mxu0 %v3426
        %4678 = vmatprep.subr.bf16.mxu0 0
        %4679 = vmatpush1.bf16.msra.mxu0 %v3427
        %4680 = vmatprep.subr.bf16.mxu0 0
        %4681 = vmatpush1.bf16.msra.mxu0 %v3428
        %4682 = vmatprep.subr.bf16.mxu0 0
        %4683 = vmatpush1.bf16.msra.mxu0 %v3429
        %4684 = vmatprep.subr.bf16.mxu0 0
        %4685 = vmatpush1.bf16.msra.mxu0 %v3430
        %4686 = vmatprep.subr.bf16.mxu0 0
        %4687 = vmatpush1.bf16.msra.mxu0 %v3431
        %4688 = vmatprep.subr.bf16.mxu0 0
        %4689 = vmatpush1.bf16.msra.mxu0 %v3432
        %4690 = vmatprep.mubr.bf16.mxu0 %v1756
        %4691 = vmatmul.mubr.bf16.gmra.mrb[0].mxu0 %v1755
        %v4692 = vpop.f32.mrb[0].mxu0
        %v4693 = vadd.f32 %v4596, %v4692
        %v4694 = vpop.f32.mrb[0].mxu0
        %v4695 = vpop.f32.mrb[0].mxu0
        %v4696 = vadd.f32 %v4599, %v4695
        %v4697 = vpop.f32.mrb[0].mxu0
        %4698 = vmatprep.mubr.bf16.mxu0 %v1788
        %4699 = vmatmul.mubr.bf16.gmra.mrb[0].mxu0 %v1787
        %v4700 = vpop.f32.mrb[0].mxu0
        %v4701 = vadd.f32 %v4604, %v4700
        %v4702 = vpop.f32.mrb[0].mxu0
        %v4703 = vpop.f32.mrb[0].mxu0
        %v4704 = vadd.f32 %v4607, %v4703
        %v4705 = vpop.f32.mrb[0].mxu0
        %4706 = vmatprep.mubr.bf16.mxu0 %v1820
        %4707 = vmatmul.mubr.bf16.gmra.mrb[0].mxu0 %v1819
        %v4708 = vpop.f32.mrb[0].mxu0
        %v4709 = vadd.f32 %v4612, %v4708
        %v4710 = vpop.f32.mrb[0].mxu0
        %v4711 = vpop.f32.mrb[0].mxu0
        %v4712 = vadd.f32 %v4615, %v4711
        %v4713 = vpop.f32.mrb[0].mxu0
        %4714 = vmatprep.mubr.bf16.mxu0 %v1852
        %4715 = vmatmul.mubr.bf16.gmra.mrb[0].mxu0 %v1851
        %v4716 = vpop.f32.mrb[0].mxu0
        %v4717 = vadd.f32 %v4620, %v4716
        %v4718 = vpop.f32.mrb[0].mxu0
        %v4719 = vpop.f32.mrb[0].mxu0
        %v4720 = vadd.f32 %v4623, %v4719
        %v4721 = vpop.f32.mrb[0].mxu0
        %4722 = vmatprep.mubr.bf16.mxu0 %v1884
        %4723 = vmatmul.mubr.bf16.gmra.mrb[0].mxu0 %v1883
        %v4724 = vpop.f32.mrb[0].mxu0
        %v4725 = vadd.f32 %v4628, %v4724
        %v4726 = vpop.f32.mrb[0].mxu0
        %v4727 = vpop.f32.mrb[0].mxu0
        %v4728 = vadd.f32 %v4631, %v4727
        %v4729 = vpop.f32.mrb[0].mxu0
        %4730 = vmatprep.mubr.bf16.mxu0 %v1916
        %4731 = vmatmul.mubr.bf16.gmra.mrb[0].mxu0 %v1915
        %v4732 = vpop.f32.mrb[0].mxu0
        %v4733 = vadd.f32 %v4636, %v4732
        %v4734 = vpop.f32.mrb[0].mxu0
        %v4735 = vpop.f32.mrb[0].mxu0
        %v4736 = vadd.f32 %v4639, %v4735
        %v4737 = vpop.f32.mrb[0].mxu0
        %4738 = vmatprep.mubr.bf16.mxu0 %v1948
        %4739 = vmatmul.mubr.bf16.gmra.mrb[0].mxu0 %v1947
        %v4740 = vpop.f32.mrb[0].mxu0
        %v4741 = vadd.f32 %v4644, %v4740
        %v4742 = vpop.f32.mrb[0].mxu0
        %v4743 = vpop.f32.mrb[0].mxu0
        %v4744 = vadd.f32 %v4647, %v4743
        %v4745 = vpop.f32.mrb[0].mxu0
        %4746 = vmatprep.mubr.bf16.mxu0 %v1980
        %4747 = vmatmul.mubr.bf16.gmra.mrb[0].mxu0 %v1979
        %v4748 = vpop.f32.mrb[0].mxu0
        %v4749 = vadd.f32 %v4652, %v4748
        %v4750 = vpop.f32.mrb[0].mxu0
        %v4751 = vpop.f32.mrb[0].mxu0
        %v4752 = vadd.f32 %v4655, %v4751
        %v4753 = vpop.f32.mrb[0].mxu0
        %4754 = vdwg.mxu0
        %4755 = vmatprep.subr.bf16.mxu0 0
        %4756 = vmatpush1.bf16.msra.mxu0 %v3433
        %4757 = vmatprep.subr.bf16.mxu0 0
        %4758 = vmatpush1.bf16.msra.mxu0 %v3434
        %4759 = vmatprep.subr.bf16.mxu0 0
        %4760 = vmatpush1.bf16.msra.mxu0 %v3435
        %4761 = vmatprep.subr.bf16.mxu0 0
        %4762 = vmatpush1.bf16.msra.mxu0 %v3436
        %4763 = vmatprep.subr.bf16.mxu0 0
        %4764 = vmatpush1.bf16.msra.mxu0 %v3437
        %4765 = vmatprep.subr.bf16.mxu0 0
        %4766 = vmatpush1.bf16.msra.mxu0 %v3438
        %4767 = vmatprep.subr.bf16.mxu0 0
        %4768 = vmatpush1.bf16.msra.mxu0 %v3439
        %4769 = vmatprep.subr.bf16.mxu0 0
        %4770 = vmatpush1.bf16.msra.mxu0 %v3440
        %4771 = vmatprep.subr.bf16.mxu0 0
        %4772 = vmatpush1.bf16.msra.mxu0 %v3441
        %4773 = vmatprep.subr.bf16.mxu0 0
        %4774 = vmatpush1.bf16.msra.mxu0 %v3442
        %4775 = vmatprep.subr.bf16.mxu0 0
        %4776 = vmatpush1.bf16.msra.mxu0 %v3443
        %4777 = vmatprep.subr.bf16.mxu0 0
        %4778 = vmatpush1.bf16.msra.mxu0 %v3444
        %4779 = vmatprep.subr.bf16.mxu0 0
        %4780 = vmatpush1.bf16.msra.mxu0 %v3445
        %4781 = vmatprep.subr.bf16.mxu0 0
        %4782 = vmatpush1.bf16.msra.mxu0 %v3446
        %4783 = vmatprep.subr.bf16.mxu0 0
        %4784 = vmatpush1.bf16.msra.mxu0 %v3447
        %4785 = vmatprep.subr.bf16.mxu0 0
        %4786 = vmatpush1.bf16.msra.mxu0 %v3448
        %4787 = vmatprep.mubr.bf16.mxu0 %v1758
        %4788 = vmatmul.mubr.bf16.gmra.mrb[0].mxu0 %v1757
        %v4789 = vpop.f32.mrb[0].mxu0
        %v4790 = vadd.f32 %v4693, %v4789
        %v4791 = vpop.f32.mrb[0].mxu0
        %v4792 = vpop.f32.mrb[0].mxu0
        %v4793 = vadd.f32 %v4696, %v4792
        %v4794 = vpop.f32.mrb[0].mxu0
        %4795 = vmatprep.mubr.bf16.mxu0 %v1790
        %4796 = vmatmul.mubr.bf16.gmra.mrb[0].mxu0 %v1789
        %v4797 = vpop.f32.mrb[0].mxu0
        %v4798 = vadd.f32 %v4701, %v4797
        %v4799 = vpop.f32.mrb[0].mxu0
        %v4800 = vpop.f32.mrb[0].mxu0
        %v4801 = vadd.f32 %v4704, %v4800
        %v4802 = vpop.f32.mrb[0].mxu0
        %4803 = vmatprep.mubr.bf16.mxu0 %v1822
        %4804 = vmatmul.mubr.bf16.gmra.mrb[0].mxu0 %v1821
        %v4805 = vpop.f32.mrb[0].mxu0
        %v4806 = vadd.f32 %v4709, %v4805
        %v4807 = vpop.f32.mrb[0].mxu0
        %v4808 = vpop.f32.mrb[0].mxu0
        %v4809 = vadd.f32 %v4712, %v4808
        %v4810 = vpop.f32.mrb[0].mxu0
        %4811 = vmatprep.mubr.bf16.mxu0 %v1854
        %4812 = vmatmul.mubr.bf16.gmra.mrb[0].mxu0 %v1853
        %v4813 = vpop.f32.mrb[0].mxu0
        %v4814 = vadd.f32 %v4717, %v4813
        %v4815 = vpop.f32.mrb[0].mxu0
        %v4816 = vpop.f32.mrb[0].mxu0
        %v4817 = vadd.f32 %v4720, %v4816
        %v4818 = vpop.f32.mrb[0].mxu0
        %4819 = vmatprep.mubr.bf16.mxu0 %v1886
        %4820 = vmatmul.mubr.bf16.gmra.mrb[0].mxu0 %v1885
        %v4821 = vpop.f32.mrb[0].mxu0
        %v4822 = vadd.f32 %v4725, %v4821
        %v4823 = vpop.f32.mrb[0].mxu0
        %v4824 = vpop.f32.mrb[0].mxu0
        %v4825 = vadd.f32 %v4728, %v4824
        %v4826 = vpop.f32.mrb[0].mxu0
        %4827 = vmatprep.mubr.bf16.mxu0 %v1918
        %4828 = vmatmul.mubr.bf16.gmra.mrb[0].mxu0 %v1917
        %v4829 = vpop.f32.mrb[0].mxu0
        %v4830 = vadd.f32 %v4733, %v4829
        %v4831 = vpop.f32.mrb[0].mxu0
        %v4832 = vpop.f32.mrb[0].mxu0
        %v4833 = vadd.f32 %v4736, %v4832
        %v4834 = vpop.f32.mrb[0].mxu0
        %4835 = vmatprep.mubr.bf16.mxu0 %v1950
        %4836 = vmatmul.mubr.bf16.gmra.mrb[0].mxu0 %v1949
        %v4837 = vpop.f32.mrb[0].mxu0
        %v4838 = vadd.f32 %v4741, %v4837
        %v4839 = vpop.f32.mrb[0].mxu0
        %v4840 = vpop.f32.mrb[0].mxu0
        %v4841 = vadd.f32 %v4744, %v4840
        %v4842 = vpop.f32.mrb[0].mxu0
        %4843 = vmatprep.mubr.bf16.mxu0 %v1982
        %4844 = vmatmul.mubr.bf16.gmra.mrb[0].mxu0 %v1981
        %v4845 = vpop.f32.mrb[0].mxu0
        %v4846 = vadd.f32 %v4749, %v4845
        %v4847 = vpop.f32.mrb[0].mxu0
        %v4848 = vpop.f32.mrb[0].mxu0
        %v4849 = vadd.f32 %v4752, %v4848
        %v4850 = vpop.f32.mrb[0].mxu0
        %4851 = vdwg.mxu0
        %4852 = vmatprep.subr.bf16.mxu0 0
        %4853 = vmatpush1.bf16.msra.mxu0 %v3449
        %4854 = vmatprep.subr.bf16.mxu0 0
        %4855 = vmatpush1.bf16.msra.mxu0 %v3450
        %4856 = vmatprep.subr.bf16.mxu0 0
        %4857 = vmatpush1.bf16.msra.mxu0 %v3451
        %4858 = vmatprep.subr.bf16.mxu0 0
        %4859 = vmatpush1.bf16.msra.mxu0 %v3452
        %4860 = vmatprep.subr.bf16.mxu0 0
        %4861 = vmatpush1.bf16.msra.mxu0 %v3453
        %4862 = vmatprep.subr.bf16.mxu0 0
        %4863 = vmatpush1.bf16.msra.mxu0 %v3454
        %4864 = vmatprep.subr.bf16.mxu0 0
        %4865 = vmatpush1.bf16.msra.mxu0 %v3455
        %4866 = vmatprep.subr.bf16.mxu0 0
        %4867 = vmatpush1.bf16.msra.mxu0 %v3456
        %4868 = vmatprep.subr.bf16.mxu0 0
        %4869 = vmatpush1.bf16.msra.mxu0 %v3457
        %4870 = vmatprep.subr.bf16.mxu0 0
        %4871 = vmatpush1.bf16.msra.mxu0 %v3458
        %4872 = vmatprep.subr.bf16.mxu0 0
        %4873 = vmatpush1.bf16.msra.mxu0 %v3459
        %4874 = vmatprep.subr.bf16.mxu0 0
        %4875 = vmatpush1.bf16.msra.mxu0 %v3460
        %4876 = vmatprep.subr.bf16.mxu0 0
        %4877 = vmatpush1.bf16.msra.mxu0 %v3461
        %4878 = vmatprep.subr.bf16.mxu0 0
        %4879 = vmatpush1.bf16.msra.mxu0 %v3462
        %4880 = vmatprep.subr.bf16.mxu0 0
        %4881 = vmatpush1.bf16.msra.mxu0 %v3463
        %4882 = vmatprep.subr.bf16.mxu0 0
        %4883 = vmatpush1.bf16.msra.mxu0 %v3464
        %4884 = vmatprep.mubr.bf16.mxu0 %v1760
        %4885 = vmatmul.mubr.bf16.gmra.mrb[0].mxu0 %v1759
        %v4886 = vpop.f32.mrb[0].mxu0
        %v4887 = vadd.f32 %v4790, %v4886
        %v4888 = vpop.f32.mrb[0].mxu0
        %v4889 = vpop.f32.mrb[0].mxu0
        %v4890 = vadd.f32 %v4793, %v4889
        %v4891 = vpop.f32.mrb[0].mxu0
        %4892 = vmatprep.mubr.bf16.mxu0 %v1792
        %4893 = vmatmul.mubr.bf16.gmra.mrb[0].mxu0 %v1791
        %v4894 = vpop.f32.mrb[0].mxu0
        %v4895 = vadd.f32 %v4798, %v4894
        %v4896 = vpop.f32.mrb[0].mxu0
        %v4897 = vpop.f32.mrb[0].mxu0
        %v4898 = vadd.f32 %v4801, %v4897
        %v4899 = vpop.f32.mrb[0].mxu0
        %4900 = vmatprep.mubr.bf16.mxu0 %v1824
        %4901 = vmatmul.mubr.bf16.gmra.mrb[0].mxu0 %v1823
        %v4902 = vpop.f32.mrb[0].mxu0
        %v4903 = vadd.f32 %v4806, %v4902
        %v4904 = vpop.f32.mrb[0].mxu0
        %v4905 = vpop.f32.mrb[0].mxu0
        %v4906 = vadd.f32 %v4809, %v4905
        %v4907 = vpop.f32.mrb[0].mxu0
        %4908 = vmatprep.mubr.bf16.mxu0 %v1856
        %4909 = vmatmul.mubr.bf16.gmra.mrb[0].mxu0 %v1855
        %v4910 = vpop.f32.mrb[0].mxu0
        %v4911 = vadd.f32 %v4814, %v4910
        %v4912 = vpop.f32.mrb[0].mxu0
        %v4913 = vpop.f32.mrb[0].mxu0
        %v4914 = vadd.f32 %v4817, %v4913
        %v4915 = vpop.f32.mrb[0].mxu0
        %4916 = vmatprep.mubr.bf16.mxu0 %v1888
        %4917 = vmatmul.mubr.bf16.gmra.mrb[0].mxu0 %v1887
        %v4918 = vpop.f32.mrb[0].mxu0
        %v4919 = vadd.f32 %v4822, %v4918
        %v4920 = vpop.f32.mrb[0].mxu0
        %v4921 = vpop.f32.mrb[0].mxu0
        %v4922 = vadd.f32 %v4825, %v4921
        %v4923 = vpop.f32.mrb[0].mxu0
        %4924 = vmatprep.mubr.bf16.mxu0 %v1920
        %4925 = vmatmul.mubr.bf16.gmra.mrb[0].mxu0 %v1919
        %v4926 = vpop.f32.mrb[0].mxu0
        %v4927 = vadd.f32 %v4830, %v4926
        %v4928 = vpop.f32.mrb[0].mxu0
        %v4929 = vpop.f32.mrb[0].mxu0
        %v4930 = vadd.f32 %v4833, %v4929
        %v4931 = vpop.f32.mrb[0].mxu0
        %4932 = vmatprep.mubr.bf16.mxu0 %v1952
        %4933 = vmatmul.mubr.bf16.gmra.mrb[0].mxu0 %v1951
        %v4934 = vpop.f32.mrb[0].mxu0
        %v4935 = vadd.f32 %v4838, %v4934
        %v4936 = vpop.f32.mrb[0].mxu0
        %v4937 = vpop.f32.mrb[0].mxu0
        %v4938 = vadd.f32 %v4841, %v4937
        %v4939 = vpop.f32.mrb[0].mxu0
        %4940 = vmatprep.mubr.bf16.mxu0 %v1984
        %4941 = vmatmul.mubr.bf16.gmra.mrb[0].mxu0 %v1983
        %v4942 = vpop.f32.mrb[0].mxu0
        %v4943 = vadd.f32 %v4846, %v4942
        %v4944 = vpop.f32.mrb[0].mxu0
        %v4945 = vpop.f32.mrb[0].mxu0
        %v4946 = vadd.f32 %v4849, %v4945
        %v4947 = vpop.f32.mrb[0].mxu0
        %4948 = vdwg.mxu0
        %4949 = vmatprep.subr.bf16.mxu0 0
        %4950 = vmatpush1.bf16.msra.mxu0 %v3465
        %4951 = vmatprep.subr.bf16.mxu0 0
        %4952 = vmatpush1.bf16.msra.mxu0 %v3466
        %4953 = vmatprep.subr.bf16.mxu0 0
        %4954 = vmatpush1.bf16.msra.mxu0 %v3467
        %4955 = vmatprep.subr.bf16.mxu0 0
        %4956 = vmatpush1.bf16.msra.mxu0 %v3468
        %4957 = vmatprep.subr.bf16.mxu0 0
        %4958 = vmatpush1.bf16.msra.mxu0 %v3469
        %4959 = vmatprep.subr.bf16.mxu0 0
        %4960 = vmatpush1.bf16.msra.mxu0 %v3470
        %4961 = vmatprep.subr.bf16.mxu0 0
        %4962 = vmatpush1.bf16.msra.mxu0 %v3471
        %4963 = vmatprep.subr.bf16.mxu0 0
        %4964 = vmatpush1.bf16.msra.mxu0 %v3472
        %4965 = vmatprep.subr.bf16.mxu0 0
        %4966 = vmatpush1.bf16.msra.mxu0 %v3473
        %4967 = vmatprep.subr.bf16.mxu0 0
        %4968 = vmatpush1.bf16.msra.mxu0 %v3474
        %4969 = vmatprep.subr.bf16.mxu0 0
        %4970 = vmatpush1.bf16.msra.mxu0 %v3475
        %4971 = vmatprep.subr.bf16.mxu0 0
        %4972 = vmatpush1.bf16.msra.mxu0 %v3476
        %4973 = vmatprep.subr.bf16.mxu0 0
        %4974 = vmatpush1.bf16.msra.mxu0 %v3477
        %4975 = vmatprep.subr.bf16.mxu0 0
        %4976 = vmatpush1.bf16.msra.mxu0 %v3478
        %4977 = vmatprep.subr.bf16.mxu0 0
        %4978 = vmatpush1.bf16.msra.mxu0 %v3479
        %4979 = vmatprep.subr.bf16.mxu0 0
        %4980 = vmatpush1.bf16.msra.mxu0 %v3480
        %4981 = vmatprep.mubr.bf16.mxu0 %v1762
        %4982 = vmatmul.mubr.bf16.gmra.mrb[0].mxu0 %v1761
        %v4983 = vpop.f32.mrb[0].mxu0
        %v4984 = vadd.f32 %v4887, %v4983
        %v4985 = vpop.f32.mrb[0].mxu0
        %v4986 = vpop.f32.mrb[0].mxu0
        %v4987 = vadd.f32 %v4890, %v4986
        %v4988 = vpop.f32.mrb[0].mxu0
        %4989 = vmatprep.mubr.bf16.mxu0 %v1794
        %4990 = vmatmul.mubr.bf16.gmra.mrb[0].mxu0 %v1793
        %v4991 = vpop.f32.mrb[0].mxu0
        %v4992 = vadd.f32 %v4895, %v4991
        %v4993 = vpop.f32.mrb[0].mxu0
        %v4994 = vpop.f32.mrb[0].mxu0
        %v4995 = vadd.f32 %v4898, %v4994
        %v4996 = vpop.f32.mrb[0].mxu0
        %4997 = vmatprep.mubr.bf16.mxu0 %v1826
        %4998 = vmatmul.mubr.bf16.gmra.mrb[0].mxu0 %v1825
        %v4999 = vpop.f32.mrb[0].mxu0
        %v5000 = vadd.f32 %v4903, %v4999
        %v5001 = vpop.f32.mrb[0].mxu0
        %v5002 = vpop.f32.mrb[0].mxu0
        %v5003 = vadd.f32 %v4906, %v5002
        %v5004 = vpop.f32.mrb[0].mxu0
        %5005 = vmatprep.mubr.bf16.mxu0 %v1858
        %5006 = vmatmul.mubr.bf16.gmra.mrb[0].mxu0 %v1857
        %v5007 = vpop.f32.mrb[0].mxu0
        %v5008 = vadd.f32 %v4911, %v5007
        %v5009 = vpop.f32.mrb[0].mxu0
        %v5010 = vpop.f32.mrb[0].mxu0
        %v5011 = vadd.f32 %v4914, %v5010
        %v5012 = vpop.f32.mrb[0].mxu0
        %5013 = vmatprep.mubr.bf16.mxu0 %v1890
        %5014 = vmatmul.mubr.bf16.gmra.mrb[0].mxu0 %v1889
        %v5015 = vpop.f32.mrb[0].mxu0
        %v5016 = vadd.f32 %v4919, %v5015
        %v5017 = vpop.f32.mrb[0].mxu0
        %v5018 = vpop.f32.mrb[0].mxu0
        %v5019 = vadd.f32 %v4922, %v5018
        %v5020 = vpop.f32.mrb[0].mxu0
        %5021 = vmatprep.mubr.bf16.mxu0 %v1922
        %5022 = vmatmul.mubr.bf16.gmra.mrb[0].mxu0 %v1921
        %v5023 = vpop.f32.mrb[0].mxu0
        %v5024 = vadd.f32 %v4927, %v5023
        %v5025 = vpop.f32.mrb[0].mxu0
        %v5026 = vpop.f32.mrb[0].mxu0
        %v5027 = vadd.f32 %v4930, %v5026
        %v5028 = vpop.f32.mrb[0].mxu0
        %5029 = vmatprep.mubr.bf16.mxu0 %v1954
        %5030 = vmatmul.mubr.bf16.gmra.mrb[0].mxu0 %v1953
        %v5031 = vpop.f32.mrb[0].mxu0
        %v5032 = vadd.f32 %v4935, %v5031
        %v5033 = vpop.f32.mrb[0].mxu0
        %v5034 = vpop.f32.mrb[0].mxu0
        %v5035 = vadd.f32 %v4938, %v5034
        %v5036 = vpop.f32.mrb[0].mxu0
        %5037 = vmatprep.mubr.bf16.mxu0 %v1986
        %5038 = vmatmul.mubr.bf16.gmra.mrb[0].mxu0 %v1985
        %v5039 = vpop.f32.mrb[0].mxu0
        %v5040 = vadd.f32 %v4943, %v5039
        %v5041 = vpop.f32.mrb[0].mxu0
        %v5042 = vpop.f32.mrb[0].mxu0
        %v5043 = vadd.f32 %v4946, %v5042
        %v5044 = vpop.f32.mrb[0].mxu0
        %5045 = vdwg.mxu0
        %5046 = vmatprep.subr.bf16.mxu0 0
        %5047 = vmatpush1.bf16.msra.mxu0 %v3481
        %5048 = vmatprep.subr.bf16.mxu0 0
        %5049 = vmatpush1.bf16.msra.mxu0 %v3482
        %5050 = vmatprep.subr.bf16.mxu0 0
        %5051 = vmatpush1.bf16.msra.mxu0 %v3483
        %5052 = vmatprep.subr.bf16.mxu0 0
        %5053 = vmatpush1.bf16.msra.mxu0 %v3484
        %5054 = vmatprep.subr.bf16.mxu0 0
        %5055 = vmatpush1.bf16.msra.mxu0 %v3485
        %5056 = vmatprep.subr.bf16.mxu0 0
        %5057 = vmatpush1.bf16.msra.mxu0 %v3486
        %5058 = vmatprep.subr.bf16.mxu0 0
        %5059 = vmatpush1.bf16.msra.mxu0 %v3487
        %5060 = vmatprep.subr.bf16.mxu0 0
        %5061 = vmatpush1.bf16.msra.mxu0 %v3488
        %5062 = vmatprep.subr.bf16.mxu0 0
        %5063 = vmatpush1.bf16.msra.mxu0 %v3489
        %5064 = vmatprep.subr.bf16.mxu0 0
        %5065 = vmatpush1.bf16.msra.mxu0 %v3490
        %5066 = vmatprep.subr.bf16.mxu0 0
        %5067 = vmatpush1.bf16.msra.mxu0 %v3491
        %5068 = vmatprep.subr.bf16.mxu0 0
        %5069 = vmatpush1.bf16.msra.mxu0 %v3492
        %5070 = vmatprep.subr.bf16.mxu0 0
        %5071 = vmatpush1.bf16.msra.mxu0 %v3493
        %5072 = vmatprep.subr.bf16.mxu0 0
        %5073 = vmatpush1.bf16.msra.mxu0 %v3494
        %5074 = vmatprep.subr.bf16.mxu0 0
        %5075 = vmatpush1.bf16.msra.mxu0 %v3495
        %5076 = vmatprep.subr.bf16.mxu0 0
        %5077 = vmatpush1.bf16.msra.mxu0 %v3496
        %5078 = vmatprep.mubr.bf16.mxu0 %v1764
        %5079 = vmatmul.mubr.bf16.gmra.mrb[0].mxu0 %v1763
        %v5080 = vpop.f32.mrb[0].mxu0
        %v5081 = vadd.f32 %v4984, %v5080
        %v5082 = vpop.f32.mrb[0].mxu0
        %v5083 = vpop.f32.mrb[0].mxu0
        %v5084 = vadd.f32 %v4987, %v5083
        %v5085 = vpop.f32.mrb[0].mxu0
        %5086 = vmatprep.mubr.bf16.mxu0 %v1796
        %5087 = vmatmul.mubr.bf16.gmra.mrb[0].mxu0 %v1795
        %v5088 = vpop.f32.mrb[0].mxu0
        %v5089 = vadd.f32 %v4992, %v5088
        %v5090 = vpop.f32.mrb[0].mxu0
        %v5091 = vpop.f32.mrb[0].mxu0
        %v5092 = vadd.f32 %v4995, %v5091
        %v5093 = vpop.f32.mrb[0].mxu0
        %5094 = vmatprep.mubr.bf16.mxu0 %v1828
        %5095 = vmatmul.mubr.bf16.gmra.mrb[0].mxu0 %v1827
        %v5096 = vpop.f32.mrb[0].mxu0
        %v5097 = vadd.f32 %v5000, %v5096
        %v5098 = vpop.f32.mrb[0].mxu0
        %v5099 = vpop.f32.mrb[0].mxu0
        %v5100 = vadd.f32 %v5003, %v5099
        %v5101 = vpop.f32.mrb[0].mxu0
        %5102 = vmatprep.mubr.bf16.mxu0 %v1860
        %5103 = vmatmul.mubr.bf16.gmra.mrb[0].mxu0 %v1859
        %v5104 = vpop.f32.mrb[0].mxu0
        %v5105 = vadd.f32 %v5008, %v5104
        %v5106 = vpop.f32.mrb[0].mxu0
        %v5107 = vpop.f32.mrb[0].mxu0
        %v5108 = vadd.f32 %v5011, %v5107
        %v5109 = vpop.f32.mrb[0].mxu0
        %5110 = vmatprep.mubr.bf16.mxu0 %v1892
        %5111 = vmatmul.mubr.bf16.gmra.mrb[0].mxu0 %v1891
        %v5112 = vpop.f32.mrb[0].mxu0
        %v5113 = vadd.f32 %v5016, %v5112
        %v5114 = vpop.f32.mrb[0].mxu0
        %v5115 = vpop.f32.mrb[0].mxu0
        %v5116 = vadd.f32 %v5019, %v5115
        %v5117 = vpop.f32.mrb[0].mxu0
        %5118 = vmatprep.mubr.bf16.mxu0 %v1924
        %5119 = vmatmul.mubr.bf16.gmra.mrb[0].mxu0 %v1923
        %v5120 = vpop.f32.mrb[0].mxu0
        %v5121 = vadd.f32 %v5024, %v5120
        %v5122 = vpop.f32.mrb[0].mxu0
        %v5123 = vpop.f32.mrb[0].mxu0
        %v5124 = vadd.f32 %v5027, %v5123
        %v5125 = vpop.f32.mrb[0].mxu0
        %5126 = vmatprep.mubr.bf16.mxu0 %v1956
        %5127 = vmatmul.mubr.bf16.gmra.mrb[0].mxu0 %v1955
        %v5128 = vpop.f32.mrb[0].mxu0
        %v5129 = vadd.f32 %v5032, %v5128
        %v5130 = vpop.f32.mrb[0].mxu0
        %v5131 = vpop.f32.mrb[0].mxu0
        %v5132 = vadd.f32 %v5035, %v5131
        %v5133 = vpop.f32.mrb[0].mxu0
        %5134 = vmatprep.mubr.bf16.mxu0 %v1988
        %5135 = vmatmul.mubr.bf16.gmra.mrb[0].mxu0 %v1987
        %v5136 = vpop.f32.mrb[0].mxu0
        %v5137 = vadd.f32 %v5040, %v5136
        %v5138 = vpop.f32.mrb[0].mxu0
        %v5139 = vpop.f32.mrb[0].mxu0
        %v5140 = vadd.f32 %v5043, %v5139
        %v5141 = vpop.f32.mrb[0].mxu0
        %5142 = vdwg.mxu0
        %5143 = vmatprep.subr.bf16.mxu0 0
        %5144 = vmatpush1.bf16.msra.mxu0 %v3497
        %5145 = vmatprep.subr.bf16.mxu0 0
        %5146 = vmatpush1.bf16.msra.mxu0 %v3498
        %5147 = vmatprep.subr.bf16.mxu0 0
        %5148 = vmatpush1.bf16.msra.mxu0 %v3499
        %5149 = vmatprep.subr.bf16.mxu0 0
        %5150 = vmatpush1.bf16.msra.mxu0 %v3500
        %5151 = vmatprep.subr.bf16.mxu0 0
        %5152 = vmatpush1.bf16.msra.mxu0 %v3501
        %5153 = vmatprep.subr.bf16.mxu0 0
        %5154 = vmatpush1.bf16.msra.mxu0 %v3502
        %5155 = vmatprep.subr.bf16.mxu0 0
        %5156 = vmatpush1.bf16.msra.mxu0 %v3503
        %5157 = vmatprep.subr.bf16.mxu0 0
        %5158 = vmatpush1.bf16.msra.mxu0 %v3504
        %5159 = vmatprep.subr.bf16.mxu0 0
        %5160 = vmatpush1.bf16.msra.mxu0 %v3505
        %5161 = vmatprep.subr.bf16.mxu0 0
        %5162 = vmatpush1.bf16.msra.mxu0 %v3506
        %5163 = vmatprep.subr.bf16.mxu0 0
        %5164 = vmatpush1.bf16.msra.mxu0 %v3507
        %5165 = vmatprep.subr.bf16.mxu0 0
        %5166 = vmatpush1.bf16.msra.mxu0 %v3508
        %5167 = vmatprep.subr.bf16.mxu0 0
        %5168 = vmatpush1.bf16.msra.mxu0 %v3509
        %5169 = vmatprep.subr.bf16.mxu0 0
        %5170 = vmatpush1.bf16.msra.mxu0 %v3510
        %5171 = vmatprep.subr.bf16.mxu0 0
        %5172 = vmatpush1.bf16.msra.mxu0 %v3511
        %5173 = vmatprep.subr.bf16.mxu0 0
        %5174 = vmatpush1.bf16.msra.mxu0 %v3512
        %5175 = vmatprep.mubr.bf16.mxu0 %v1766
        %5176 = vmatmul.mubr.bf16.gmra.mrb[0].mxu0 %v1765
        %v5177 = vpop.f32.mrb[0].mxu0
        %v5178 = vadd.f32 %v5081, %v5177
        %v5179 = vpop.f32.mrb[0].mxu0
        %v5180 = vpop.f32.mrb[0].mxu0
        %v5181 = vadd.f32 %v5084, %v5180
        %v5182 = vpop.f32.mrb[0].mxu0
        %5183 = vmatprep.mubr.bf16.mxu0 %v1798
        %5184 = vmatmul.mubr.bf16.gmra.mrb[0].mxu0 %v1797
        %v5185 = vpop.f32.mrb[0].mxu0
        %v5186 = vadd.f32 %v5089, %v5185
        %v5187 = vpop.f32.mrb[0].mxu0
        %v5188 = vpop.f32.mrb[0].mxu0
        %v5189 = vadd.f32 %v5092, %v5188
        %v5190 = vpop.f32.mrb[0].mxu0
        %5191 = vmatprep.mubr.bf16.mxu0 %v1830
        %5192 = vmatmul.mubr.bf16.gmra.mrb[0].mxu0 %v1829
        %v5193 = vpop.f32.mrb[0].mxu0
        %v5194 = vadd.f32 %v5097, %v5193
        %v5195 = vpop.f32.mrb[0].mxu0
        %v5196 = vpop.f32.mrb[0].mxu0
        %v5197 = vadd.f32 %v5100, %v5196
        %v5198 = vpop.f32.mrb[0].mxu0
        %5199 = vmatprep.mubr.bf16.mxu0 %v1862
        %5200 = vmatmul.mubr.bf16.gmra.mrb[0].mxu0 %v1861
        %v5201 = vpop.f32.mrb[0].mxu0
        %v5202 = vadd.f32 %v5105, %v5201
        %v5203 = vpop.f32.mrb[0].mxu0
        %v5204 = vpop.f32.mrb[0].mxu0
        %v5205 = vadd.f32 %v5108, %v5204
        %v5206 = vpop.f32.mrb[0].mxu0
        %5207 = vmatprep.mubr.bf16.mxu0 %v1894
        %5208 = vmatmul.mubr.bf16.gmra.mrb[0].mxu0 %v1893
        %v5209 = vpop.f32.mrb[0].mxu0
        %v5210 = vadd.f32 %v5113, %v5209
        %v5211 = vpop.f32.mrb[0].mxu0
        %v5212 = vpop.f32.mrb[0].mxu0
        %v5213 = vadd.f32 %v5116, %v5212
        %v5214 = vpop.f32.mrb[0].mxu0
        %5215 = vmatprep.mubr.bf16.mxu0 %v1926
        %5216 = vmatmul.mubr.bf16.gmra.mrb[0].mxu0 %v1925
        %v5217 = vpop.f32.mrb[0].mxu0
        %v5218 = vadd.f32 %v5121, %v5217
        %v5219 = vpop.f32.mrb[0].mxu0
        %v5220 = vpop.f32.mrb[0].mxu0
        %v5221 = vadd.f32 %v5124, %v5220
        %v5222 = vpop.f32.mrb[0].mxu0
        %5223 = vmatprep.mubr.bf16.mxu0 %v1958
        %5224 = vmatmul.mubr.bf16.gmra.mrb[0].mxu0 %v1957
        %v5225 = vpop.f32.mrb[0].mxu0
        %v5226 = vadd.f32 %v5129, %v5225
        %v5227 = vpop.f32.mrb[0].mxu0
        %v5228 = vpop.f32.mrb[0].mxu0
        %v5229 = vadd.f32 %v5132, %v5228
        %v5230 = vpop.f32.mrb[0].mxu0
        %5231 = vmatprep.mubr.bf16.mxu0 %v1990
        %5232 = vmatmul.mubr.bf16.gmra.mrb[0].mxu0 %v1989
        %v5233 = vpop.f32.mrb[0].mxu0
        %v5234 = vadd.f32 %v5137, %v5233
        %v5235 = vpop.f32.mrb[0].mxu0
        %v5236 = vpop.f32.mrb[0].mxu0
        %v5237 = vadd.f32 %v5140, %v5236
        %v5238 = vpop.f32.mrb[0].mxu0
        %5239 = vdwg.mxu0
        %5240 = vmatprep.subr.bf16.mxu0 0
        %5241 = vmatpush1.bf16.msra.mxu0 %v3513
        %5242 = vmatprep.subr.bf16.mxu0 0
        %5243 = vmatpush1.bf16.msra.mxu0 %v3514
        %5244 = vmatprep.subr.bf16.mxu0 0
        %5245 = vmatpush1.bf16.msra.mxu0 %v3515
        %5246 = vmatprep.subr.bf16.mxu0 0
        %5247 = vmatpush1.bf16.msra.mxu0 %v3516
        %5248 = vmatprep.subr.bf16.mxu0 0
        %5249 = vmatpush1.bf16.msra.mxu0 %v3517
        %5250 = vmatprep.subr.bf16.mxu0 0
        %5251 = vmatpush1.bf16.msra.mxu0 %v3518
        %5252 = vmatprep.subr.bf16.mxu0 0
        %5253 = vmatpush1.bf16.msra.mxu0 %v3519
        %5254 = vmatprep.subr.bf16.mxu0 0
        %5255 = vmatpush1.bf16.msra.mxu0 %v3520
        %5256 = vmatprep.subr.bf16.mxu0 0
        %5257 = vmatpush1.bf16.msra.mxu0 %v3521
        %5258 = vmatprep.subr.bf16.mxu0 0
        %5259 = vmatpush1.bf16.msra.mxu0 %v3522
        %5260 = vmatprep.subr.bf16.mxu0 0
        %5261 = vmatpush1.bf16.msra.mxu0 %v3523
        %5262 = vmatprep.subr.bf16.mxu0 0
        %5263 = vmatpush1.bf16.msra.mxu0 %v3524
        %5264 = vmatprep.subr.bf16.mxu0 0
        %5265 = vmatpush1.bf16.msra.mxu0 %v3525
        %5266 = vmatprep.subr.bf16.mxu0 0
        %5267 = vmatpush1.bf16.msra.mxu0 %v3526
        %5268 = vmatprep.subr.bf16.mxu0 0
        %5269 = vmatpush1.bf16.msra.mxu0 %v3527
        %5270 = vmatprep.subr.bf16.mxu0 0
        %5271 = vmatpush1.bf16.msra.mxu0 %v3528
        %5272 = vmatprep.mubr.bf16.mxu0 %v1768
        %5273 = vmatmul.mubr.bf16.gmra.mrb[0].mxu0 %v1767
        %v5274 = vpop.f32.mrb[0].mxu0
        %v5275 = vadd.f32 %v5178, %v5274
        %v5276 = vpop.f32.mrb[0].mxu0
        %v5277 = vpop.f32.mrb[0].mxu0
        %v5278 = vadd.f32 %v5181, %v5277
        %v5279 = vpop.f32.mrb[0].mxu0
        %5280 = vmatprep.mubr.bf16.mxu0 %v1800
        %5281 = vmatmul.mubr.bf16.gmra.mrb[0].mxu0 %v1799
        %v5282 = vpop.f32.mrb[0].mxu0
        %v5283 = vadd.f32 %v5186, %v5282
        %v5284 = vpop.f32.mrb[0].mxu0
        %v5285 = vpop.f32.mrb[0].mxu0
        %v5286 = vadd.f32 %v5189, %v5285
        %v5287 = vpop.f32.mrb[0].mxu0
        %5288 = vmatprep.mubr.bf16.mxu0 %v1832
        %5289 = vmatmul.mubr.bf16.gmra.mrb[0].mxu0 %v1831
        %v5290 = vpop.f32.mrb[0].mxu0
        %v5291 = vadd.f32 %v5194, %v5290
        %v5292 = vpop.f32.mrb[0].mxu0
        %v5293 = vpop.f32.mrb[0].mxu0
        %v5294 = vadd.f32 %v5197, %v5293
        %v5295 = vpop.f32.mrb[0].mxu0
        %5296 = vmatprep.mubr.bf16.mxu0 %v1864
        %5297 = vmatmul.mubr.bf16.gmra.mrb[0].mxu0 %v1863
        %v5298 = vpop.f32.mrb[0].mxu0
        %v5299 = vadd.f32 %v5202, %v5298
        %v5300 = vpop.f32.mrb[0].mxu0
        %v5301 = vpop.f32.mrb[0].mxu0
        %v5302 = vadd.f32 %v5205, %v5301
        %v5303 = vpop.f32.mrb[0].mxu0
        %5304 = vmatprep.mubr.bf16.mxu0 %v1896
        %5305 = vmatmul.mubr.bf16.gmra.mrb[0].mxu0 %v1895
        %v5306 = vpop.f32.mrb[0].mxu0
        %v5307 = vadd.f32 %v5210, %v5306
        %v5308 = vpop.f32.mrb[0].mxu0
        %v5309 = vpop.f32.mrb[0].mxu0
        %v5310 = vadd.f32 %v5213, %v5309
        %v5311 = vpop.f32.mrb[0].mxu0
        %5312 = vmatprep.mubr.bf16.mxu0 %v1928
        %5313 = vmatmul.mubr.bf16.gmra.mrb[0].mxu0 %v1927
        %v5314 = vpop.f32.mrb[0].mxu0
        %v5315 = vadd.f32 %v5218, %v5314
        %v5316 = vpop.f32.mrb[0].mxu0
        %v5317 = vpop.f32.mrb[0].mxu0
        %v5318 = vadd.f32 %v5221, %v5317
        %v5319 = vpop.f32.mrb[0].mxu0
        %5320 = vmatprep.mubr.bf16.mxu0 %v1960
        %5321 = vmatmul.mubr.bf16.gmra.mrb[0].mxu0 %v1959
        %v5322 = vpop.f32.mrb[0].mxu0
        %v5323 = vadd.f32 %v5226, %v5322
        %v5324 = vpop.f32.mrb[0].mxu0
        %v5325 = vpop.f32.mrb[0].mxu0
        %v5326 = vadd.f32 %v5229, %v5325
        %v5327 = vpop.f32.mrb[0].mxu0
        %5328 = vmatprep.mubr.bf16.mxu0 %v1992
        %5329 = vmatmul.mubr.bf16.gmra.mrb[0].mxu0 %v1991
        %v5330 = vpop.f32.mrb[0].mxu0
        %v5331 = vadd.f32 %v5234, %v5330
        %v5332 = vpop.f32.mrb[0].mxu0
        %v5333 = vpop.f32.mrb[0].mxu0
        %v5334 = vadd.f32 %v5237, %v5333
        %v5335 = vpop.f32.mrb[0].mxu0
        %5336 = vdwg.mxu0
        %v5337 = vmul.f32 %v5275, %v5275
        %v5338 = vmul.f32 %v5278, %v5278
        %v5339 = vmul.f32 %v5283, %v5283
        %v5340 = vmul.f32 %v5286, %v5286
        %v5341 = vmul.f32 %v5291, %v5291
        %v5342 = vmul.f32 %v5294, %v5294
        %v5343 = vmul.f32 %v5299, %v5299
        %v5344 = vmul.f32 %v5302, %v5302
        %v5345 = vmul.f32 %v5307, %v5307
        %v5346 = vmul.f32 %v5310, %v5310
        %v5347 = vmul.f32 %v5315, %v5315
        %v5348 = vmul.f32 %v5318, %v5318
        %v5349 = vmul.f32 %v5323, %v5323
        %v5350 = vmul.f32 %v5326, %v5326
        %v5351 = vmul.f32 %v5331, %v5331
        %v5352 = vmul.f32 %v5334, %v5334
        %vm5353 = vcmask 261120
        %v5354 = vsel %vm5353, %v5337, 0.0
        %5355 = vadd.xlane.f32.xlu0 %v5354
        %v5356 = vpop.xlane.xlu0 %5355
        %v5357 = vsel %vm5353, %v5338, 0.0
        %5358 = vadd.xlane.f32.xlu0 %v5357
        %v5359 = vpop.xlane.xlu0 %5358
        %v5360 = vsel %vm5353, %v5339, 0.0
        %5361 = vadd.xlane.f32.xlu0 %v5360
        %v5362 = vpop.xlane.xlu0 %5361
        %v5363 = vsel %vm5353, %v5340, 0.0
        %5364 = vadd.xlane.f32.xlu0 %v5363
        %v5365 = vpop.xlane.xlu0 %5364
        %v5366 = vsel %vm5353, %v5341, 0.0
        %5367 = vadd.xlane.f32.xlu0 %v5366
        %v5368 = vpop.xlane.xlu0 %5367
        %v5369 = vsel %vm5353, %v5342, 0.0
        %5370 = vadd.xlane.f32.xlu0 %v5369
        %v5371 = vpop.xlane.xlu0 %5370
        %v5372 = vsel %vm5353, %v5343, 0.0
        %5373 = vadd.xlane.f32.xlu0 %v5372
        %v5374 = vpop.xlane.xlu0 %5373
        %v5375 = vsel %vm5353, %v5344, 0.0
        %5376 = vadd.xlane.f32.xlu0 %v5375
        %v5377 = vpop.xlane.xlu0 %5376
        %v5378 = vsel %vm5353, %v5345, 0.0
        %5379 = vadd.xlane.f32.xlu0 %v5378
        %v5380 = vpop.xlane.xlu0 %5379
        %v5381 = vsel %vm5353, %v5346, 0.0
        %5382 = vadd.xlane.f32.xlu0 %v5381
        %v5383 = vpop.xlane.xlu0 %5382
        %v5384 = vsel %vm5353, %v5347, 0.0
        %5385 = vadd.xlane.f32.xlu0 %v5384
        %v5386 = vpop.xlane.xlu0 %5385
        %v5387 = vsel %vm5353, %v5348, 0.0
        %5388 = vadd.xlane.f32.xlu0 %v5387
        %v5389 = vpop.xlane.xlu0 %5388
        %v5390 = vsel %vm5353, %v5349, 0.0
        %5391 = vadd.xlane.f32.xlu0 %v5390
        %v5392 = vpop.xlane.xlu0 %5391
        %v5393 = vsel %vm5353, %v5350, 0.0
        %5394 = vadd.xlane.f32.xlu0 %v5393
        %v5395 = vpop.xlane.xlu0 %5394
        %v5396 = vsel %vm5353, %v5351, 0.0
        %5397 = vadd.xlane.f32.xlu0 %v5396
        %v5398 = vpop.xlane.xlu0 %5397
        %v5399 = vsel %vm5353, %v5352, 0.0
        %5400 = vadd.xlane.f32.xlu0 %v5399
        %v5401 = vpop.xlane.xlu0 %5400
        %v5402 = vmax.f32 %v5356, 1e-16
        %v5403 = vmax.f32 %v5359, 1e-16
        %v5404 = vmax.f32 %v5362, 1e-16
        %v5405 = vmax.f32 %v5365, 1e-16
        %v5406 = vmax.f32 %v5368, 1e-16
        %v5407 = vmax.f32 %v5371, 1e-16
        %v5408 = vmax.f32 %v5374, 1e-16
        %v5409 = vmax.f32 %v5377, 1e-16
        %v5410 = vmax.f32 %v5380, 1e-16
        %v5411 = vmax.f32 %v5383, 1e-16
        %v5412 = vmax.f32 %v5386, 1e-16
        %v5413 = vmax.f32 %v5389, 1e-16
        %v5414 = vmax.f32 %v5392, 1e-16
        %v5415 = vmax.f32 %v5395, 1e-16
        %v5416 = vmax.f32 %v5398, 1e-16
        %v5417 = vmax.f32 %v5401, 1e-16
        %v5418 = vrsqrt.pop %v5402
        %v5419 = vrsqrt.pop %v5403
        %v5420 = vrsqrt.pop %v5404
        %v5421 = vrsqrt.pop %v5405
        %v5422 = vrsqrt.pop %v5406
        %v5423 = vrsqrt.pop %v5407
        %v5424 = vrsqrt.pop %v5408
        %v5425 = vrsqrt.pop %v5409
        %v5426 = vrsqrt.pop %v5410
        %v5427 = vrsqrt.pop %v5411
        %v5428 = vrsqrt.pop %v5412
        %v5429 = vrsqrt.pop %v5413
        %v5430 = vrsqrt.pop %v5414
        %v5431 = vrsqrt.pop %v5415
        %v5432 = vrsqrt.pop %v5416
        %v5433 = vrsqrt.pop %v5417
        %v5434 = vmul.f32 %v5275, %v5418
        %v5435 = vmul.f32 %v5278, %v5419
        %v5436 = vmul.f32 %v5283, %v5420
        %v5437 = vmul.f32 %v5286, %v5421
        %v5438 = vmul.f32 %v5291, %v5422
        %v5439 = vmul.f32 %v5294, %v5423
        %v5440 = vmul.f32 %v5299, %v5424
        %v5441 = vmul.f32 %v5302, %v5425
        %v5442 = vmul.f32 %v5307, %v5426
        %v5443 = vmul.f32 %v5310, %v5427
        %v5444 = vmul.f32 %v5315, %v5428
        %v5445 = vmul.f32 %v5318, %v5429
        %v5446 = vmul.f32 %v5323, %v5430
        %v5447 = vmul.f32 %v5326, %v5431
        %v5448 = vmul.f32 %v5331, %v5432
        %v5449 = vmul.f32 %v5334, %v5433
        %s5450 = smul.u32 %s15, 128
        %s5451 = scalar_lea.vmem [#allocation2], %s5450
        %5452 = vst.msk [vmem:[%s5451] sm:$0xff] %vm5353, %v5434
        %5453 = vst.msk [vmem:[%s5451 + $0x8] sm:$0xff] %vm5353, %v5435
        %5454 = vst.msk [vmem:[%s5451 + $0x10] sm:$0xff] %vm5353, %v5436
        %5455 = vst.msk [vmem:[%s5451 + $0x18] sm:$0xff] %vm5353, %v5437
        %5456 = vst.msk [vmem:[%s5451 + $0x20] sm:$0xff] %vm5353, %v5438
        %5457 = vst.msk [vmem:[%s5451 + $0x28] sm:$0xff] %vm5353, %v5439
        %5458 = vst.msk [vmem:[%s5451 + $0x30] sm:$0xff] %vm5353, %v5440
        %5459 = vst.msk [vmem:[%s5451 + $0x38] sm:$0xff] %vm5353, %v5441
        %5460 = vst.msk [vmem:[%s5451 + $0x40] sm:$0xff] %vm5353, %v5442
        %5461 = vst.msk [vmem:[%s5451 + $0x48] sm:$0xff] %vm5353, %v5443
        %5462 = vst.msk [vmem:[%s5451 + $0x50] sm:$0xff] %vm5353, %v5444
        %5463 = vst.msk [vmem:[%s5451 + $0x58] sm:$0xff] %vm5353, %v5445
        %5464 = vst.msk [vmem:[%s5451 + $0x60] sm:$0xff] %vm5353, %v5446
        %5465 = vst.msk [vmem:[%s5451 + $0x68] sm:$0xff] %vm5353, %v5447
        %5466 = vst.msk [vmem:[%s5451 + $0x70] sm:$0xff] %vm5353, %v5448
        %5467 = vst.msk [vmem:[%s5451 + $0x78] sm:$0xff] %vm5353, %v5449
        %p5468 = scmp.eq.s32.totalorder %s15, 1
        // Predicated region
        $region33: #{_lambda_.1} parent=31 // pred_check
          %p5469 = pneg %p5468
        $region34: #{_lambda_.1} parent=31 // pred_check_branch
          %5471 = sbr.rel (%p5469) target = $region36
        $region35: #{_lambda_.1} parent=31 // pred_region
          %v5472 = vld [vmem:[#allocation2] sm:$0xff]
          %v5473 = vld [vmem:[#allocation2 + $0x8] sm:$0xff]
          %v5474 = vld [vmem:[#allocation2 + $0x10] sm:$0xff]
          %v5475 = vld [vmem:[#allocation2 + $0x18] sm:$0xff]
          %v5476 = vld [vmem:[#allocation2 + $0x20] sm:$0xff]
          %v5477 = vld [vmem:[#allocation2 + $0x28] sm:$0xff]
          %v5478 = vld [vmem:[#allocation2 + $0x30] sm:$0xff]
          %v5479 = vld [vmem:[#allocation2 + $0x38] sm:$0xff]
          %v5480 = vld [vmem:[#allocation2 + $0x40] sm:$0xff]
          %v5481 = vld [vmem:[#allocation2 + $0x48] sm:$0xff]
          %v5482 = vld [vmem:[#allocation2 + $0x50] sm:$0xff]
          %v5483 = vld [vmem:[#allocation2 + $0x58] sm:$0xff]
          %v5484 = vld [vmem:[#allocation2 + $0x60] sm:$0xff]
          %v5485 = vld [vmem:[#allocation2 + $0x68] sm:$0xff]
          %v5486 = vld [vmem:[#allocation2 + $0x70] sm:$0xff]
          %v5487 = vld [vmem:[#allocation2 + $0x78] sm:$0xff]
          %s5488 = scalar_lea.vmem [#allocation2], 128
          %v5489 = vld [vmem:[%s5488] sm:$0xff]
          %v5490 = vld [vmem:[%s5488 + $0x8] sm:$0xff]
          %v5491 = vld [vmem:[%s5488 + $0x10] sm:$0xff]
          %v5492 = vld [vmem:[%s5488 + $0x18] sm:$0xff]
          %v5493 = vld [vmem:[%s5488 + $0x20] sm:$0xff]
          %v5494 = vld [vmem:[%s5488 + $0x28] sm:$0xff]
          %v5495 = vld [vmem:[%s5488 + $0x30] sm:$0xff]
          %v5496 = vld [vmem:[%s5488 + $0x38] sm:$0xff]
          %v5497 = vld [vmem:[%s5488 + $0x40] sm:$0xff]
          %v5498 = vld [vmem:[%s5488 + $0x48] sm:$0xff]
          %v5499 = vld [vmem:[%s5488 + $0x50] sm:$0xff]
          %v5500 = vld [vmem:[%s5488 + $0x58] sm:$0xff]
          %v5501 = vld [vmem:[%s5488 + $0x60] sm:$0xff]
          %v5502 = vld [vmem:[%s5488 + $0x68] sm:$0xff]
          %v5503 = vld [vmem:[%s5488 + $0x70] sm:$0xff]
          %v5504 = vld [vmem:[%s5488 + $0x78] sm:$0xff]
          %v5506 = vsel %vm5353, %v5472, 0
          %v5509 = vsel %vm5353, %v5473, 0
          %v5512 = vsel %vm5353, %v5474, 0
          %v5515 = vsel %vm5353, %v5475, 0
          %v5518 = vsel %vm5353, %v5476, 0
          %v5521 = vsel %vm5353, %v5477, 0
          %v5524 = vsel %vm5353, %v5478, 0
          %v5527 = vsel %vm5353, %v5479, 0
          %v5530 = vsel %vm5353, %v5480, 0
          %v5533 = vsel %vm5353, %v5481, 0
          %v5536 = vsel %vm5353, %v5482, 0
          %v5539 = vsel %vm5353, %v5483, 0
          %v5542 = vsel %vm5353, %v5484, 0
          %v5545 = vsel %vm5353, %v5485, 0
          %v5548 = vsel %vm5353, %v5486, 0
          %v5551 = vsel %vm5353, %v5487, 0
          %v5554 = vsel %vm5353, %v5489, 0
          %v5557 = vsel %vm5353, %v5490, 0
          %v5560 = vsel %vm5353, %v5491, 0
          %v5563 = vsel %vm5353, %v5492, 0
          %v5566 = vsel %vm5353, %v5493, 0
          %v5569 = vsel %vm5353, %v5494, 0
          %v5572 = vsel %vm5353, %v5495, 0
          %v5575 = vsel %vm5353, %v5496, 0
          %v5578 = vsel %vm5353, %v5497, 0
          %v5581 = vsel %vm5353, %v5498, 0
          %v5584 = vsel %vm5353, %v5499, 0
          %v5587 = vsel %vm5353, %v5500, 0
          %v5590 = vsel %vm5353, %v5501, 0
          %v5593 = vsel %vm5353, %v5502, 0
          %v5596 = vsel %vm5353, %v5503, 0
          %v5599 = vsel %vm5353, %v5504, 0
          %5601 = vmatprep.subr.mxu0 0.0
          %5602 = vmatpush1.xpose.msra.mxu0 %v5554
          %5603 = vmatprep.subr.mxu0 0.0
          %5604 = vmatpush1.xpose.msra.mxu0 %v5557
          %5605 = vmatprep.subr.mxu0 0.0
          %5606 = vmatpush1.xpose.msra.mxu0 %v5560
          %5607 = vmatprep.subr.mxu0 0.0
          %5608 = vmatpush1.xpose.msra.mxu0 %v5563
          %5609 = vmatprep.subr.mxu0 0.0
          %5610 = vmatpush1.xpose.msra.mxu0 %v5566
          %5611 = vmatprep.subr.mxu0 0.0
          %5612 = vmatpush1.xpose.msra.mxu0 %v5569
          %5613 = vmatprep.subr.mxu0 0.0
          %5614 = vmatpush1.xpose.msra.mxu0 %v5572
          %5615 = vmatprep.subr.mxu0 0.0
          %5616 = vmatpush1.xpose.msra.mxu0 %v5575
          %5617 = vmatprep.subr.mxu0 0.0
          %5618 = vmatpush1.xpose.msra.mxu0 %v5578
          %5619 = vmatprep.subr.mxu0 0.0
          %5620 = vmatpush1.xpose.msra.mxu0 %v5581
          %5621 = vmatprep.subr.mxu0 0.0
          %5622 = vmatpush1.xpose.msra.mxu0 %v5584
          %5623 = vmatprep.subr.mxu0 0.0
          %5624 = vmatpush1.xpose.msra.mxu0 %v5587
          %5625 = vmatprep.subr.mxu0 0.0
          %5626 = vmatpush1.xpose.msra.mxu0 %v5590
          %5627 = vmatprep.subr.mxu0 0.0
          %5628 = vmatpush1.xpose.msra.mxu0 %v5593
          %5629 = vmatprep.subr.mxu0 0.0
          %5630 = vmatpush1.xpose.msra.mxu0 %v5596
          %5631 = vmatprep.subr.mxu0 0.0
          %5632 = vmatpush1.xpose.msra.mxu0 %v5599
          %5633 = vmatprep.subr.mxu0 0.0
          %5634 = vmatpush1.xpose.msra.mxu0 0.0
          %5635 = vmatprep.subr.mxu0 0.0
          %5636 = vmatpush1.xpose.msra.mxu0 0.0
          %5637 = vmatprep.subr.mxu0 0.0
          %5638 = vmatpush1.xpose.msra.mxu0 0.0
          %5639 = vmatprep.subr.mxu0 0.0
          %5640 = vmatpush1.xpose.msra.mxu0 0.0
          %5641 = vmatprep.subr.mxu0 0.0
          %5642 = vmatpush1.xpose.msra.mxu0 0.0
          %5643 = vmatprep.subr.mxu0 0.0
          %5644 = vmatpush1.xpose.msra.mxu0 0.0
          %5645 = vmatprep.subr.mxu0 0.0
          %5646 = vmatpush1.xpose.msra.mxu0 0.0
          %5647 = vmatprep.subr.mxu0 0.0
          %5648 = vmatpush1.xpose.msra.mxu0 0.0
          %5649 = vmatprep.subr.mxu0 0.0
          %5650 = vmatpush1.xpose.msra.mxu0 0.0
          %5651 = vmatprep.subr.mxu0 0.0
          %5652 = vmatpush1.xpose.msra.mxu0 0.0
          %5653 = vmatprep.subr.mxu0 0.0
          %5654 = vmatpush1.xpose.msra.mxu0 0.0
          %5655 = vmatprep.subr.mxu0 0.0
          %5656 = vmatpush1.xpose.msra.mxu0 0.0
          %5657 = vmatprep.subr.mxu0 0.0
          %5658 = vmatpush1.xpose.msra.mxu0 0.0
          %5659 = vmatprep.subr.mxu0 0.0
          %5660 = vmatpush1.xpose.msra.mxu0 0.0
          %5661 = vmatprep.subr.mxu0 0.0
          %5662 = vmatpush1.xpose.msra.mxu0 0.0
          %5663 = vmatprep.subr.mxu0 0.0
          %5664 = vmatpush1.xpose.msra.mxu0 0.0
          %5665 = vmatprep.mubr.f32.mxu0 0.0
          %5666 = vmatmul.mubr.f32.gmra.mrb[0].mxu0 %v5506
          %v5667 = vpop.f32.mrb[0].mxu0
          %v5668 = vadd.f32 0.0, %v5667
          %v5669 = vpop.f32.mrb[0].mxu0
          %5670 = vmatprep.mubr.f32.mxu0 0.0
          %5671 = vmatmul.mubr.f32.gmra.mrb[0].mxu0 %v5509
          %v5672 = vpop.f32.mrb[0].mxu0
          %v5673 = vadd.f32 0.0, %v5672
          %v5674 = vpop.f32.mrb[0].mxu0
          %5675 = vmatprep.mubr.f32.mxu0 0.0
          %5676 = vmatmul.mubr.f32.gmra.mrb[0].mxu0 %v5512
          %v5677 = vpop.f32.mrb[0].mxu0
          %v5678 = vadd.f32 0.0, %v5677
          %v5679 = vpop.f32.mrb[0].mxu0
          %5680 = vmatprep.mubr.f32.mxu0 0.0
          %5681 = vmatmul.mubr.f32.gmra.mrb[0].mxu0 %v5515
          %v5682 = vpop.f32.mrb[0].mxu0
          %v5683 = vadd.f32 0.0, %v5682
          %v5684 = vpop.f32.mrb[0].mxu0
          %5685 = vmatprep.mubr.f32.mxu0 0.0
          %5686 = vmatmul.mubr.f32.gmra.mrb[0].mxu0 %v5518
          %v5687 = vpop.f32.mrb[0].mxu0
          %v5688 = vadd.f32 0.0, %v5687
          %v5689 = vpop.f32.mrb[0].mxu0
          %5690 = vmatprep.mubr.f32.mxu0 0.0
          %5691 = vmatmul.mubr.f32.gmra.mrb[0].mxu0 %v5521
          %v5692 = vpop.f32.mrb[0].mxu0
          %v5693 = vadd.f32 0.0, %v5692
          %v5694 = vpop.f32.mrb[0].mxu0
          %5695 = vmatprep.mubr.f32.mxu0 0.0
          %5696 = vmatmul.mubr.f32.gmra.mrb[0].mxu0 %v5524
          %v5697 = vpop.f32.mrb[0].mxu0
          %v5698 = vadd.f32 0.0, %v5697
          %v5699 = vpop.f32.mrb[0].mxu0
          %5700 = vmatprep.mubr.f32.mxu0 0.0
          %5701 = vmatmul.mubr.f32.gmra.mrb[0].mxu0 %v5527
          %v5702 = vpop.f32.mrb[0].mxu0
          %v5703 = vadd.f32 0.0, %v5702
          %v5704 = vpop.f32.mrb[0].mxu0
          %5705 = vmatprep.mubr.f32.mxu0 0.0
          %5706 = vmatmul.mubr.f32.gmra.mrb[0].mxu0 %v5530
          %v5707 = vpop.f32.mrb[0].mxu0
          %v5708 = vadd.f32 0.0, %v5707
          %v5709 = vpop.f32.mrb[0].mxu0
          %5710 = vmatprep.mubr.f32.mxu0 0.0
          %5711 = vmatmul.mubr.f32.gmra.mrb[0].mxu0 %v5533
          %v5712 = vpop.f32.mrb[0].mxu0
          %v5713 = vadd.f32 0.0, %v5712
          %v5714 = vpop.f32.mrb[0].mxu0
          %5715 = vmatprep.mubr.f32.mxu0 0.0
          %5716 = vmatmul.mubr.f32.gmra.mrb[0].mxu0 %v5536
          %v5717 = vpop.f32.mrb[0].mxu0
          %v5718 = vadd.f32 0.0, %v5717
          %v5719 = vpop.f32.mrb[0].mxu0
          %5720 = vmatprep.mubr.f32.mxu0 0.0
          %5721 = vmatmul.mubr.f32.gmra.mrb[0].mxu0 %v5539
          %v5722 = vpop.f32.mrb[0].mxu0
          %v5723 = vadd.f32 0.0, %v5722
          %v5724 = vpop.f32.mrb[0].mxu0
          %5725 = vmatprep.mubr.f32.mxu0 0.0
          %5726 = vmatmul.mubr.f32.gmra.mrb[0].mxu0 %v5542
          %v5727 = vpop.f32.mrb[0].mxu0
          %v5728 = vadd.f32 0.0, %v5727
          %v5729 = vpop.f32.mrb[0].mxu0
          %5730 = vmatprep.mubr.f32.mxu0 0.0
          %5731 = vmatmul.mubr.f32.gmra.mrb[0].mxu0 %v5545
          %v5732 = vpop.f32.mrb[0].mxu0
          %v5733 = vadd.f32 0.0, %v5732
          %v5734 = vpop.f32.mrb[0].mxu0
          %5735 = vmatprep.mubr.f32.mxu0 0.0
          %5736 = vmatmul.mubr.f32.gmra.mrb[0].mxu0 %v5548
          %v5737 = vpop.f32.mrb[0].mxu0
          %v5738 = vadd.f32 0.0, %v5737
          %v5739 = vpop.f32.mrb[0].mxu0
          %5740 = vmatprep.mubr.f32.mxu0 0.0
          %5741 = vmatmul.mubr.f32.gmra.mrb[0].mxu0 %v5551
          %v5742 = vpop.f32.mrb[0].mxu0
          %v5743 = vadd.f32 0.0, %v5742
          %v5744 = vpop.f32.mrb[0].mxu0
          %5745 = vdwg.mxu0
          %v5746 = vmul.f32 %v5668, 2.0
          %v5747 = vmul.f32 %v5673, 2.0
          %v5748 = vmul.f32 %v5678, 2.0
          %v5749 = vmul.f32 %v5683, 2.0
          %v5750 = vmul.f32 %v5688, 2.0
          %v5751 = vmul.f32 %v5693, 2.0
          %v5752 = vmul.f32 %v5698, 2.0
          %v5753 = vmul.f32 %v5703, 2.0
          %v5754 = vmul.f32 %v5708, 2.0
          %v5755 = vmul.f32 %v5713, 2.0
          %v5756 = vmul.f32 %v5718, 2.0
          %v5757 = vmul.f32 %v5723, 2.0
          %v5758 = vmul.f32 %v5728, 2.0
          %v5759 = vmul.f32 %v5733, 2.0
          %v5760 = vmul.f32 %v5738, 2.0
          %v5761 = vmul.f32 %v5743, 2.0
          %v5762 = vmul.f32 %v5746, 1.442695
          %v5763 = vpow.pop %v5762
          %v5764 = vmul.f32 %v5747, 1.442695
          %v5765 = vpow.pop %v5764
          %v5766 = vmul.f32 %v5748, 1.442695
          %v5767 = vpow.pop %v5766
          %v5768 = vmul.f32 %v5749, 1.442695
          %v5769 = vpow.pop %v5768
          %v5770 = vmul.f32 %v5750, 1.442695
          %v5771 = vpow.pop %v5770
          %v5772 = vmul.f32 %v5751, 1.442695
          %v5773 = vpow.pop %v5772
          %v5774 = vmul.f32 %v5752, 1.442695
          %v5775 = vpow.pop %v5774
          %v5776 = vmul.f32 %v5753, 1.442695
          %v5777 = vpow.pop %v5776
          %v5778 = vmul.f32 %v5754, 1.442695
          %v5779 = vpow.pop %v5778
          %v5780 = vmul.f32 %v5755, 1.442695
          %v5781 = vpow.pop %v5780
          %v5782 = vmul.f32 %v5756, 1.442695
          %v5783 = vpow.pop %v5782
          %v5784 = vmul.f32 %v5757, 1.442695
          %v5785 = vpow.pop %v5784
          %v5786 = vmul.f32 %v5758, 1.442695
          %v5787 = vpow.pop %v5786
          %v5788 = vmul.f32 %v5759, 1.442695
          %v5789 = vpow.pop %v5788
          %v5790 = vmul.f32 %v5760, 1.442695
          %v5791 = vpow.pop %v5790
          %v5792 = vmul.f32 %v5761, 1.442695
          %v5793 = vpow.pop %v5792
          %v5794 = vlaneseq
          %v5795 = vshrl.u32 %v5794, 7
          %v5796 = vadd.s32 %v5795, 8
          %v5797 = vadd.s32 %v5795, 16
          %v5798 = vadd.s32 %v5795, 24
          %v5799 = vadd.s32 %v5795, 32
          %v5800 = vadd.s32 %v5795, 40
          %v5801 = vadd.s32 %v5795, 48
          %v5802 = vadd.s32 %v5795, 56
          %v5803 = vadd.s32 %v5795, 64
          %v5804 = vadd.s32 %v5795, 72
          %v5805 = vadd.s32 %v5795, 80
          %v5806 = vadd.s32 %v5795, 88
          %v5807 = vadd.s32 %v5795, 96
          %v5808 = vadd.s32 %v5795, 104
          %v5809 = vadd.s32 %v5795, 112
          %v5810 = vadd.s32 %v5795, 120
          %v5811 = vlaneseq
          %v5812 = vand.u32 %v5811, 127
          %vm5813 = vcmp.lt.s32.totalorder %v5795, 100
          %vm5814 = vcmp.lt.s32.totalorder %v5796, 100
          %vm5815 = vcmp.lt.s32.totalorder %v5797, 100
          %vm5816 = vcmp.lt.s32.totalorder %v5798, 100
          %vm5817 = vcmp.lt.s32.totalorder %v5799, 100
          %vm5818 = vcmp.lt.s32.totalorder %v5800, 100
          %vm5819 = vcmp.lt.s32.totalorder %v5801, 100
          %vm5820 = vcmp.lt.s32.totalorder %v5802, 100
          %vm5821 = vcmp.lt.s32.totalorder %v5803, 100
          %vm5822 = vcmp.lt.s32.totalorder %v5804, 100
          %vm5823 = vcmp.lt.s32.totalorder %v5805, 100
          %vm5824 = vcmp.lt.s32.totalorder %v5806, 100
          %vm5825 = vcmp.lt.s32.totalorder %v5807, 100
          %vm5826 = vcmp.lt.s32.totalorder %v5808, 100
          %vm5827 = vcmp.lt.s32.totalorder %v5809, 100
          %vm5828 = vcmp.lt.s32.totalorder %v5810, 100
          %vm5829 = vcmp.lt.s32.totalorder %v5812, 100
          %vm5830 = vmand %vm5813, %vm5829
          %vm5831 = vmand %vm5814, %vm5829
          %vm5832 = vmand %vm5815, %vm5829
          %vm5833 = vmand %vm5816, %vm5829
          %vm5834 = vmand %vm5817, %vm5829
          %vm5835 = vmand %vm5818, %vm5829
          %vm5836 = vmand %vm5819, %vm5829
          %vm5837 = vmand %vm5820, %vm5829
          %vm5838 = vmand %vm5821, %vm5829
          %vm5839 = vmand %vm5822, %vm5829
          %vm5840 = vmand %vm5823, %vm5829
          %vm5841 = vmand %vm5824, %vm5829
          %vm5842 = vmand %vm5825, %vm5829
          %vm5843 = vmand %vm5826, %vm5829
          %vm5844 = vmand %vm5827, %vm5829
          %vm5845 = vmand %vm5828, %vm5829
          %v5846 = vsel %vm5830, %v5763, 0.0
          %v5847 = vsel %vm5831, %v5765, 0.0
          %v5848 = vsel %vm5832, %v5767, 0.0
          %v5849 = vsel %vm5833, %v5769, 0.0
          %v5850 = vsel %vm5834, %v5771, 0.0
          %v5851 = vsel %vm5835, %v5773, 0.0
          %v5852 = vsel %vm5836, %v5775, 0.0
          %v5853 = vsel %vm5837, %v5777, 0.0
          %v5854 = vsel %vm5838, %v5779, 0.0
          %v5855 = vsel %vm5839, %v5781, 0.0
          %v5856 = vsel %vm5840, %v5783, 0.0
          %v5857 = vsel %vm5841, %v5785, 0.0
          %v5858 = vsel %vm5842, %v5787, 0.0
          %v5859 = vsel %vm5843, %v5789, 0.0
          %v5860 = vsel %vm5844, %v5791, 0.0
          %v5861 = vsel %vm5845, %v5793, 0.0
          %v5862 = vadd.f32 %v5846, %v5847
          %v5863 = vadd.f32 %v5862, %v5848
          %v5864 = vadd.f32 %v5863, %v5849
          %v5865 = vadd.f32 %v5864, %v5850
          %v5866 = vadd.f32 %v5865, %v5851
          %v5867 = vadd.f32 %v5866, %v5852
          %v5868 = vadd.f32 %v5867, %v5853
          %v5869 = vadd.f32 %v5868, %v5854
          %v5870 = vadd.f32 %v5869, %v5855
          %v5871 = vadd.f32 %v5870, %v5856
          %v5872 = vadd.f32 %v5871, %v5857
          %v5873 = vadd.f32 %v5872, %v5858
          %v5874 = vadd.f32 %v5873, %v5859
          %v5875 = vadd.f32 %v5874, %v5860
          %v5876 = vadd.f32 %v5875, %v5861
          %5877 = vadd.xlane.f32.xlu0 %v5876
          %v5878 = vpop.xlane.xlu0 %5877
          %v5879 = vrot.slane %v5878, 4
          %v5880 = vadd.f32 %v5878, %v5879
          %v5881 = vrot.slane %v5880, 2
          %v5882 = vadd.f32 %v5880, %v5881
          %v5883 = vrot.slane %v5882, 1
          %v5884 = vadd.f32 %v5882, %v5883
          %s5885 = vtos %v5884
          %v5886 = vmul.f32 %v5472, %v5489
          %v5887 = vmul.f32 %v5473, %v5490
          %v5888 = vmul.f32 %v5474, %v5491
          %v5889 = vmul.f32 %v5475, %v5492
          %v5890 = vmul.f32 %v5476, %v5493
          %v5891 = vmul.f32 %v5477, %v5494
          %v5892 = vmul.f32 %v5478, %v5495
          %v5893 = vmul.f32 %v5479, %v5496
          %v5894 = vmul.f32 %v5480, %v5497
          %v5895 = vmul.f32 %v5481, %v5498
          %v5896 = vmul.f32 %v5482, %v5499
          %v5897 = vmul.f32 %v5483, %v5500
          %v5898 = vmul.f32 %v5484, %v5501
          %v5899 = vmul.f32 %v5485, %v5502
          %v5900 = vmul.f32 %v5486, %v5503
          %v5901 = vmul.f32 %v5487, %v5504
          %v5902 = vsel %vm5353, %v5886, 0.0
          %5903 = vadd.xlane.f32.xlu0 %v5902
          %v5904 = vpop.xlane.xlu0 %5903
          %v5905 = vsel %vm5353, %v5887, 0.0
          %5906 = vadd.xlane.f32.xlu0 %v5905
          %v5907 = vpop.xlane.xlu0 %5906
          %v5908 = vsel %vm5353, %v5888, 0.0
          %5909 = vadd.xlane.f32.xlu0 %v5908
          %v5910 = vpop.xlane.xlu0 %5909
          %v5911 = vsel %vm5353, %v5889, 0.0
          %5912 = vadd.xlane.f32.xlu0 %v5911
          %v5913 = vpop.xlane.xlu0 %5912
          %v5914 = vsel %vm5353, %v5890, 0.0
          %5915 = vadd.xlane.f32.xlu0 %v5914
          %v5916 = vpop.xlane.xlu0 %5915
          %v5917 = vsel %vm5353, %v5891, 0.0
          %5918 = vadd.xlane.f32.xlu0 %v5917
          %v5919 = vpop.xlane.xlu0 %5918
          %v5920 = vsel %vm5353, %v5892, 0.0
          %5921 = vadd.xlane.f32.xlu0 %v5920
          %v5922 = vpop.xlane.xlu0 %5921
          %v5923 = vsel %vm5353, %v5893, 0.0
          %5924 = vadd.xlane.f32.xlu0 %v5923
          %v5925 = vpop.xlane.xlu0 %5924
          %v5926 = vsel %vm5353, %v5894, 0.0
          %5927 = vadd.xlane.f32.xlu0 %v5926
          %v5928 = vpop.xlane.xlu0 %5927
          %v5929 = vsel %vm5353, %v5895, 0.0
          %5930 = vadd.xlane.f32.xlu0 %v5929
          %v5931 = vpop.xlane.xlu0 %5930
          %v5932 = vsel %vm5353, %v5896, 0.0
          %5933 = vadd.xlane.f32.xlu0 %v5932
          %v5934 = vpop.xlane.xlu0 %5933
          %v5935 = vsel %vm5353, %v5897, 0.0
          %5936 = vadd.xlane.f32.xlu0 %v5935
          %v5937 = vpop.xlane.xlu0 %5936
          %v5938 = vsel %vm5353, %v5898, 0.0
          %5939 = vadd.xlane.f32.xlu0 %v5938
          %v5940 = vpop.xlane.xlu0 %5939
          %v5941 = vsel %vm5353, %v5899, 0.0
          %5942 = vadd.xlane.f32.xlu0 %v5941
          %v5943 = vpop.xlane.xlu0 %5942
          %v5944 = vsel %vm5353, %v5900, 0.0
          %5945 = vadd.xlane.f32.xlu0 %v5944
          %v5946 = vpop.xlane.xlu0 %5945
          %v5947 = vsel %vm5353, %v5901, 0.0
          %5948 = vadd.xlane.f32.xlu0 %v5947
          %v5949 = vpop.xlane.xlu0 %5948
          %v5950 = vmul.f32 %v5904, 2.0
          %v5951 = vmul.f32 %v5907, 2.0
          %v5952 = vmul.f32 %v5910, 2.0
          %v5953 = vmul.f32 %v5913, 2.0
          %v5954 = vmul.f32 %v5916, 2.0
          %v5955 = vmul.f32 %v5919, 2.0
          %v5956 = vmul.f32 %v5922, 2.0
          %v5957 = vmul.f32 %v5925, 2.0
          %v5958 = vmul.f32 %v5928, 2.0
          %v5959 = vmul.f32 %v5931, 2.0
          %v5960 = vmul.f32 %v5934, 2.0
          %v5961 = vmul.f32 %v5937, 2.0
          %v5962 = vmul.f32 %v5940, 2.0
          %v5963 = vmul.f32 %v5943, 2.0
          %v5964 = vmul.f32 %v5946, 2.0
          %v5965 = vmul.f32 %v5949, 2.0
          %v5966 = vmul.f32 %v5950, 1.442695
          %v5967 = vpow.pop %v5966
          %v5968 = vmul.f32 %v5951, 1.442695
          %v5969 = vpow.pop %v5968
          %v5970 = vmul.f32 %v5952, 1.442695
          %v5971 = vpow.pop %v5970
          %v5972 = vmul.f32 %v5953, 1.442695
          %v5973 = vpow.pop %v5972
          %v5974 = vmul.f32 %v5954, 1.442695
          %v5975 = vpow.pop %v5974
          %v5976 = vmul.f32 %v5955, 1.442695
          %v5977 = vpow.pop %v5976
          %v5978 = vmul.f32 %v5956, 1.442695
          %v5979 = vpow.pop %v5978
          %v5980 = vmul.f32 %v5957, 1.442695
          %v5981 = vpow.pop %v5980
          %v5982 = vmul.f32 %v5958, 1.442695
          %v5983 = vpow.pop %v5982
          %v5984 = vmul.f32 %v5959, 1.442695
          %v5985 = vpow.pop %v5984
          %v5986 = vmul.f32 %v5960, 1.442695
          %v5987 = vpow.pop %v5986
          %v5988 = vmul.f32 %v5961, 1.442695
          %v5989 = vpow.pop %v5988
          %v5990 = vmul.f32 %v5962, 1.442695
          %v5991 = vpow.pop %v5990
          %v5992 = vmul.f32 %v5963, 1.442695
          %v5993 = vpow.pop %v5992
          %v5994 = vmul.f32 %v5964, 1.442695
          %v5995 = vpow.pop %v5994
          %v5996 = vmul.f32 %v5965, 1.442695
          %v5997 = vpow.pop %v5996
          %v5998 = vsel %vm5813, %v5967, 0.0
          %v5999 = vsel %vm5814, %v5969, 0.0
          %v6000 = vsel %vm5815, %v5971, 0.0
          %v6001 = vsel %vm5816, %v5973, 0.0
          %v6002 = vsel %vm5817, %v5975, 0.0
          %v6003 = vsel %vm5818, %v5977, 0.0
          %v6004 = vsel %vm5819, %v5979, 0.0
          %v6005 = vsel %vm5820, %v5981, 0.0
          %v6006 = vsel %vm5821, %v5983, 0.0
          %v6007 = vsel %vm5822, %v5985, 0.0
          %v6008 = vsel %vm5823, %v5987, 0.0
          %v6009 = vsel %vm5824, %v5989, 0.0
          %v6010 = vsel %vm5825, %v5991, 0.0
          %v6011 = vsel %vm5826, %v5993, 0.0
          %v6012 = vsel %vm5827, %v5995, 0.0
          %v6013 = vsel %vm5828, %v5997, 0.0
          %vm6014 = vcmask 7168
          %v6015 = vsel %vm6014, %v5998, 0.0
          %v6016 = vsel %vm6014, %v5999, 0.0
          %v6017 = vadd.f32 %v6015, %v6016
          %v6018 = vsel %vm6014, %v6000, 0.0
          %v6019 = vadd.f32 %v6017, %v6018
          %v6020 = vsel %vm6014, %v6001, 0.0
          %v6021 = vadd.f32 %v6019, %v6020
          %v6022 = vsel %vm6014, %v6002, 0.0
          %v6023 = vadd.f32 %v6021, %v6022
          %v6024 = vsel %vm6014, %v6003, 0.0
          %v6025 = vadd.f32 %v6023, %v6024
          %v6026 = vsel %vm6014, %v6004, 0.0
          %v6027 = vadd.f32 %v6025, %v6026
          %v6028 = vsel %vm6014, %v6005, 0.0
          %v6029 = vadd.f32 %v6027, %v6028
          %v6030 = vsel %vm6014, %v6006, 0.0
          %v6031 = vadd.f32 %v6029, %v6030
          %v6032 = vsel %vm6014, %v6007, 0.0
          %v6033 = vadd.f32 %v6031, %v6032
          %v6034 = vsel %vm6014, %v6008, 0.0
          %v6035 = vadd.f32 %v6033, %v6034
          %v6036 = vsel %vm6014, %v6009, 0.0
          %v6037 = vadd.f32 %v6035, %v6036
          %v6038 = vsel %vm6014, %v6010, 0.0
          %v6039 = vadd.f32 %v6037, %v6038
          %v6040 = vsel %vm6014, %v6011, 0.0
          %v6041 = vadd.f32 %v6039, %v6040
          %v6042 = vsel %vm6014, %v6012, 0.0
          %v6043 = vadd.f32 %v6041, %v6042
          %v6044 = vsel %vm6014, %v6013, 0.0
          %v6045 = vadd.f32 %v6043, %v6044
          %6046 = vadd.xlane.f32.xlu0 %v6045
          %v6047 = vpop.xlane.xlu0 %6046
          %v6048 = vrot.slane %v6047, 4
          %v6049 = vadd.f32 %v6047, %v6048
          %v6050 = vrot.slane %v6049, 2
          %v6051 = vadd.f32 %v6049, %v6050
          %v6052 = vrot.slane %v6051, 1
          %v6053 = vadd.f32 %v6051, %v6052
          %s6054 = vtos %v6053
          %s6055 = ssub.f32 %s5885, %s6054
          %v6056 = vstv %s6055
          %v6057 = vrcp.pop %v6056
          %s6058 = vtos %v6057
          %s6059 = smul.f32 %s6054, %s6058
          %v6060 = vstv %s6059
          %v6061 = vlog2.pop %v6060
          %v6062 = vmul.f32 %v6061, 0.6931472
          %s6063 = vtos %v6062
          %s6064 = ssub.f32 0.0, %s6063
          %s6065 = scalar_lea.smem [#allocation3], 0
          %6066 = sst [smem:[%s6065]] %s6064
        $region36: #{_lambda_.1} parent=31 // pred_fallthru
          _
        // Predicated region
        $region37: #{_lambda_.1} parent=31 // pred_check
          %p6067 = pneg %p101
        $region38: #{_lambda_.1} parent=31 // pred_check_branch
          %6069 = sbr.rel (%p6067) target = $region40
        $region39: #{_lambda_.1} parent=31 // pred_region
          %s6071 = ssub.s32 16, 16
          %6072 = vsyncadd [#allocation4], %s6071
          %6075 = dma.smem_to_hbm [#allocation3], 16, %s3, [#allocation4]
        $region40: #{_lambda_.1} parent=31 // pred_fallthru
          _
        // Predicated region
        $region41: #{_lambda_.1} parent=31 // pred_check
          %p6076 = pneg %p101
        $region42: #{_lambda_.1} parent=31 // pred_check_branch
          %6078 = sbr.rel (%p6076) target = $region44
        $region43: #{_lambda_.1} parent=31 // pred_region
          %6079 = dma.done [#allocation4], 16
        $region44: #{_lambda_.1} parent=31 // pred_fallthru
          _
        %6080 = sfence
      $region32: #{_lambda_.1} parent=5 // pred_fallthru
        _
      %p6081 = scmp.le.s32.totalorder 2, %s10
      // Predicated region
      $region45: #{_lambda_.1} parent=5 // pred_check
        %p6082 = pneg %p6081
      $region46: #{_lambda_.1} parent=5 // pred_check_branch
        %6084 = sbr.rel (%p6082) target = $region48
      $region47: #{_lambda_.1} parent=5 // pred_region
        %s6085 = ssub.s32 %s10, 2
      $region48: #{_lambda_.1} parent=5 // pred_fallthru
        _
    $region6: #{_lambda_.1} parent=1 // loop_footer
      %s14 = sadd.s32 1, %s10
    $region7: #{_lambda_.1} parent=1 // loop_footer_branch
      %9 = sbr.rel target = $region3
    $region8: #{_lambda_.1} parent=1 // loop_exit
      _
    %6086 = vsyncpa [#allocation4], 1
    %s6087 = scalar_lea.sflag [#allocation4], 1
    %6088 = vsyncpa %s6087, 1

</llo_original>
